<compile_context>
chip_gen: v5e
topology: v5e:2x2
jax: 0.10.0
libtpu: 0.0.40
codegen_flags: <defaults>
</compile_context>

<pallas_src>
import functools

import numpy as np
import jax
import jax.numpy as jnp
from jax.experimental import pallas as pl
from jax.experimental.pallas import tpu as pltpu


# ----------------------------------------------------------------------------
# Fused kernel: 3x3 conv (im2col) + ReLU + fused heads + fg sigmoid + box decode
# ----------------------------------------------------------------------------
def rpn_head_kernel(xp_ref, w1_ref, b1_ref, wh_ref, bh_ref, off_ref, size_ref,
                    out_ref, *, TH, W, C, h_img, w_img):
    # xp_ref  : (1, H+2, W+2, C)  zero-padded NHWC image (resident per batch)
    # w1_ref  : (9*C, C)          im2col conv1 weights, row = (kh*3+kw)*C + ci
    # b1_ref  : (1, C)
    # wh_ref  : (C, 126)          fused heads: [bg(9)|fg(9)|loc(36)|loc_shift(36)|loc_log(36)]
    # bh_ref  : (1, 126)
    # off_ref : (TH*W, 36)        anchor offsets  (py, px, py, px) per anchor
    # size_ref: (TH*W, 36)        anchor sizes    (ph, pw, ph, pw) per anchor
    # out_ref : (1, TH*W, 128)    [fg(9) | loc(36) | rois(36) | zero pad(47)]
    j = pl.program_id(1)
    r0 = j * TH
    M = TH * W

    # --- im2col: 9 shifted (TH, W, C) windows -> one (TH*W, 9C) operand -------
    wins = []
    for kh in range(3):
        for kw in range(3):
            wins.append(xp_ref[0, pl.ds(r0 + kh, TH), pl.ds(kw, W), :])
    patches = jnp.concatenate(wins, axis=2).reshape(M, 9 * C)

    # conv1 + bias + ReLU : single matmul, K = 9C
    hidden = jnp.dot(patches, w1_ref[...], preferred_element_type=jnp.float32)
    hidden = jnp.maximum(hidden + b1_ref[...], 0.0)

    # fused heads : single matmul, N = 126
    heads = jnp.dot(hidden, wh_ref[...], preferred_element_type=jnp.float32) + bh_ref[...]
    s0 = heads[:, 0:9]          # background logits
    s1 = heads[:, 9:18]         # foreground logits
    loc = heads[:, 18:54]       # raw loc regression, layout (dx,dy,dw,dh) per anchor
    d_shift = heads[:, 54:90]   # column-permuted loc: (dy,dx,dy,dx) per anchor
    d_log = heads[:, 90:126]    # column-permuted loc: (dh,dw,dh,dw) per anchor

    # pair softmax fg probability == sigmoid(fg_logit - bg_logit)
    fg = 1.0 / (1.0 + jnp.exp(s0 - s1))

    # proposal_layer box decode + clip, purely elementwise in this layout:
    #   coord 0: gy        = py + dy*ph
    #   coord 1: gx        = px + dx*pw
    #   coord 2: gy + gh   = py + dy*ph + ph*exp(dh)
    #   coord 3: gx + gw   = px + dx*pw + pw*exp(dw)
    g = off_ref[...] + d_shift * size_ref[...]
    g2 = g + size_ref[...] * jnp.exp(d_log)
    col = jax.lax.broadcasted_iota(jnp.int32, (M, 36), 1)
    c4 = col % 4
    rois = jnp.where(c4 >= 2, g2, g)
    bound = jnp.where(c4 % 2 == 0, h_img, w_img)   # y coords clip to H, x to W
    rois = jnp.clip(rois, 0.0, bound)

    pad = jnp.zeros((M, 128 - 81), jnp.float32)
    out_ref[0] = jnp.concatenate([fg, loc, rois, pad], axis=1).astype(out_ref.dtype)


# ----------------------------------------------------------------------------
# numpy glue: anchor generation (identical to the PyTorch module)
# ----------------------------------------------------------------------------
def generate_anchor_base(base_size=16, ratios=(0.5, 1, 2), anchor_scales=(2, 4, 8)):
    py = base_size / 2.0
    px = base_size / 2.0
    anchor_base = np.zeros((len(ratios) * len(anchor_scales), 4), dtype=np.float32)
    for i in range(len(ratios)):
        for j in range(len(anchor_scales)):
            h = base_size * anchor_scales[j] * np.sqrt(ratios[i])
            w = base_size * anchor_scales[j] * np.sqrt(1.0 / ratios[i])
            index = i * len(anchor_scales) + j
            anchor_base[index, 0] = py - h / 2.0
            anchor_base[index, 1] = px - w / 2.0
            anchor_base[index, 2] = py + h / 2.0
            anchor_base[index, 3] = px + w / 2.0
    return anchor_base


def shifted_anchor_base(anchor_base, feat_stride, height, width):
    shift_y = np.arange(0, height * feat_stride, feat_stride)
    shift_x = np.arange(0, width * feat_stride, feat_stride)
    shift_x, shift_y = np.meshgrid(shift_x, shift_y)
    shift = np.stack((shift_y.ravel(), shift_x.ravel(),
                      shift_y.ravel(), shift_x.ravel()), axis=1)
    A = anchor_base.shape[0]
    K = shift.shape[0]
    anchor = anchor_base.reshape((1, A, 4)) + shift.reshape((1, K, 4)).transpose((1, 0, 2))
    return anchor.reshape((K * A, 4)).astype(np.float32)


# ----------------------------------------------------------------------------
# Wrapper: parameter prep + pallas_call plumbing
# ----------------------------------------------------------------------------
def rpn_forward(x_nchw, params, feat_stride, *, row_block=None):
    w_conv, b_conv, w_score, b_score, w_loc, b_loc = params
    N, C, H, W = x_nchw.shape

    # Row-block tile: whole image per step is fine for small feature maps; for
    # large maps choose TH so TH*W is ~256..1024 (and H % TH == 0) and consider
    # vmem_limit_bytes (especially on v7x's 64 MiB VMEM).
    TH = H if row_block is None else row_block
    assert H % TH == 0, "row_block must divide H"
    M = TH * W

    # NCHW -> NHWC, zero-pad spatially for the 3x3 "same" conv.
    # TODO(synk): for production sizes on v6e/v7x, cast x / weights to bf16
    # (keep f32 accumulate); kept f32 here so the numerical check stays tight.
    x = jnp.transpose(x_nchw, (0, 2, 3, 1)).astype(jnp.float32)
    xp = jnp.pad(x, ((0, 0), (1, 1), (1, 1), (0, 0)))

    # Conv weight -> im2col layout (9*C, C): row = (kh*3+kw)*C + ci, col = co.
    w1 = jnp.transpose(w_conv, (2, 3, 1, 0)).reshape(9 * C, C).astype(jnp.float32)
    b1 = b_conv.reshape(1, C).astype(jnp.float32)

    # Score head split by softmax class (bg = channel 2a, fg = channel 2a+1).
    ws = w_score[:, :, 0, 0].T.astype(jnp.float32)          # (C, 18)
    ws0, ws1 = ws[:, 0::2], ws[:, 1::2]                     # (C, 9) each
    bs0 = b_score[0::2].reshape(1, 9).astype(jnp.float32)
    bs1 = b_score[1::2].reshape(1, 9).astype(jnp.float32)

    # Loc head + two column-permuted copies so the decode epilogue is elementwise:
    #   shift term needs (dy, dx, dy, dx), log term needs (dh, dw, dh, dw).
    wl = w_loc[:, :, 0, 0].T.astype(jnp.float32)            # (C, 36)
    bl = b_loc.reshape(1, 36).astype(jnp.float32)
    a_idx = np.arange(9)
    perm_shift = (4 * a_idx[:, None] + np.array([1, 0, 1, 0])[None, :]).reshape(-1)
    perm_log = (4 * a_idx[:, None] + np.array([3, 2, 3, 2])[None, :]).reshape(-1)
    wl_shift, wl_log = wl[:, perm_shift], wl[:, perm_log]
    bl_shift, bl_log = bl[:, perm_shift], bl[:, perm_log]

    # Fused head weights: [bg(9) | fg(9) | loc(36) | loc_shift(36) | loc_log(36)]
    w_heads = jnp.concatenate([ws0, ws1, wl, wl_shift, wl_log], axis=1)   # (C, 126)
    b_heads = jnp.concatenate([bs0, bs1, bl, bl_shift, bl_log], axis=1)   # (1, 126)

    # Anchors + per-position decode helper planes in the (H*W, 36) lane layout.
    anchor_base = generate_anchor_base(base_size=16, ratios=[0.5, 1, 2],
                                       anchor_scales=[2, 4, 8])
    anchors_np = shifted_anchor_base(anchor_base, feat_stride, H, W)      # (H*W*9, 4)
    anch3 = anchors_np.reshape(H * W, 9, 4)
    py, px = anch3[:, :, 0], anch3[:, :, 1]
    ph, pw = anch3[:, :, 2] - anch3[:, :, 0], anch3[:, :, 3] - anch3[:, :, 1]
    anc_off = np.stack([py, px, py, px], axis=2).reshape(H * W, 36).astype(np.float32)
    anc_size = np.stack([ph, pw, ph, pw], axis=2).reshape(H * W, 36).astype(np.float32)

    h_img = float(H * feat_stride)
    w_img = float(W * feat_stride)

    kernel = functools.partial(rpn_head_kernel, TH=TH, W=W, C=C,
                               h_img=h_img, w_img=w_img)

    slab = pl.pallas_call(
        kernel,
        out_shape=jax.ShapeDtypeStruct((N, H * W, 128), jnp.float32),
        grid_spec=pl.GridSpec(
            grid=(N, H // TH),
            in_specs=[
                pl.BlockSpec((1, H + 2, W + 2, C), lambda n, j: (n, 0, 0, 0)),
                pl.BlockSpec((9 * C, C), lambda n, j: (0, 0)),
                pl.BlockSpec((1, C), lambda n, j: (0, 0)),
                pl.BlockSpec((C, 126), lambda n, j: (0, 0)),
                pl.BlockSpec((1, 126), lambda n, j: (0, 0)),
                pl.BlockSpec((M, 36), lambda n, j: (j, 0)),
                pl.BlockSpec((M, 36), lambda n, j: (j, 0)),
            ],
            out_specs=pl.BlockSpec((1, M, 128), lambda n, j: (n, j, 0)),
        ),
        compiler_params=pltpu.CompilerParams(
            dimension_semantics=("parallel", "parallel")),
    )(xp, w1, b1, w_heads, b_heads,
      jnp.asarray(anc_off), jnp.asarray(anc_size))

    rpn_fg_scores = slab[:, :, 0:9].reshape(N, H * W * 9)           # (N, K)
    rpn_locs = slab[:, :, 9:45].reshape(N, H * W * 9, 4)            # (N, K, 4)
    rois_all = slab[:, :, 45:81].reshape(N, H * W * 9, 4)           # (N, K, 4)
    anchors = jnp.asarray(anchors_np)

    # TODO(synk): the reference proposal_layer uses a stable Python dict sort;
    # batched lax.top_k may tie-break differently when scores are exactly equal.
    _, top_idx = jax.lax.top_k(rpn_fg_scores, 20)                   # (N, 20)
    rois_top = jnp.take_along_axis(rois_all, top_idx[:, :, None], axis=1)  # (N, 20, 4)
    b_rois = [rois_top[i] for i in range(N)]

    return rpn_fg_scores, rpn_locs, anchors, b_rois


# ----------------------------------------------------------------------------
# Deterministic parameter initialization (PyTorch layouts)
# ----------------------------------------------------------------------------
def init_params(key, in_channels):
    ks = jax.random.split(key, 6)
    w_conv = 0.1 * jax.random.normal(ks[0], (in_channels, in_channels, 3, 3), jnp.float32)
    b_conv = 0.1 * jax.random.normal(ks[1], (in_channels,), jnp.float32)
    w_score = 0.1 * jax.random.normal(ks[2], (18, in_channels, 1, 1), jnp.float32)
    b_score = 0.1 * jax.random.normal(ks[3], (18,), jnp.float32)
    w_loc = 0.1 * jax.random.normal(ks[4], (36, in_channels, 1, 1), jnp.float32)
    b_loc = 0.1 * jax.random.normal(ks[5], (36,), jnp.float32)
    return (w_conv, b_conv, w_score, b_score, w_loc, b_loc)


# ----------------------------------------------------------------------------
# Pure references (numerical sanity checks of conv/score/loc heads and decode)
# ----------------------------------------------------------------------------
def reference_heads(x_nchw, params):
    w_conv, b_conv, w_score, b_score, w_loc, b_loc = params
    N, C, H, W = x_nchw.shape
    x = jnp.transpose(x_nchw, (0, 2, 3, 1)).astype(jnp.float32)
    w_hwio = jnp.transpose(w_conv, (2, 3, 1, 0))
    h = jax.lax.conv_general_dilated(
        x, w_hwio, window_strides=(1, 1), padding="SAME",
        dimension_numbers=("NHWC", "HWIO", "NHWC")) + b_conv
    h = jnp.maximum(h, 0.0)
    ws = w_score[:, :, 0, 0].T
    wl = w_loc[:, :, 0, 0].T
    scores = jnp.einsum("nhwc,co->nhwo", h, ws) + b_score
    scores = scores.reshape(N, H, W, 9, 2)
    fg = jax.nn.softmax(scores, axis=4)[..., 1].reshape(N, -1)
    locs = (jnp.einsum("nhwc,co->nhwo", h, wl) + b_loc).reshape(N, -1, 4)
    return fg, locs


def reference_decode(anchors, locs, h_img, w_img):
    # Mirrors the PyTorch proposal_layer box math (numpy, per batch element).
    px, py = anchors[:, 1], anchors[:, 0]
    pw, ph = anchors[:, 3] - anchors[:, 1], anchors[:, 2] - anchors[:, 0]
    dx, dy, dw, dh = locs[..., 0], locs[..., 1], locs[..., 2], locs[..., 3]
    gx, gy = px + dx * pw, py + dy * ph
    gw, gh = pw * np.exp(dw), ph * np.exp(dh)
    t = np.stack([gy, gx, gy + gh, gx + gw], axis=-1)
    t = np.maximum(t, 0.0)
    t[..., 0] = np.minimum(t[..., 0], h_img)
    t[..., 1] = np.minimum(t[..., 1], w_img)
    t[..., 2] = np.minimum(t[..., 2], h_img)
    t[..., 3] = np.minimum(t[..., 3], w_img)
    return t


if __name__ == "__main__":
    N, C, H, W = 2, 4, 16, 16
    feat_stride = 16  # im_info

    key = jax.random.PRNGKey(0)
    k_x, k_p = jax.random.split(key)
    x = jax.random.normal(k_x, (N, C, H, W), jnp.float32)
    params = init_params(k_p, C)

    rpn_fg_scores, rpn_locs, anchors, b_rois = rpn_forward(x, params, feat_stride)
    jax.block_until_ready((rpn_fg_scores, rpn_locs, anchors, b_rois))

    # Sanity check 1: conv/score/loc heads against a pure-JAX reference.
    fg_ref, locs_ref = reference_heads(x, params)
    np.testing.assert_allclose(np.asarray(rpn_fg_scores), np.asarray(fg_ref),
                               rtol=1e-4, atol=1e-4)
    np.testing.assert_allclose(np.asarray(rpn_locs), np.asarray(locs_ref),
                               rtol=1e-4, atol=1e-4)

    # Sanity check 2: fused in-kernel decode + top-20 selection against the
    # numpy proposal_layer math.
    fg_np = np.asarray(rpn_fg_scores)
    locs_np = np.asarray(rpn_locs)
    anchors_np = np.asarray(anchors)
    t_all = reference_decode(anchors_np, locs_np,
                             float(H * feat_stride), float(W * feat_stride))
    for i in range(N):
        order = np.argsort(-fg_np[i], kind="stable")[:20]
        np.testing.assert_allclose(np.asarray(b_rois[i]), t_all[i, order],
                                   rtol=1e-4, atol=1e-3)

    assert rpn_fg_scores.shape == (N, H * W * 9)
    assert rpn_locs.shape == (N, H * W * 9, 4)
    assert anchors.shape == (H * W * 9, 4)
    assert len(b_rois) == N and b_rois[0].shape == (20, 4)

    print("KERNEL_OK")
</pallas_src>

<mosaic_0001>
module attributes {stable_mosaic.version = 11 : i64} {
  func.func @rpn_head_kernel(%arg0: i32, %arg1: i32, %arg2: memref<1x18x18x4xf32, #tpu.memory_space<vmem>>, %arg3: memref<36x4xf32, #tpu.memory_space<vmem>>, %arg4: memref<1x4xf32, #tpu.memory_space<vmem>>, %arg5: memref<4x126xf32, #tpu.memory_space<vmem>>, %arg6: memref<1x126xf32, #tpu.memory_space<vmem>>, %arg7: memref<256x36xf32, #tpu.memory_space<vmem>>, %arg8: memref<256x36xf32, #tpu.memory_space<vmem>>, %arg9: memref<1x256x128xf32, #tpu.memory_space<vmem>>) attributes {dimension_semantics = [#tpu.dimension_semantics<parallel>, #tpu.dimension_semantics<parallel>], iteration_bounds = array<i64: 2, 1>, scalar_prefetch = 0 : i64, scratch_operands = 0 : i64, tpu.core_type = #tpu.core_type<tc>, window_params = [{transform_indices = @transform_0, window_bounds = array<i64: 1, 18, 18, 4>}, {pipeline_mode = #tpu.pipeline_mode<synchronous>, transform_indices = @transform_1, window_bounds = array<i64: 36, 4>}, {pipeline_mode = #tpu.pipeline_mode<synchronous>, transform_indices = @transform_2, window_bounds = array<i64: 1, 4>}, {pipeline_mode = #tpu.pipeline_mode<synchronous>, transform_indices = @transform_3, window_bounds = array<i64: 4, 126>}, {pipeline_mode = #tpu.pipeline_mode<synchronous>, transform_indices = @transform_4, window_bounds = array<i64: 1, 126>}, {transform_indices = @transform_5, window_bounds = array<i64: 256, 36>}, {transform_indices = @transform_6, window_bounds = array<i64: 256, 36>}, {transform_indices = @transform_7, window_bounds = array<i64: 1, 256, 128>}]} {
    %c16_i32 = arith.constant 16 : i32
    %0 = arith.muli %arg1, %c16_i32 : i32
    %c0_i32 = arith.constant 0 : i32
    %1 = arith.addi %0, %c0_i32 : i32
    %c0 = arith.constant 0 : index
    %2 = arith.index_cast %1 : i32 to index
    %c0_0 = arith.constant 0 : index
    %c0_1 = arith.constant 0 : index
    %3 = vector.load %arg2[%c0, %2, %c0_0, %c0_1] : memref<1x18x18x4xf32, #tpu.memory_space<vmem>>, vector<1x16x16x4xf32>
    %4 = vector.shape_cast %3 : vector<1x16x16x4xf32> to vector<16x16x4xf32>
    %c0_i32_2 = arith.constant 0 : i32
    %5 = arith.addi %0, %c0_i32_2 : i32
    %c0_3 = arith.constant 0 : index
    %6 = arith.index_cast %5 : i32 to index
    %c1 = arith.constant 1 : index
    %c0_4 = arith.constant 0 : index
    %7 = vector.load %arg2[%c0_3, %6, %c1, %c0_4] : memref<1x18x18x4xf32, #tpu.memory_space<vmem>>, vector<1x16x16x4xf32>
    %8 = vector.shape_cast %7 : vector<1x16x16x4xf32> to vector<16x16x4xf32>
    %c0_i32_5 = arith.constant 0 : i32
    %9 = arith.addi %0, %c0_i32_5 : i32
    %c0_6 = arith.constant 0 : index
    %10 = arith.index_cast %9 : i32 to index
    %c2 = arith.constant 2 : index
    %c0_7 = arith.constant 0 : index
    %11 = vector.load %arg2[%c0_6, %10, %c2, %c0_7] : memref<1x18x18x4xf32, #tpu.memory_space<vmem>>, vector<1x16x16x4xf32>
    %12 = vector.shape_cast %11 : vector<1x16x16x4xf32> to vector<16x16x4xf32>
    %c1_i32 = arith.constant 1 : i32
    %13 = arith.addi %0, %c1_i32 : i32
    %c0_8 = arith.constant 0 : index
    %14 = arith.index_cast %13 : i32 to index
    %c0_9 = arith.constant 0 : index
    %c0_10 = arith.constant 0 : index
    %15 = vector.load %arg2[%c0_8, %14, %c0_9, %c0_10] : memref<1x18x18x4xf32, #tpu.memory_space<vmem>>, vector<1x16x16x4xf32>
    %16 = vector.shape_cast %15 : vector<1x16x16x4xf32> to vector<16x16x4xf32>
    %c1_i32_11 = arith.constant 1 : i32
    %17 = arith.addi %0, %c1_i32_11 : i32
    %c0_12 = arith.constant 0 : index
    %18 = arith.index_cast %17 : i32 to index
    %c1_13 = arith.constant 1 : index
    %c0_14 = arith.constant 0 : index
    %19 = vector.load %arg2[%c0_12, %18, %c1_13, %c0_14] : memref<1x18x18x4xf32, #tpu.memory_space<vmem>>, vector<1x16x16x4xf32>
    %20 = vector.shape_cast %19 : vector<1x16x16x4xf32> to vector<16x16x4xf32>
    %c1_i32_15 = arith.constant 1 : i32
    %21 = arith.addi %0, %c1_i32_15 : i32
    %c0_16 = arith.constant 0 : index
    %22 = arith.index_cast %21 : i32 to index
    %c2_17 = arith.constant 2 : index
    %c0_18 = arith.constant 0 : index
    %23 = vector.load %arg2[%c0_16, %22, %c2_17, %c0_18] : memref<1x18x18x4xf32, #tpu.memory_space<vmem>>, vector<1x16x16x4xf32>
    %24 = vector.shape_cast %23 : vector<1x16x16x4xf32> to vector<16x16x4xf32>
    %c2_i32 = arith.constant 2 : i32
    %25 = arith.addi %0, %c2_i32 : i32
    %c0_19 = arith.constant 0 : index
    %26 = arith.index_cast %25 : i32 to index
    %c0_20 = arith.constant 0 : index
    %c0_21 = arith.constant 0 : index
    %27 = vector.load %arg2[%c0_19, %26, %c0_20, %c0_21] : memref<1x18x18x4xf32, #tpu.memory_space<vmem>>, vector<1x16x16x4xf32>
    %28 = vector.shape_cast %27 : vector<1x16x16x4xf32> to vector<16x16x4xf32>
    %c2_i32_22 = arith.constant 2 : i32
    %29 = arith.addi %0, %c2_i32_22 : i32
    %c0_23 = arith.constant 0 : index
    %30 = arith.index_cast %29 : i32 to index
    %c1_24 = arith.constant 1 : index
    %c0_25 = arith.constant 0 : index
    %31 = vector.load %arg2[%c0_23, %30, %c1_24, %c0_25] : memref<1x18x18x4xf32, #tpu.memory_space<vmem>>, vector<1x16x16x4xf32>
    %32 = vector.shape_cast %31 : vector<1x16x16x4xf32> to vector<16x16x4xf32>
    %c2_i32_26 = arith.constant 2 : i32
    %33 = arith.addi %0, %c2_i32_26 : i32
    %c0_27 = arith.constant 0 : index
    %34 = arith.index_cast %33 : i32 to index
    %c2_28 = arith.constant 2 : index
    %c0_29 = arith.constant 0 : index
    %35 = vector.load %arg2[%c0_27, %34, %c2_28, %c0_29] : memref<1x18x18x4xf32, #tpu.memory_space<vmem>>, vector<1x16x16x4xf32>
    %36 = vector.shape_cast %35 : vector<1x16x16x4xf32> to vector<16x16x4xf32>
    %37 = tpu.concatenate %4, %8, %12, %16, %20, %24, %28, %32, %36 in 2 : vector<16x16x4xf32>, vector<16x16x4xf32>, vector<16x16x4xf32>, vector<16x16x4xf32>, vector<16x16x4xf32>, vector<16x16x4xf32>, vector<16x16x4xf32>, vector<16x16x4xf32>, vector<16x16x4xf32> -> vector<16x16x36xf32>
    %38 = vector.shape_cast %37 : vector<16x16x36xf32> to vector<256x36xf32>
    %c0_30 = arith.constant 0 : index
    %c0_31 = arith.constant 0 : index
    %39 = vector.load %arg3[%c0_30, %c0_31] : memref<36x4xf32, #tpu.memory_space<vmem>>, vector<36x4xf32>
    %cst = arith.constant dense<0.000000e+00> : vector<256x4xf32>
    %40 = tpu.matmul %38, %39, %cst {dimension_numbers = #tpu.dot_dimension_numbers<[1], [0], [0], [1], [0, 0, 1, 1], [], []>} : vector<256x36xf32>, vector<36x4xf32>, vector<256x4xf32> -> vector<256x4xf32>
    %c0_32 = arith.constant 0 : index
    %c0_33 = arith.constant 0 : index
    %41 = vector.load %arg4[%c0_32, %c0_33] : memref<1x4xf32, #tpu.memory_space<vmem>>, vector<1x4xf32>
    %42 = vector.broadcast %41 : vector<1x4xf32> to vector<256x4xf32>
    %43 = arith.addf %40, %42 : vector<256x4xf32>
    %cst_34 = arith.constant 0.000000e+00 : f32
    %44 = vector.broadcast %cst_34 : f32 to vector<256x4xf32>
    %45 = arith.maximumf %43, %44 : vector<256x4xf32>
    %c0_35 = arith.constant 0 : index
    %c0_36 = arith.constant 0 : index
    %46 = vector.load %arg5[%c0_35, %c0_36] : memref<4x126xf32, #tpu.memory_space<vmem>>, vector<4x126xf32>
    %cst_37 = arith.constant dense<0.000000e+00> : vector<256x126xf32>
    %47 = tpu.matmul %45, %46, %cst_37 {dimension_numbers = #tpu.dot_dimension_numbers<[1], [0], [0], [1], [0, 0, 1, 1], [], []>} : vector<256x4xf32>, vector<4x126xf32>, vector<256x126xf32> -> vector<256x126xf32>
    %c0_38 = arith.constant 0 : index
    %c0_39 = arith.constant 0 : index
    %48 = vector.load %arg6[%c0_38, %c0_39] : memref<1x126xf32, #tpu.memory_space<vmem>>, vector<1x126xf32>
    %49 = vector.broadcast %48 : vector<1x126xf32> to vector<256x126xf32>
    %50 = arith.addf %47, %49 : vector<256x126xf32>
    %51 = vector.extract_strided_slice %50 {offsets = [0, 0], sizes = [256, 9], strides = [1, 1]} : vector<256x126xf32> to vector<256x9xf32>
    %52 = vector.extract_strided_slice %50 {offsets = [0, 9], sizes = [256, 9], strides = [1, 1]} : vector<256x126xf32> to vector<256x9xf32>
    %53 = vector.extract_strided_slice %50 {offsets = [0, 18], sizes = [256, 36], strides = [1, 1]} : vector<256x126xf32> to vector<256x36xf32>
    %54 = vector.extract_strided_slice %50 {offsets = [0, 54], sizes = [256, 36], strides = [1, 1]} : vector<256x126xf32> to vector<256x36xf32>
    %55 = vector.extract_strided_slice %50 {offsets = [0, 90], sizes = [256, 36], strides = [1, 1]} : vector<256x126xf32> to vector<256x36xf32>
    %56 = arith.subf %51, %52 : vector<256x9xf32>
    %57 = math.exp %56 : vector<256x9xf32>
    %cst_40 = arith.constant 1.000000e+00 : f32
    %58 = vector.broadcast %cst_40 : f32 to vector<256x9xf32>
    %59 = arith.addf %58, %57 : vector<256x9xf32>
    %cst_41 = arith.constant 1.000000e+00 : f32
    %60 = vector.broadcast %cst_41 : f32 to vector<256x9xf32>
    %61 = arith.divf %60, %59 : vector<256x9xf32>
    %c0_42 = arith.constant 0 : index
    %c0_43 = arith.constant 0 : index
    %62 = vector.load %arg7[%c0_42, %c0_43] : memref<256x36xf32, #tpu.memory_space<vmem>>, vector<256x36xf32>
    %c0_44 = arith.constant 0 : index
    %c0_45 = arith.constant 0 : index
    %63 = vector.load %arg8[%c0_44, %c0_45] : memref<256x36xf32, #tpu.memory_space<vmem>>, vector<256x36xf32>
    %64 = arith.mulf %54, %63 : vector<256x36xf32>
    %65 = arith.addf %62, %64 : vector<256x36xf32>
    %c0_46 = arith.constant 0 : index
    %c0_47 = arith.constant 0 : index
    %66 = vector.load %arg8[%c0_46, %c0_47] : memref<256x36xf32, #tpu.memory_space<vmem>>, vector<256x36xf32>
    %67 = math.exp %55 : vector<256x36xf32>
    %68 = arith.mulf %66, %67 : vector<256x36xf32>
    %69 = arith.addf %65, %68 : vector<256x36xf32>
    %70 = tpu.iota {dimensions = array<i32: 1>} : vector<256x36xi32>
    %c4_i32 = arith.constant 4 : i32
    %c0_i32_48 = arith.constant 0 : i32
    %71 = arith.cmpi eq, %c4_i32, %c0_i32_48 : i32
    %c1_i32_49 = arith.constant 1 : i32
    %72 = arith.select %71, %c1_i32_49, %c4_i32 : i32
    %73 = vector.broadcast %72 : i32 to vector<256x36xi32>
    %74 = arith.remsi %70, %73 : vector<256x36xi32>
    %c0_i32_50 = arith.constant 0 : i32
    %75 = vector.broadcast %c0_i32_50 : i32 to vector<256x36xi32>
    %76 = arith.cmpi ne, %74, %75 : vector<256x36xi32>
    %c0_i32_51 = arith.constant 0 : i32
    %77 = vector.broadcast %c0_i32_51 : i32 to vector<256x36xi32>
    %78 = arith.cmpi slt, %74, %77 : vector<256x36xi32>
    %c0_i32_52 = arith.constant 0 : i32
    %79 = arith.cmpi slt, %72, %c0_i32_52 : i32
    %80 = vector.broadcast %79 : i1 to vector<256x36xi1>
    %81 = vector.broadcast %80 : vector<256x36xi1> to vector<256x36xi1>
    %82 = arith.xori %78, %81 : vector<256x36xi1>
    %83 = arith.andi %82, %76 : vector<256x36xi1>
    %84 = vector.broadcast %72 : i32 to vector<256x36xi32>
    %85 = arith.addi %74, %84 : vector<256x36xi32>
    %86 = arith.select %83, %85, %74 : vector<256x36xi1>, vector<256x36xi32>
    %c2_i32_53 = arith.constant 2 : i32
    %87 = vector.broadcast %c2_i32_53 : i32 to vector<256x36xi32>
    %88 = arith.cmpi sge, %86, %87 : vector<256x36xi32>
    %89 = arith.select %88, %69, %65 : vector<256x36xi1>, vector<256x36xf32>
    %c2_i32_54 = arith.constant 2 : i32
    %c0_i32_55 = arith.constant 0 : i32
    %90 = arith.cmpi eq, %c2_i32_54, %c0_i32_55 : i32
    %c1_i32_56 = arith.constant 1 : i32
    %91 = arith.select %90, %c1_i32_56, %c2_i32_54 : i32
    %92 = vector.broadcast %91 : i32 to vector<256x36xi32>
    %93 = arith.remsi %86, %92 : vector<256x36xi32>
    %c0_i32_57 = arith.constant 0 : i32
    %94 = vector.broadcast %c0_i32_57 : i32 to vector<256x36xi32>
    %95 = arith.cmpi ne, %93, %94 : vector<256x36xi32>
    %c0_i32_58 = arith.constant 0 : i32
    %96 = vector.broadcast %c0_i32_58 : i32 to vector<256x36xi32>
    %97 = arith.cmpi slt, %93, %96 : vector<256x36xi32>
    %c0_i32_59 = arith.constant 0 : i32
    %98 = arith.cmpi slt, %91, %c0_i32_59 : i32
    %99 = vector.broadcast %98 : i1 to vector<256x36xi1>
    %100 = vector.broadcast %99 : vector<256x36xi1> to vector<256x36xi1>
    %101 = arith.xori %97, %100 : vector<256x36xi1>
    %102 = arith.andi %101, %95 : vector<256x36xi1>
    %103 = vector.broadcast %91 : i32 to vector<256x36xi32>
    %104 = arith.addi %93, %103 : vector<256x36xi32>
    %105 = arith.select %102, %104, %93 : vector<256x36xi1>, vector<256x36xi32>
    %c0_i32_60 = arith.constant 0 : i32
    %106 = vector.broadcast %c0_i32_60 : i32 to vector<256x36xi32>
    %107 = arith.cmpi eq, %105, %106 : vector<256x36xi32>
    %cst_61 = arith.constant 2.560000e+02 : f32
    %cst_62 = arith.constant 2.560000e+02 : f32
    %108 = vector.broadcast %cst_61 : f32 to vector<256x36xf32>
    %109 = vector.broadcast %cst_62 : f32 to vector<256x36xf32>
    %110 = arith.select %107, %108, %109 : vector<256x36xi1>, vector<256x36xf32>
    %cst_63 = arith.constant 0.000000e+00 : f32
    %111 = vector.broadcast %cst_63 : f32 to vector<256x36xf32>
    %112 = arith.maximumf %111, %89 : vector<256x36xf32>
    %113 = arith.minimumf %110, %112 : vector<256x36xf32>
    %cst_64 = arith.constant 0.000000e+00 : f32
    %114 = vector.broadcast %cst_64 : f32 to vector<256x47xf32>
    %115 = tpu.concatenate %61, %53, %113, %114 in 1 : vector<256x9xf32>, vector<256x36xf32>, vector<256x36xf32>, vector<256x47xf32> -> vector<256x128xf32>
    %c0_65 = arith.constant 0 : index
    %c0_66 = arith.constant 0 : index
    %c0_67 = arith.constant 0 : index
    %116 = vector.load %arg9[%c0_65, %c0_66, %c0_67] : memref<1x256x128xf32, #tpu.memory_space<vmem>>, vector<1x256x128xf32>
    %117 = vector.shape_cast %116 : vector<1x256x128xf32> to vector<256x128xf32>
    %118 = vector.shape_cast %115 : vector<256x128xf32> to vector<1x256x128xf32>
    tpu.vector_store %arg9[%c0_65, %c0_66, %c0_67], %118 {strides = array<i32>} : memref<1x256x128xf32, #tpu.memory_space<vmem>>, vector<1x256x128xf32>,
    return
  }
  func.func @transform_0(%arg0: i32, %arg1: i32) -> (i32, i32, i32, i32) {
    %c0_i32 = arith.constant 0 : i32
    %c0_i32_0 = arith.constant 0 : i32
    %c0_i32_1 = arith.constant 0 : i32
    %c0_i32_2 = arith.constant 0 : i32
    return %arg0, %c0_i32, %c0_i32_0, %c0_i32_1 : i32, i32, i32, i32
  }
  func.func @transform_1(%arg0: i32, %arg1: i32) -> (i32, i32) {
    %c0_i32 = arith.constant 0 : i32
    %c0_i32_0 = arith.constant 0 : i32
    %c0_i32_1 = arith.constant 0 : i32
    return %c0_i32, %c0_i32_0 : i32, i32
  }
  func.func @transform_2(%arg0: i32, %arg1: i32) -> (i32, i32) {
    %c0_i32 = arith.constant 0 : i32
    %c0_i32_0 = arith.constant 0 : i32
    %c0_i32_1 = arith.constant 0 : i32
    return %c0_i32, %c0_i32_0 : i32, i32
  }
  func.func @transform_3(%arg0: i32, %arg1: i32) -> (i32, i32) {
    %c0_i32 = arith.constant 0 : i32
    %c0_i32_0 = arith.constant 0 : i32
    %c0_i32_1 = arith.constant 0 : i32
    return %c0_i32, %c0_i32_0 : i32, i32
  }
  func.func @transform_4(%arg0: i32, %arg1: i32) -> (i32, i32) {
    %c0_i32 = arith.constant 0 : i32
    %c0_i32_0 = arith.constant 0 : i32
    %c0_i32_1 = arith.constant 0 : i32
    return %c0_i32, %c0_i32_0 : i32, i32
  }
  func.func @transform_5(%arg0: i32, %arg1: i32) -> (i32, i32) {
    %c0_i32 = arith.constant 0 : i32
    %c0_i32_0 = arith.constant 0 : i32
    return %arg1, %c0_i32 : i32, i32
  }
  func.func @transform_6(%arg0: i32, %arg1: i32) -> (i32, i32) {
    %c0_i32 = arith.constant 0 : i32
    %c0_i32_0 = arith.constant 0 : i32
    return %arg1, %c0_i32 : i32, i32
  }
  func.func @transform_7(%arg0: i32, %arg1: i32) -> (i32, i32, i32) {
    %c0_i32 = arith.constant 0 : i32
    %c0_i32_0 = arith.constant 0 : i32
    return %arg0, %arg1, %c0_i32 : i32, i32, i32
  }
}

</mosaic_0001>

<llo_original>
// kernel: tpu_custom_call.1
$region0: #{tpu_custom_call.1}
  #allocation0 [shape = 'u32[]', space=smem, size = 0x4, offset = 0x4, fixed_abs, tag = 'smem constant byte address 0x4 - core index']
  #allocation1 [shape = 'u32[72,128]{1,0:T(1,128)}', space=vmem, size = 0x9000, scoped, tag = 'internal scratch']
  %s0 = inlined_call_operand.vmem [shape: f32[2,18,18,4], index: 0, kind: input, shape index: {}]
  %s1 = inlined_call_operand.vmem [shape: f32[36,4], index: 1, kind: input, shape index: {}]
  %s2 = inlined_call_operand.vmem [shape: f32[1,4], index: 2, kind: input, shape index: {}]
  %s3 = inlined_call_operand.vmem [shape: f32[4,126], index: 3, kind: input, shape index: {}]
  %s4 = inlined_call_operand.vmem [shape: f32[1,126], index: 4, kind: input, shape index: {}]
  %s5 = inlined_call_operand.vmem [shape: f32[256,36], index: 5, kind: input, shape index: {}]
  %s6 = inlined_call_operand.vmem [shape: f32[256,36], index: 6, kind: input, shape index: {}]
  %s7 = inlined_call_operand.hbm [shape: f32[2,256,128], index: 7, kind: output, shape index: {}]
  %s8 = sld [smem:[#allocation0]]
  $region61: #{tpu_custom_call.1} parent=0
    _
  %s10 = ssub.s32 1, %s8
  %s11 = scalar_select 0, %s10, %s8
  $region1: #{tpu_custom_call.1} parent=0
    #allocation2 [shape = 'u8[262144]{0}', space=vmem, size = 0x40000, scoped, tag = 'output window, operand 0']
    #allocation3 [shape = 's32[2]{0}', space=sflag, size = 0x8, scoped, tag = 'scoped memory for tpu_custom_call.1']
    %12 = vsyncpa [#allocation3], 0
    %s13 = scalar_lea.sflag [#allocation3], 1
    %14 = vsyncpa %s13, 0
    loop: start=0, step=1, limit=4
    $region2: #{tpu_custom_call.1} parent=1 // loop_pre_header
      _
    $region3: #{tpu_custom_call.1} parent=1 // loop_header
      %s16 = sphi 0, %s20
      %p17 = scmp.ge.s32.totalorder %s16, 4
      %s23 = sphi 0, %s35
      %s24 = sphi 0, %s31
      %s25 = sphi 0, %s23
      %s26 = sphi 0, %s24
      %s27 = sphi 0, %s25
      %s28 = sphi 0, %s26
      %s38 = sphi 0, %s40
      %s41 = sphi 0, %s38
      %s42 = sphi 0, %s41
      %s58 = sphi 0, %s42
      %s62 = sphi 0, %s62
      %s64 = sphi 0, %s62
      %s65 = sphi 0, %s64
      %s79 = sphi 0, %s65
      %s83 = sphi 0, %s83
      %s85 = sphi 0, %s83
      %s86 = sphi 0, %s85
      %s100 = sphi 0, %s86
      %s104 = sphi 0, %s104
      %s106 = sphi 0, %s104
      %s107 = sphi 0, %s106
      %s121 = sphi 0, %s107
      %s125 = sphi 0, %s125
      %s127 = sphi 0, %s125
      %s128 = sphi 0, %s127
      %s142 = sphi 0, %s128
      %s148 = sphi 0, %s150
      %s151 = sphi 0, %s148
      %s152 = sphi 0, %s151
      %s168 = sphi 0, %s152
      %s174 = sphi 0, %s176
      %s177 = sphi 0, %s174
      %s178 = sphi 0, %s177
      %s194 = sphi 0, %s178
      %s202 = sphi 0, %s204
      %s205 = sphi 0, %s202
      %s206 = sphi 0, %s205
      %s222 = sphi 0, %s206
    $region4: #{tpu_custom_call.1} parent=1 // loop_header_branch
      %19 = sbr.rel (%p17) target = $region8
    $region5: #{tpu_custom_call.1} parent=1 // loop_body
      %s21 = ssub.s32 %s16, 1
      %s22 = ssub.s32 %s16, 2
      %s29 = sadd.s32 1, %s24
      %p30 = scmp.ge.s32.totalorder %s29, 1
      %s31 = scalar_select %p30, 0, %s29
      %s32 = sadd.s32 1, %s23
      %s33 = scalar_select %p30, %s32, %s23
      %p34 = scmp.ge.s32.totalorder %s33, 2
      %s35 = scalar_select %p34, 0, %s33
      %s36 = ssub.s32 %s23, %s35
      %p37 = scmp.eq.s32.totalorder %s36, 0
      %s39 = sadd.s32 %s38, 1
      %s40 = scalar_select %p37, %s38, %s39
      %p43 = pneg %p37
      %p44 = scmp.eq.s32.totalorder %s16, 1
      %p45 = por %p43, %p44
      %p46 = scmp.ne.s32.totalorder %s38, %s41
      %p47 = scmp.eq.s32.totalorder %s16, 0
      %p48 = por %p46, %p47
      %p49 = scmp.ne.s32.totalorder %s38, %s41
      %p50 = scmp.eq.s32.totalorder %s21, 1
      %p51 = por %p49, %p50
      %p52 = scmp.ne.s32.totalorder %s41, %s42
      %p53 = scmp.eq.s32.totalorder %s21, 0
      %p54 = por %p52, %p53
      %p55 = scmp.ne.s32.totalorder %s41, %s42
      %p56 = scmp.eq.s32.totalorder %s22, 1
      %p57 = por %p55, %p56
      %p59 = scmp.ne.s32.totalorder %s42, %s58
      %p60 = scmp.eq.s32.totalorder %s22, 0
      %p61 = por %p59, %p60
      %s63 = sadd.s32 %s62, 1
      %p66 = scmp.eq.s32.totalorder %s16, 1
      %p67 = scmp.ne.s32.totalorder %s62, %s64
      %p68 = scmp.eq.s32.totalorder %s16, 0
      %p69 = por %p67, %p68
      %p70 = scmp.ne.s32.totalorder %s62, %s64
      %p71 = scmp.eq.s32.totalorder %s21, 1
      %p72 = por %p70, %p71
      %p73 = scmp.ne.s32.totalorder %s64, %s65
      %p74 = scmp.eq.s32.totalorder %s21, 0
      %p75 = por %p73, %p74
      %p76 = scmp.ne.s32.totalorder %s64, %s65
      %p77 = scmp.eq.s32.totalorder %s22, 1
      %p78 = por %p76, %p77
      %p80 = scmp.ne.s32.totalorder %s65, %s79
      %p81 = scmp.eq.s32.totalorder %s22, 0
      %p82 = por %p80, %p81
      %s84 = sadd.s32 %s83, 1
      %p87 = scmp.eq.s32.totalorder %s16, 1
      %p88 = scmp.ne.s32.totalorder %s83, %s85
      %p89 = scmp.eq.s32.totalorder %s16, 0
      %p90 = por %p88, %p89
      %p91 = scmp.ne.s32.totalorder %s83, %s85
      %p92 = scmp.eq.s32.totalorder %s21, 1
      %p93 = por %p91, %p92
      %p94 = scmp.ne.s32.totalorder %s85, %s86
      %p95 = scmp.eq.s32.totalorder %s21, 0
      %p96 = por %p94, %p95
      %p97 = scmp.ne.s32.totalorder %s85, %s86
      %p98 = scmp.eq.s32.totalorder %s22, 1
      %p99 = por %p97, %p98
      %p101 = scmp.ne.s32.totalorder %s86, %s100
      %p102 = scmp.eq.s32.totalorder %s22, 0
      %p103 = por %p101, %p102
      %s105 = sadd.s32 %s104, 1
      %p108 = scmp.eq.s32.totalorder %s16, 1
      %p109 = scmp.ne.s32.totalorder %s104, %s106
      %p110 = scmp.eq.s32.totalorder %s16, 0
      %p111 = por %p109, %p110
      %p112 = scmp.ne.s32.totalorder %s104, %s106
      %p113 = scmp.eq.s32.totalorder %s21, 1
      %p114 = por %p112, %p113
      %p115 = scmp.ne.s32.totalorder %s106, %s107
      %p116 = scmp.eq.s32.totalorder %s21, 0
      %p117 = por %p115, %p116
      %p118 = scmp.ne.s32.totalorder %s106, %s107
      %p119 = scmp.eq.s32.totalorder %s22, 1
      %p120 = por %p118, %p119
      %p122 = scmp.ne.s32.totalorder %s107, %s121
      %p123 = scmp.eq.s32.totalorder %s22, 0
      %p124 = por %p122, %p123
      %s126 = sadd.s32 %s125, 1
      %p129 = scmp.eq.s32.totalorder %s16, 1
      %p130 = scmp.ne.s32.totalorder %s125, %s127
      %p131 = scmp.eq.s32.totalorder %s16, 0
      %p132 = por %p130, %p131
      %p133 = scmp.ne.s32.totalorder %s125, %s127
      %p134 = scmp.eq.s32.totalorder %s21, 1
      %p135 = por %p133, %p134
      %p136 = scmp.ne.s32.totalorder %s127, %s128
      %p137 = scmp.eq.s32.totalorder %s21, 0
      %p138 = por %p136, %p137
      %p139 = scmp.ne.s32.totalorder %s127, %s128
      %p140 = scmp.eq.s32.totalorder %s22, 1
      %p141 = por %p139, %p140
      %p143 = scmp.ne.s32.totalorder %s128, %s142
      %p144 = scmp.eq.s32.totalorder %s22, 0
      %p145 = por %p143, %p144
      %s146 = ssub.s32 %s24, %s31
      %p147 = scmp.eq.s32.totalorder %s146, 0
      %s149 = sadd.s32 %s148, 1
      %s150 = scalar_select %p147, %s148, %s149
      %p153 = pneg %p147
      %p154 = scmp.eq.s32.totalorder %s16, 1
      %p155 = por %p153, %p154
      %p156 = scmp.ne.s32.totalorder %s148, %s151
      %p157 = scmp.eq.s32.totalorder %s16, 0
      %p158 = por %p156, %p157
      %p159 = scmp.ne.s32.totalorder %s148, %s151
      %p160 = scmp.eq.s32.totalorder %s21, 1
      %p161 = por %p159, %p160
      %p162 = scmp.ne.s32.totalorder %s151, %s152
      %p163 = scmp.eq.s32.totalorder %s21, 0
      %p164 = por %p162, %p163
      %p165 = scmp.ne.s32.totalorder %s151, %s152
      %p166 = scmp.eq.s32.totalorder %s22, 1
      %p167 = por %p165, %p166
      %p169 = scmp.ne.s32.totalorder %s152, %s168
      %p170 = scmp.eq.s32.totalorder %s22, 0
      %p171 = por %p169, %p170
      %s172 = ssub.s32 %s24, %s31
      %p173 = scmp.eq.s32.totalorder %s172, 0
      %s175 = sadd.s32 %s174, 1
      %s176 = scalar_select %p173, %s174, %s175
      %p179 = pneg %p173
      %p180 = scmp.eq.s32.totalorder %s16, 1
      %p181 = por %p179, %p180
      %p182 = scmp.ne.s32.totalorder %s174, %s177
      %p183 = scmp.eq.s32.totalorder %s16, 0
      %p184 = por %p182, %p183
      %p185 = scmp.ne.s32.totalorder %s174, %s177
      %p186 = scmp.eq.s32.totalorder %s21, 1
      %p187 = por %p185, %p186
      %p188 = scmp.ne.s32.totalorder %s177, %s178
      %p189 = scmp.eq.s32.totalorder %s21, 0
      %p190 = por %p188, %p189
      %p191 = scmp.ne.s32.totalorder %s177, %s178
      %p192 = scmp.eq.s32.totalorder %s22, 1
      %p193 = por %p191, %p192
      %p195 = scmp.ne.s32.totalorder %s178, %s194
      %p196 = scmp.eq.s32.totalorder %s22, 0
      %p197 = por %p195, %p196
      %s198 = ssub.s32 %s23, %s35
      %s199 = ssub.s32 %s24, %s31
      %s200 = sor.u32 %s198, %s199
      %p201 = scmp.eq.s32.totalorder %s200, 0
      %s203 = sadd.s32 %s202, 1
      %s204 = scalar_select %p201, %s202, %s203
      %p207 = pneg %p201
      %p208 = scmp.eq.s32.totalorder %s16, 1
      %p209 = por %p207, %p208
      %p210 = scmp.ne.s32.totalorder %s202, %s205
      %p211 = scmp.eq.s32.totalorder %s16, 0
      %p212 = por %p210, %p211
      %p213 = scmp.ne.s32.totalorder %s202, %s205
      %p214 = scmp.eq.s32.totalorder %s21, 1
      %p215 = por %p213, %p214
      %p216 = scmp.ne.s32.totalorder %s205, %s206
      %p217 = scmp.eq.s32.totalorder %s21, 0
      %p218 = por %p216, %p217
      %p219 = scmp.ne.s32.totalorder %s205, %s206
      %p220 = scmp.eq.s32.totalorder %s22, 1
      %p221 = por %p219, %p220
      %p223 = scmp.ne.s32.totalorder %s206, %s222
      %p224 = scmp.eq.s32.totalorder %s22, 0
      %p225 = por %p223, %p224
      %p226 = scmp.le.s32.totalorder 1, %s16
      %p227 = scmp.lt.s32.totalorder %s16, 3
      %p228 = pnand %p226, %p227
      %p229 = pneg %p228
      // Predicated region
      $region9: #{tpu_custom_call.1} parent=5 // pred_check
        _
      $region10: #{tpu_custom_call.1} parent=5 // pred_check_branch
        %231 = sbr.rel (%p228) target = $region12
      $region11: #{tpu_custom_call.1} parent=5 // pred_region
        %s232 = ssub.s32 %s16, 1
        // Predicated region
        $region13: #{tpu_custom_call.1} parent=11 // pred_check
          %p233 = pneg %p75
        $region14: #{tpu_custom_call.1} parent=11 // pred_check_branch
          %235 = sbr.rel (%p233) target = $region16
        $region15: #{tpu_custom_call.1} parent=11 // pred_region
          _
        $region16: #{tpu_custom_call.1} parent=11 // pred_fallthru
          _
        // Predicated region
        $region17: #{tpu_custom_call.1} parent=11 // pred_check
          %p236 = pneg %p96
        $region18: #{tpu_custom_call.1} parent=11 // pred_check_branch
          %238 = sbr.rel (%p236) target = $region20
        $region19: #{tpu_custom_call.1} parent=11 // pred_region
          _
        $region20: #{tpu_custom_call.1} parent=11 // pred_fallthru
          _
        // Predicated region
        $region21: #{tpu_custom_call.1} parent=11 // pred_check
          %p239 = pneg %p117
        $region22: #{tpu_custom_call.1} parent=11 // pred_check_branch
          %241 = sbr.rel (%p239) target = $region24
        $region23: #{tpu_custom_call.1} parent=11 // pred_region
          _
        $region24: #{tpu_custom_call.1} parent=11 // pred_fallthru
          _
        // Predicated region
        $region25: #{tpu_custom_call.1} parent=11 // pred_check
          %p242 = pneg %p138
        $region26: #{tpu_custom_call.1} parent=11 // pred_check_branch
          %244 = sbr.rel (%p242) target = $region28
        $region27: #{tpu_custom_call.1} parent=11 // pred_region
          _
        $region28: #{tpu_custom_call.1} parent=11 // pred_fallthru
          _
        // Predicated region
        $region29: #{tpu_custom_call.1} parent=11 // pred_check
          %p245 = pneg %p164
        $region30: #{tpu_custom_call.1} parent=11 // pred_check_branch
          %247 = sbr.rel (%p245) target = $region32
        $region31: #{tpu_custom_call.1} parent=11 // pred_region
          %s248 = smul.u32 32, %s26
          %p249 = scmp.lt.s32.totalorder %s248, 31
          %s250 = scalar_select %p249, %s248, 31
          %s251 = smul.addr %s250, 8
          %s252 = scalar_lea.vmem %s5, %s251
          %s253 = smul.u32 32, %s26
        $region32: #{tpu_custom_call.1} parent=11 // pred_fallthru
          _
        // Predicated region
        $region33: #{tpu_custom_call.1} parent=11 // pred_check
          %p254 = pneg %p190
        $region34: #{tpu_custom_call.1} parent=11 // pred_check_branch
          %256 = sbr.rel (%p254) target = $region36
        $region35: #{tpu_custom_call.1} parent=11 // pred_region
          %s257 = smul.u32 32, %s26
          %p258 = scmp.lt.s32.totalorder %s257, 31
          %s259 = scalar_select %p258, %s257, 31
          %s260 = smul.addr %s259, 8
          %s261 = scalar_lea.vmem %s6, %s260
          %s262 = smul.u32 32, %s26
        $region36: #{tpu_custom_call.1} parent=11 // pred_fallthru
          _
      $region12: #{tpu_custom_call.1} parent=5 // pred_fallthru
        _
      %p263 = scmp.lt.s32.totalorder %s16, 2
      // Predicated region
      $region37: #{tpu_custom_call.1} parent=5 // pred_check
        %p264 = pneg %p263
      $region38: #{tpu_custom_call.1} parent=5 // pred_check_branch
        %266 = sbr.rel (%p264) target = $region40
      $region39: #{tpu_custom_call.1} parent=5 // pred_region
        // Predicated region
        $region41: #{tpu_custom_call.1} parent=39 // pred_check
          %p267 = pneg %p48
        $region42: #{tpu_custom_call.1} parent=39 // pred_check_branch
          %269 = sbr.rel (%p267) target = $region44
        $region43: #{tpu_custom_call.1} parent=39 // pred_region
          %p270 = scmp.lt.s32.totalorder %s23, 1
          %s271 = scalar_select %p270, %s23, 1
          %s272 = smul.addr %s271, 54
          %s273 = smul.addr %s272, 8
          %s274 = scalar_lea.vmem %s0, %s273
        $region44: #{tpu_custom_call.1} parent=39 // pred_fallthru
          _
      $region40: #{tpu_custom_call.1} parent=5 // pred_fallthru
        _
      %p275 = scmp.le.s32.totalorder 1, %s16
      %p276 = scmp.lt.s32.totalorder %s16, 3
      %p277 = pnand %p275, %p276
      %p278 = pneg %p277
      // Predicated region
      $region45: #{tpu_custom_call.1} parent=5 // pred_check
        _
      $region46: #{tpu_custom_call.1} parent=5 // pred_check_branch
        %280 = sbr.rel (%p277) target = $region48
      $region47: #{tpu_custom_call.1} parent=5 // pred_region
        %s281 = ssub.s32 %s16, 1
        %p282 = scmp.lt.s32.totalorder %s25, 1
        %s283 = scalar_select %p282, %s25, 1
        %s284 = smul.addr %s283, 54
        %s285 = smul.addr %s284, 8
        %s286 = scalar_lea.vmem %s0, %s285
        %p287 = pneg %p54
        %p288 = pneg %p51
        %p289 = pneg %p75
        %p290 = pneg %p72
        %p291 = pneg %p96
        %p292 = pneg %p93
        %p293 = pneg %p117
        %p294 = pneg %p114
        %p295 = pneg %p138
        %p296 = pneg %p135
        %s297 = smul.u32 32, %s26
        %p298 = scmp.lt.s32.totalorder %s297, 31
        %s299 = scalar_select %p298, %s297, 31
        %s300 = smul.addr %s299, 8
        %s301 = scalar_lea.vmem %s5, %s300
        %p302 = pneg %p164
        %p303 = pneg %p161
        %s304 = smul.u32 32, %s26
        %p305 = scmp.lt.s32.totalorder %s304, 31
        %s306 = scalar_select %p305, %s304, 31
        %s307 = smul.addr %s306, 8
        %s308 = scalar_lea.vmem %s6, %s307
        %p309 = pneg %p190
        %p310 = pneg %p187
        %p311 = pneg %p218
        %p312 = pneg %p215
        %s313 = sand.u32 %s205, 1
        %s314 = scalar_lea.sflag [#allocation3], %s313
        %s315 = sand.u32 %s205, 1
        %s316 = smul.addr %s315, 256
        %s317 = scalar_lea.vmem [#allocation2], %s316
        %p318 = scmp.lt.s32.totalorder %s25, 1
        %s319 = scalar_select %p318, %s25, 1
        %s320 = smul.addr %s319, 54
        %s321 = smul.addr %s320, 8
        %s322 = scalar_lea.vmem %s0, %s321
        %s323 = smul.u32 32, %s26
        %p324 = scmp.lt.s32.totalorder %s323, 31
        %s325 = scalar_select %p324, %s323, 31
        %s326 = smul.addr %s325, 8
        %s327 = scalar_lea.vmem %s5, %s326
        %s328 = smul.u32 32, %s26
        %s329 = smul.u32 32, %s26
        %p330 = scmp.lt.s32.totalorder %s329, 31
        %s331 = scalar_select %p330, %s329, 31
        %s332 = smul.addr %s331, 8
        %s333 = scalar_lea.vmem %s6, %s332
        %s334 = smul.u32 32, %s26
        %s335 = smul.u32 32, %s26
        %s336 = smul.u32 %s26, 16
        %s337 = smul.u32 %s336, 24
        %s338 = scalar_lea.vmem %s322, %s337
        %v339 = vld [vmem:[%s338] sm:$0xff]
        %v340 = vld [vmem:[%s338 + $0x8] sm:$0xff]
        %v341 = vld [vmem:[%s338 + $0x18] sm:$0xff]
        %v342 = vld [vmem:[%s338 + $0x20] sm:$0xff]
        %v343 = vld [vmem:[%s338 + $0x30] sm:$0xff]
        %v344 = vld [vmem:[%s338 + $0x38] sm:$0xff]
        %v345 = vld [vmem:[%s338 + $0x48] sm:$0xff]
        %v346 = vld [vmem:[%s338 + $0x50] sm:$0xff]
        %v347 = vld [vmem:[%s338 + $0x60] sm:$0xff]
        %v348 = vld [vmem:[%s338 + $0x68] sm:$0xff]
        %v349 = vld [vmem:[%s338 + $0x78] sm:$0xff]
        %v350 = vld [vmem:[%s338 + $0x80] sm:$0xff]
        %v351 = vld [vmem:[%s338 + $0x90] sm:$0xff]
        %v352 = vld [vmem:[%s338 + $0x98] sm:$0xff]
        %v353 = vld [vmem:[%s338 + $0xa8] sm:$0xff]
        %v354 = vld [vmem:[%s338 + $0xb0] sm:$0xff]
        %v355 = vld [vmem:[%s338 + $0xc0] sm:$0xff]
        %v356 = vld [vmem:[%s338 + $0xc8] sm:$0xff]
        %v357 = vld [vmem:[%s338 + $0xd8] sm:$0xff]
        %v358 = vld [vmem:[%s338 + $0xe0] sm:$0xff]
        %v359 = vld [vmem:[%s338 + $0xf0] sm:$0xff]
        %v360 = vld [vmem:[%s338 + $0xf8] sm:$0xff]
        %v361 = vld [vmem:[%s338 + $0x108] sm:$0xff]
        %v362 = vld [vmem:[%s338 + $0x110] sm:$0xff]
        %v363 = vld [vmem:[%s338 + $0x120] sm:$0xff]
        %v364 = vld [vmem:[%s338 + $0x128] sm:$0xff]
        %v365 = vld [vmem:[%s338 + $0x138] sm:$0xff]
        %v366 = vld [vmem:[%s338 + $0x140] sm:$0xff]
        %v367 = vld [vmem:[%s338 + $0x150] sm:$0xff]
        %v368 = vld [vmem:[%s338 + $0x158] sm:$0xff]
        %v369 = vld [vmem:[%s338 + $0x168] sm:$0xff]
        %v370 = vld [vmem:[%s338 + $0x170] sm:$0xff]
        %v371 = vld [vmem:[%s338 + $0x1] sm:$0xff]
        %v372 = vld [vmem:[%s338 + $0x9] sm:$0xff]
        %v373 = vld [vmem:[%s338 + $0x19] sm:$0xff]
        %v374 = vld [vmem:[%s338 + $0x21] sm:$0xff]
        %v375 = vld [vmem:[%s338 + $0x31] sm:$0xff]
        %v376 = vld [vmem:[%s338 + $0x39] sm:$0xff]
        %v377 = vld [vmem:[%s338 + $0x49] sm:$0xff]
        %v378 = vld [vmem:[%s338 + $0x51] sm:$0xff]
        %v379 = vld [vmem:[%s338 + $0x61] sm:$0xff]
        %v380 = vld [vmem:[%s338 + $0x69] sm:$0xff]
        %v381 = vld [vmem:[%s338 + $0x79] sm:$0xff]
        %v382 = vld [vmem:[%s338 + $0x81] sm:$0xff]
        %v383 = vld [vmem:[%s338 + $0x91] sm:$0xff]
        %v384 = vld [vmem:[%s338 + $0x99] sm:$0xff]
        %v385 = vld [vmem:[%s338 + $0xa9] sm:$0xff]
        %v386 = vld [vmem:[%s338 + $0xb1] sm:$0xff]
        %v387 = vld [vmem:[%s338 + $0xc1] sm:$0xff]
        %v388 = vld [vmem:[%s338 + $0xc9] sm:$0xff]
        %v389 = vld [vmem:[%s338 + $0xd9] sm:$0xff]
        %v390 = vld [vmem:[%s338 + $0xe1] sm:$0xff]
        %v391 = vld [vmem:[%s338 + $0xf1] sm:$0xff]
        %v392 = vld [vmem:[%s338 + $0xf9] sm:$0xff]
        %v393 = vld [vmem:[%s338 + $0x109] sm:$0xff]
        %v394 = vld [vmem:[%s338 + $0x111] sm:$0xff]
        %v395 = vld [vmem:[%s338 + $0x121] sm:$0xff]
        %v396 = vld [vmem:[%s338 + $0x129] sm:$0xff]
        %v397 = vld [vmem:[%s338 + $0x139] sm:$0xff]
        %v398 = vld [vmem:[%s338 + $0x141] sm:$0xff]
        %v399 = vld [vmem:[%s338 + $0x151] sm:$0xff]
        %v400 = vld [vmem:[%s338 + $0x159] sm:$0xff]
        %v401 = vld [vmem:[%s338 + $0x169] sm:$0xff]
        %v402 = vld [vmem:[%s338 + $0x171] sm:$0xff]
        %v403 = vld [vmem:[%s338 + $0x2] sm:$0xff]
        %v404 = vld [vmem:[%s338 + $0xa] sm:$0xff]
        %v405 = vld [vmem:[%s338 + $0x1a] sm:$0xff]
        %v406 = vld [vmem:[%s338 + $0x22] sm:$0xff]
        %v407 = vld [vmem:[%s338 + $0x32] sm:$0xff]
        %v408 = vld [vmem:[%s338 + $0x3a] sm:$0xff]
        %v409 = vld [vmem:[%s338 + $0x4a] sm:$0xff]
        %v410 = vld [vmem:[%s338 + $0x52] sm:$0xff]
        %v411 = vld [vmem:[%s338 + $0x62] sm:$0xff]
        %v412 = vld [vmem:[%s338 + $0x6a] sm:$0xff]
        %v413 = vld [vmem:[%s338 + $0x7a] sm:$0xff]
        %v414 = vld [vmem:[%s338 + $0x82] sm:$0xff]
        %v415 = vld [vmem:[%s338 + $0x92] sm:$0xff]
        %v416 = vld [vmem:[%s338 + $0x9a] sm:$0xff]
        %v417 = vld [vmem:[%s338 + $0xaa] sm:$0xff]
        %v418 = vld [vmem:[%s338 + $0xb2] sm:$0xff]
        %v419 = vld [vmem:[%s338 + $0xc2] sm:$0xff]
        %v420 = vld [vmem:[%s338 + $0xca] sm:$0xff]
        %v421 = vld [vmem:[%s338 + $0xda] sm:$0xff]
        %v422 = vld [vmem:[%s338 + $0xe2] sm:$0xff]
        %v423 = vld [vmem:[%s338 + $0xf2] sm:$0xff]
        %v424 = vld [vmem:[%s338 + $0xfa] sm:$0xff]
        %v425 = vld [vmem:[%s338 + $0x10a] sm:$0xff]
        %v426 = vld [vmem:[%s338 + $0x112] sm:$0xff]
        %v427 = vld [vmem:[%s338 + $0x122] sm:$0xff]
        %v428 = vld [vmem:[%s338 + $0x12a] sm:$0xff]
        %v429 = vld [vmem:[%s338 + $0x13a] sm:$0xff]
        %v430 = vld [vmem:[%s338 + $0x142] sm:$0xff]
        %v431 = vld [vmem:[%s338 + $0x152] sm:$0xff]
        %v432 = vld [vmem:[%s338 + $0x15a] sm:$0xff]
        %v433 = vld [vmem:[%s338 + $0x16a] sm:$0xff]
        %v434 = vld [vmem:[%s338 + $0x172] sm:$0xff]
        %s435 = sadd.s32 %s336, 1
        %s436 = smul.u32 %s435, 24
        %s437 = scalar_lea.vmem %s322, %s436
        %v438 = vld [vmem:[%s437] sm:$0xff]
        %v439 = vld [vmem:[%s437 + $0x8] sm:$0xff]
        %v440 = vld [vmem:[%s437 + $0x18] sm:$0xff]
        %v441 = vld [vmem:[%s437 + $0x20] sm:$0xff]
        %v442 = vld [vmem:[%s437 + $0x30] sm:$0xff]
        %v443 = vld [vmem:[%s437 + $0x38] sm:$0xff]
        %v444 = vld [vmem:[%s437 + $0x48] sm:$0xff]
        %v445 = vld [vmem:[%s437 + $0x50] sm:$0xff]
        %v446 = vld [vmem:[%s437 + $0x60] sm:$0xff]
        %v447 = vld [vmem:[%s437 + $0x68] sm:$0xff]
        %v448 = vld [vmem:[%s437 + $0x78] sm:$0xff]
        %v449 = vld [vmem:[%s437 + $0x80] sm:$0xff]
        %v450 = vld [vmem:[%s437 + $0x90] sm:$0xff]
        %v451 = vld [vmem:[%s437 + $0x98] sm:$0xff]
        %v452 = vld [vmem:[%s437 + $0xa8] sm:$0xff]
        %v453 = vld [vmem:[%s437 + $0xb0] sm:$0xff]
        %v454 = vld [vmem:[%s437 + $0xc0] sm:$0xff]
        %v455 = vld [vmem:[%s437 + $0xc8] sm:$0xff]
        %v456 = vld [vmem:[%s437 + $0xd8] sm:$0xff]
        %v457 = vld [vmem:[%s437 + $0xe0] sm:$0xff]
        %v458 = vld [vmem:[%s437 + $0xf0] sm:$0xff]
        %v459 = vld [vmem:[%s437 + $0xf8] sm:$0xff]
        %v460 = vld [vmem:[%s437 + $0x108] sm:$0xff]
        %v461 = vld [vmem:[%s437 + $0x110] sm:$0xff]
        %v462 = vld [vmem:[%s437 + $0x120] sm:$0xff]
        %v463 = vld [vmem:[%s437 + $0x128] sm:$0xff]
        %v464 = vld [vmem:[%s437 + $0x138] sm:$0xff]
        %v465 = vld [vmem:[%s437 + $0x140] sm:$0xff]
        %v466 = vld [vmem:[%s437 + $0x150] sm:$0xff]
        %v467 = vld [vmem:[%s437 + $0x158] sm:$0xff]
        %v468 = vld [vmem:[%s437 + $0x168] sm:$0xff]
        %v469 = vld [vmem:[%s437 + $0x170] sm:$0xff]
        %v470 = vld [vmem:[%s437 + $0x1] sm:$0xff]
        %v471 = vld [vmem:[%s437 + $0x9] sm:$0xff]
        %v472 = vld [vmem:[%s437 + $0x19] sm:$0xff]
        %v473 = vld [vmem:[%s437 + $0x21] sm:$0xff]
        %v474 = vld [vmem:[%s437 + $0x31] sm:$0xff]
        %v475 = vld [vmem:[%s437 + $0x39] sm:$0xff]
        %v476 = vld [vmem:[%s437 + $0x49] sm:$0xff]
        %v477 = vld [vmem:[%s437 + $0x51] sm:$0xff]
        %v478 = vld [vmem:[%s437 + $0x61] sm:$0xff]
        %v479 = vld [vmem:[%s437 + $0x69] sm:$0xff]
        %v480 = vld [vmem:[%s437 + $0x79] sm:$0xff]
        %v481 = vld [vmem:[%s437 + $0x81] sm:$0xff]
        %v482 = vld [vmem:[%s437 + $0x91] sm:$0xff]
        %v483 = vld [vmem:[%s437 + $0x99] sm:$0xff]
        %v484 = vld [vmem:[%s437 + $0xa9] sm:$0xff]
        %v485 = vld [vmem:[%s437 + $0xb1] sm:$0xff]
        %v486 = vld [vmem:[%s437 + $0xc1] sm:$0xff]
        %v487 = vld [vmem:[%s437 + $0xc9] sm:$0xff]
        %v488 = vld [vmem:[%s437 + $0xd9] sm:$0xff]
        %v489 = vld [vmem:[%s437 + $0xe1] sm:$0xff]
        %v490 = vld [vmem:[%s437 + $0xf1] sm:$0xff]
        %v491 = vld [vmem:[%s437 + $0xf9] sm:$0xff]
        %v492 = vld [vmem:[%s437 + $0x109] sm:$0xff]
        %v493 = vld [vmem:[%s437 + $0x111] sm:$0xff]
        %v494 = vld [vmem:[%s437 + $0x121] sm:$0xff]
        %v495 = vld [vmem:[%s437 + $0x129] sm:$0xff]
        %v496 = vld [vmem:[%s437 + $0x139] sm:$0xff]
        %v497 = vld [vmem:[%s437 + $0x141] sm:$0xff]
        %v498 = vld [vmem:[%s437 + $0x151] sm:$0xff]
        %v499 = vld [vmem:[%s437 + $0x159] sm:$0xff]
        %v500 = vld [vmem:[%s437 + $0x169] sm:$0xff]
        %v501 = vld [vmem:[%s437 + $0x171] sm:$0xff]
        %v502 = vld [vmem:[%s437 + $0x2] sm:$0xff]
        %v503 = vld [vmem:[%s437 + $0xa] sm:$0xff]
        %v504 = vld [vmem:[%s437 + $0x1a] sm:$0xff]
        %v505 = vld [vmem:[%s437 + $0x22] sm:$0xff]
        %v506 = vld [vmem:[%s437 + $0x32] sm:$0xff]
        %v507 = vld [vmem:[%s437 + $0x3a] sm:$0xff]
        %v508 = vld [vmem:[%s437 + $0x4a] sm:$0xff]
        %v509 = vld [vmem:[%s437 + $0x52] sm:$0xff]
        %v510 = vld [vmem:[%s437 + $0x62] sm:$0xff]
        %v511 = vld [vmem:[%s437 + $0x6a] sm:$0xff]
        %v512 = vld [vmem:[%s437 + $0x7a] sm:$0xff]
        %v513 = vld [vmem:[%s437 + $0x82] sm:$0xff]
        %v514 = vld [vmem:[%s437 + $0x92] sm:$0xff]
        %v515 = vld [vmem:[%s437 + $0x9a] sm:$0xff]
        %v516 = vld [vmem:[%s437 + $0xaa] sm:$0xff]
        %v517 = vld [vmem:[%s437 + $0xb2] sm:$0xff]
        %v518 = vld [vmem:[%s437 + $0xc2] sm:$0xff]
        %v519 = vld [vmem:[%s437 + $0xca] sm:$0xff]
        %v520 = vld [vmem:[%s437 + $0xda] sm:$0xff]
        %v521 = vld [vmem:[%s437 + $0xe2] sm:$0xff]
        %v522 = vld [vmem:[%s437 + $0xf2] sm:$0xff]
        %v523 = vld [vmem:[%s437 + $0xfa] sm:$0xff]
        %v524 = vld [vmem:[%s437 + $0x10a] sm:$0xff]
        %v525 = vld [vmem:[%s437 + $0x112] sm:$0xff]
        %v526 = vld [vmem:[%s437 + $0x122] sm:$0xff]
        %v527 = vld [vmem:[%s437 + $0x12a] sm:$0xff]
        %v528 = vld [vmem:[%s437 + $0x13a] sm:$0xff]
        %v529 = vld [vmem:[%s437 + $0x142] sm:$0xff]
        %v530 = vld [vmem:[%s437 + $0x152] sm:$0xff]
        %v531 = vld [vmem:[%s437 + $0x15a] sm:$0xff]
        %v532 = vld [vmem:[%s437 + $0x16a] sm:$0xff]
        %v533 = vld [vmem:[%s437 + $0x172] sm:$0xff]
        %s534 = sadd.s32 %s336, 2
        %s535 = smul.u32 %s534, 24
        %s536 = scalar_lea.vmem %s322, %s535
        %v537 = vld [vmem:[%s536] sm:$0xff]
        %v538 = vld [vmem:[%s536 + $0x8] sm:$0xff]
        %v539 = vld [vmem:[%s536 + $0x18] sm:$0xff]
        %v540 = vld [vmem:[%s536 + $0x20] sm:$0xff]
        %v541 = vld [vmem:[%s536 + $0x30] sm:$0xff]
        %v542 = vld [vmem:[%s536 + $0x38] sm:$0xff]
        %v543 = vld [vmem:[%s536 + $0x48] sm:$0xff]
        %v544 = vld [vmem:[%s536 + $0x50] sm:$0xff]
        %v545 = vld [vmem:[%s536 + $0x60] sm:$0xff]
        %v546 = vld [vmem:[%s536 + $0x68] sm:$0xff]
        %v547 = vld [vmem:[%s536 + $0x78] sm:$0xff]
        %v548 = vld [vmem:[%s536 + $0x80] sm:$0xff]
        %v549 = vld [vmem:[%s536 + $0x90] sm:$0xff]
        %v550 = vld [vmem:[%s536 + $0x98] sm:$0xff]
        %v551 = vld [vmem:[%s536 + $0xa8] sm:$0xff]
        %v552 = vld [vmem:[%s536 + $0xb0] sm:$0xff]
        %v553 = vld [vmem:[%s536 + $0xc0] sm:$0xff]
        %v554 = vld [vmem:[%s536 + $0xc8] sm:$0xff]
        %v555 = vld [vmem:[%s536 + $0xd8] sm:$0xff]
        %v556 = vld [vmem:[%s536 + $0xe0] sm:$0xff]
        %v557 = vld [vmem:[%s536 + $0xf0] sm:$0xff]
        %v558 = vld [vmem:[%s536 + $0xf8] sm:$0xff]
        %v559 = vld [vmem:[%s536 + $0x108] sm:$0xff]
        %v560 = vld [vmem:[%s536 + $0x110] sm:$0xff]
        %v561 = vld [vmem:[%s536 + $0x120] sm:$0xff]
        %v562 = vld [vmem:[%s536 + $0x128] sm:$0xff]
        %v563 = vld [vmem:[%s536 + $0x138] sm:$0xff]
        %v564 = vld [vmem:[%s536 + $0x140] sm:$0xff]
        %v565 = vld [vmem:[%s536 + $0x150] sm:$0xff]
        %v566 = vld [vmem:[%s536 + $0x158] sm:$0xff]
        %v567 = vld [vmem:[%s536 + $0x168] sm:$0xff]
        %v568 = vld [vmem:[%s536 + $0x170] sm:$0xff]
        %v569 = vld [vmem:[%s536 + $0x1] sm:$0xff]
        %v570 = vld [vmem:[%s536 + $0x9] sm:$0xff]
        %v571 = vld [vmem:[%s536 + $0x19] sm:$0xff]
        %v572 = vld [vmem:[%s536 + $0x21] sm:$0xff]
        %v573 = vld [vmem:[%s536 + $0x31] sm:$0xff]
        %v574 = vld [vmem:[%s536 + $0x39] sm:$0xff]
        %v575 = vld [vmem:[%s536 + $0x49] sm:$0xff]
        %v576 = vld [vmem:[%s536 + $0x51] sm:$0xff]
        %v577 = vld [vmem:[%s536 + $0x61] sm:$0xff]
        %v578 = vld [vmem:[%s536 + $0x69] sm:$0xff]
        %v579 = vld [vmem:[%s536 + $0x79] sm:$0xff]
        %v580 = vld [vmem:[%s536 + $0x81] sm:$0xff]
        %v581 = vld [vmem:[%s536 + $0x91] sm:$0xff]
        %v582 = vld [vmem:[%s536 + $0x99] sm:$0xff]
        %v583 = vld [vmem:[%s536 + $0xa9] sm:$0xff]
        %v584 = vld [vmem:[%s536 + $0xb1] sm:$0xff]
        %v585 = vld [vmem:[%s536 + $0xc1] sm:$0xff]
        %v586 = vld [vmem:[%s536 + $0xc9] sm:$0xff]
        %v587 = vld [vmem:[%s536 + $0xd9] sm:$0xff]
        %v588 = vld [vmem:[%s536 + $0xe1] sm:$0xff]
        %v589 = vld [vmem:[%s536 + $0xf1] sm:$0xff]
        %v590 = vld [vmem:[%s536 + $0xf9] sm:$0xff]
        %v591 = vld [vmem:[%s536 + $0x109] sm:$0xff]
        %v592 = vld [vmem:[%s536 + $0x111] sm:$0xff]
        %v593 = vld [vmem:[%s536 + $0x121] sm:$0xff]
        %v594 = vld [vmem:[%s536 + $0x129] sm:$0xff]
        %v595 = vld [vmem:[%s536 + $0x139] sm:$0xff]
        %v596 = vld [vmem:[%s536 + $0x141] sm:$0xff]
        %v597 = vld [vmem:[%s536 + $0x151] sm:$0xff]
        %v598 = vld [vmem:[%s536 + $0x159] sm:$0xff]
        %v599 = vld [vmem:[%s536 + $0x169] sm:$0xff]
        %v600 = vld [vmem:[%s536 + $0x171] sm:$0xff]
        %v601 = vld [vmem:[%s536 + $0x2] sm:$0xff]
        %v602 = vld [vmem:[%s536 + $0xa] sm:$0xff]
        %v603 = vld [vmem:[%s536 + $0x1a] sm:$0xff]
        %v604 = vld [vmem:[%s536 + $0x22] sm:$0xff]
        %v605 = vld [vmem:[%s536 + $0x32] sm:$0xff]
        %v606 = vld [vmem:[%s536 + $0x3a] sm:$0xff]
        %v607 = vld [vmem:[%s536 + $0x4a] sm:$0xff]
        %v608 = vld [vmem:[%s536 + $0x52] sm:$0xff]
        %v609 = vld [vmem:[%s536 + $0x62] sm:$0xff]
        %v610 = vld [vmem:[%s536 + $0x6a] sm:$0xff]
        %v611 = vld [vmem:[%s536 + $0x7a] sm:$0xff]
        %v612 = vld [vmem:[%s536 + $0x82] sm:$0xff]
        %v613 = vld [vmem:[%s536 + $0x92] sm:$0xff]
        %v614 = vld [vmem:[%s536 + $0x9a] sm:$0xff]
        %v615 = vld [vmem:[%s536 + $0xaa] sm:$0xff]
        %v616 = vld [vmem:[%s536 + $0xb2] sm:$0xff]
        %v617 = vld [vmem:[%s536 + $0xc2] sm:$0xff]
        %v618 = vld [vmem:[%s536 + $0xca] sm:$0xff]
        %v619 = vld [vmem:[%s536 + $0xda] sm:$0xff]
        %v620 = vld [vmem:[%s536 + $0xe2] sm:$0xff]
        %v621 = vld [vmem:[%s536 + $0xf2] sm:$0xff]
        %v622 = vld [vmem:[%s536 + $0xfa] sm:$0xff]
        %v623 = vld [vmem:[%s536 + $0x10a] sm:$0xff]
        %v624 = vld [vmem:[%s536 + $0x112] sm:$0xff]
        %v625 = vld [vmem:[%s536 + $0x122] sm:$0xff]
        %v626 = vld [vmem:[%s536 + $0x12a] sm:$0xff]
        %v627 = vld [vmem:[%s536 + $0x13a] sm:$0xff]
        %v628 = vld [vmem:[%s536 + $0x142] sm:$0xff]
        %v629 = vld [vmem:[%s536 + $0x152] sm:$0xff]
        %v630 = vld [vmem:[%s536 + $0x15a] sm:$0xff]
        %v631 = vld [vmem:[%s536 + $0x16a] sm:$0xff]
        %v632 = vld [vmem:[%s536 + $0x172] sm:$0xff]
        %665 = vrot.lane.b32.xlu0 %v371, 4
        %v666 = vpop.permute.xlu0 %665
        %667 = vrot.lane.b32.xlu0 %v372, 4
        %v668 = vpop.permute.xlu0 %667
        %669 = vrot.lane.b32.xlu0 %v373, 4
        %v670 = vpop.permute.xlu0 %669
        %671 = vrot.lane.b32.xlu0 %v374, 4
        %v672 = vpop.permute.xlu0 %671
        %673 = vrot.lane.b32.xlu0 %v375, 4
        %v674 = vpop.permute.xlu0 %673
        %675 = vrot.lane.b32.xlu0 %v376, 4
        %v676 = vpop.permute.xlu0 %675
        %677 = vrot.lane.b32.xlu0 %v377, 4
        %v678 = vpop.permute.xlu0 %677
        %679 = vrot.lane.b32.xlu0 %v378, 4
        %v680 = vpop.permute.xlu0 %679
        %681 = vrot.lane.b32.xlu0 %v379, 4
        %v682 = vpop.permute.xlu0 %681
        %683 = vrot.lane.b32.xlu0 %v380, 4
        %v684 = vpop.permute.xlu0 %683
        %685 = vrot.lane.b32.xlu0 %v381, 4
        %v686 = vpop.permute.xlu0 %685
        %687 = vrot.lane.b32.xlu0 %v382, 4
        %v688 = vpop.permute.xlu0 %687
        %689 = vrot.lane.b32.xlu0 %v383, 4
        %v690 = vpop.permute.xlu0 %689
        %691 = vrot.lane.b32.xlu0 %v384, 4
        %v692 = vpop.permute.xlu0 %691
        %693 = vrot.lane.b32.xlu0 %v385, 4
        %v694 = vpop.permute.xlu0 %693
        %695 = vrot.lane.b32.xlu0 %v386, 4
        %v696 = vpop.permute.xlu0 %695
        %697 = vrot.lane.b32.xlu0 %v387, 4
        %v698 = vpop.permute.xlu0 %697
        %699 = vrot.lane.b32.xlu0 %v388, 4
        %v700 = vpop.permute.xlu0 %699
        %701 = vrot.lane.b32.xlu0 %v389, 4
        %v702 = vpop.permute.xlu0 %701
        %703 = vrot.lane.b32.xlu0 %v390, 4
        %v704 = vpop.permute.xlu0 %703
        %705 = vrot.lane.b32.xlu0 %v391, 4
        %v706 = vpop.permute.xlu0 %705
        %707 = vrot.lane.b32.xlu0 %v392, 4
        %v708 = vpop.permute.xlu0 %707
        %709 = vrot.lane.b32.xlu0 %v393, 4
        %v710 = vpop.permute.xlu0 %709
        %711 = vrot.lane.b32.xlu0 %v394, 4
        %v712 = vpop.permute.xlu0 %711
        %713 = vrot.lane.b32.xlu0 %v395, 4
        %v714 = vpop.permute.xlu0 %713
        %715 = vrot.lane.b32.xlu0 %v396, 4
        %v716 = vpop.permute.xlu0 %715
        %717 = vrot.lane.b32.xlu0 %v397, 4
        %v718 = vpop.permute.xlu0 %717
        %719 = vrot.lane.b32.xlu0 %v398, 4
        %v720 = vpop.permute.xlu0 %719
        %721 = vrot.lane.b32.xlu0 %v399, 4
        %v722 = vpop.permute.xlu0 %721
        %723 = vrot.lane.b32.xlu0 %v400, 4
        %v724 = vpop.permute.xlu0 %723
        %725 = vrot.lane.b32.xlu0 %v401, 4
        %v726 = vpop.permute.xlu0 %725
        %727 = vrot.lane.b32.xlu0 %v402, 4
        %v728 = vpop.permute.xlu0 %727
        %793 = vrot.lane.b32.xlu0 %v403, 8
        %v794 = vpop.permute.xlu0 %793
        %795 = vrot.lane.b32.xlu0 %v404, 8
        %v796 = vpop.permute.xlu0 %795
        %797 = vrot.lane.b32.xlu0 %v405, 8
        %v798 = vpop.permute.xlu0 %797
        %799 = vrot.lane.b32.xlu0 %v406, 8
        %v800 = vpop.permute.xlu0 %799
        %801 = vrot.lane.b32.xlu0 %v407, 8
        %v802 = vpop.permute.xlu0 %801
        %803 = vrot.lane.b32.xlu0 %v408, 8
        %v804 = vpop.permute.xlu0 %803
        %805 = vrot.lane.b32.xlu0 %v409, 8
        %v806 = vpop.permute.xlu0 %805
        %807 = vrot.lane.b32.xlu0 %v410, 8
        %v808 = vpop.permute.xlu0 %807
        %809 = vrot.lane.b32.xlu0 %v411, 8
        %v810 = vpop.permute.xlu0 %809
        %811 = vrot.lane.b32.xlu0 %v412, 8
        %v812 = vpop.permute.xlu0 %811
        %813 = vrot.lane.b32.xlu0 %v413, 8
        %v814 = vpop.permute.xlu0 %813
        %815 = vrot.lane.b32.xlu0 %v414, 8
        %v816 = vpop.permute.xlu0 %815
        %817 = vrot.lane.b32.xlu0 %v415, 8
        %v818 = vpop.permute.xlu0 %817
        %819 = vrot.lane.b32.xlu0 %v416, 8
        %v820 = vpop.permute.xlu0 %819
        %821 = vrot.lane.b32.xlu0 %v417, 8
        %v822 = vpop.permute.xlu0 %821
        %823 = vrot.lane.b32.xlu0 %v418, 8
        %v824 = vpop.permute.xlu0 %823
        %825 = vrot.lane.b32.xlu0 %v419, 8
        %v826 = vpop.permute.xlu0 %825
        %827 = vrot.lane.b32.xlu0 %v420, 8
        %v828 = vpop.permute.xlu0 %827
        %829 = vrot.lane.b32.xlu0 %v421, 8
        %v830 = vpop.permute.xlu0 %829
        %831 = vrot.lane.b32.xlu0 %v422, 8
        %v832 = vpop.permute.xlu0 %831
        %833 = vrot.lane.b32.xlu0 %v423, 8
        %v834 = vpop.permute.xlu0 %833
        %835 = vrot.lane.b32.xlu0 %v424, 8
        %v836 = vpop.permute.xlu0 %835
        %837 = vrot.lane.b32.xlu0 %v425, 8
        %v838 = vpop.permute.xlu0 %837
        %839 = vrot.lane.b32.xlu0 %v426, 8
        %v840 = vpop.permute.xlu0 %839
        %841 = vrot.lane.b32.xlu0 %v427, 8
        %v842 = vpop.permute.xlu0 %841
        %843 = vrot.lane.b32.xlu0 %v428, 8
        %v844 = vpop.permute.xlu0 %843
        %845 = vrot.lane.b32.xlu0 %v429, 8
        %v846 = vpop.permute.xlu0 %845
        %847 = vrot.lane.b32.xlu0 %v430, 8
        %v848 = vpop.permute.xlu0 %847
        %849 = vrot.lane.b32.xlu0 %v431, 8
        %v850 = vpop.permute.xlu0 %849
        %851 = vrot.lane.b32.xlu0 %v432, 8
        %v852 = vpop.permute.xlu0 %851
        %853 = vrot.lane.b32.xlu0 %v433, 8
        %v854 = vpop.permute.xlu0 %853
        %855 = vrot.lane.b32.xlu0 %v434, 8
        %v856 = vpop.permute.xlu0 %855
        %921 = vrot.lane.b32.xlu0 %v438, 12
        %v922 = vpop.permute.xlu0 %921
        %923 = vrot.lane.b32.xlu0 %v439, 12
        %v924 = vpop.permute.xlu0 %923
        %925 = vrot.lane.b32.xlu0 %v440, 12
        %v926 = vpop.permute.xlu0 %925
        %927 = vrot.lane.b32.xlu0 %v441, 12
        %v928 = vpop.permute.xlu0 %927
        %929 = vrot.lane.b32.xlu0 %v442, 12
        %v930 = vpop.permute.xlu0 %929
        %931 = vrot.lane.b32.xlu0 %v443, 12
        %v932 = vpop.permute.xlu0 %931
        %933 = vrot.lane.b32.xlu0 %v444, 12
        %v934 = vpop.permute.xlu0 %933
        %935 = vrot.lane.b32.xlu0 %v445, 12
        %v936 = vpop.permute.xlu0 %935
        %937 = vrot.lane.b32.xlu0 %v446, 12
        %v938 = vpop.permute.xlu0 %937
        %939 = vrot.lane.b32.xlu0 %v447, 12
        %v940 = vpop.permute.xlu0 %939
        %941 = vrot.lane.b32.xlu0 %v448, 12
        %v942 = vpop.permute.xlu0 %941
        %943 = vrot.lane.b32.xlu0 %v449, 12
        %v944 = vpop.permute.xlu0 %943
        %945 = vrot.lane.b32.xlu0 %v450, 12
        %v946 = vpop.permute.xlu0 %945
        %947 = vrot.lane.b32.xlu0 %v451, 12
        %v948 = vpop.permute.xlu0 %947
        %949 = vrot.lane.b32.xlu0 %v452, 12
        %v950 = vpop.permute.xlu0 %949
        %951 = vrot.lane.b32.xlu0 %v453, 12
        %v952 = vpop.permute.xlu0 %951
        %953 = vrot.lane.b32.xlu0 %v454, 12
        %v954 = vpop.permute.xlu0 %953
        %955 = vrot.lane.b32.xlu0 %v455, 12
        %v956 = vpop.permute.xlu0 %955
        %957 = vrot.lane.b32.xlu0 %v456, 12
        %v958 = vpop.permute.xlu0 %957
        %959 = vrot.lane.b32.xlu0 %v457, 12
        %v960 = vpop.permute.xlu0 %959
        %961 = vrot.lane.b32.xlu0 %v458, 12
        %v962 = vpop.permute.xlu0 %961
        %963 = vrot.lane.b32.xlu0 %v459, 12
        %v964 = vpop.permute.xlu0 %963
        %965 = vrot.lane.b32.xlu0 %v460, 12
        %v966 = vpop.permute.xlu0 %965
        %967 = vrot.lane.b32.xlu0 %v461, 12
        %v968 = vpop.permute.xlu0 %967
        %969 = vrot.lane.b32.xlu0 %v462, 12
        %v970 = vpop.permute.xlu0 %969
        %971 = vrot.lane.b32.xlu0 %v463, 12
        %v972 = vpop.permute.xlu0 %971
        %973 = vrot.lane.b32.xlu0 %v464, 12
        %v974 = vpop.permute.xlu0 %973
        %975 = vrot.lane.b32.xlu0 %v465, 12
        %v976 = vpop.permute.xlu0 %975
        %977 = vrot.lane.b32.xlu0 %v466, 12
        %v978 = vpop.permute.xlu0 %977
        %979 = vrot.lane.b32.xlu0 %v467, 12
        %v980 = vpop.permute.xlu0 %979
        %981 = vrot.lane.b32.xlu0 %v468, 12
        %v982 = vpop.permute.xlu0 %981
        %983 = vrot.lane.b32.xlu0 %v469, 12
        %v984 = vpop.permute.xlu0 %983
        %1049 = vrot.lane.b32.xlu0 %v470, 16
        %v1050 = vpop.permute.xlu0 %1049
        %1051 = vrot.lane.b32.xlu0 %v471, 16
        %v1052 = vpop.permute.xlu0 %1051
        %1053 = vrot.lane.b32.xlu0 %v472, 16
        %v1054 = vpop.permute.xlu0 %1053
        %1055 = vrot.lane.b32.xlu0 %v473, 16
        %v1056 = vpop.permute.xlu0 %1055
        %1057 = vrot.lane.b32.xlu0 %v474, 16
        %v1058 = vpop.permute.xlu0 %1057
        %1059 = vrot.lane.b32.xlu0 %v475, 16
        %v1060 = vpop.permute.xlu0 %1059
        %1061 = vrot.lane.b32.xlu0 %v476, 16
        %v1062 = vpop.permute.xlu0 %1061
        %1063 = vrot.lane.b32.xlu0 %v477, 16
        %v1064 = vpop.permute.xlu0 %1063
        %1065 = vrot.lane.b32.xlu0 %v478, 16
        %v1066 = vpop.permute.xlu0 %1065
        %1067 = vrot.lane.b32.xlu0 %v479, 16
        %v1068 = vpop.permute.xlu0 %1067
        %1069 = vrot.lane.b32.xlu0 %v480, 16
        %v1070 = vpop.permute.xlu0 %1069
        %1071 = vrot.lane.b32.xlu0 %v481, 16
        %v1072 = vpop.permute.xlu0 %1071
        %1073 = vrot.lane.b32.xlu0 %v482, 16
        %v1074 = vpop.permute.xlu0 %1073
        %1075 = vrot.lane.b32.xlu0 %v483, 16
        %v1076 = vpop.permute.xlu0 %1075
        %1077 = vrot.lane.b32.xlu0 %v484, 16
        %v1078 = vpop.permute.xlu0 %1077
        %1079 = vrot.lane.b32.xlu0 %v485, 16
        %v1080 = vpop.permute.xlu0 %1079
        %1081 = vrot.lane.b32.xlu0 %v486, 16
        %v1082 = vpop.permute.xlu0 %1081
        %1083 = vrot.lane.b32.xlu0 %v487, 16
        %v1084 = vpop.permute.xlu0 %1083
        %1085 = vrot.lane.b32.xlu0 %v488, 16
        %v1086 = vpop.permute.xlu0 %1085
        %1087 = vrot.lane.b32.xlu0 %v489, 16
        %v1088 = vpop.permute.xlu0 %1087
        %1089 = vrot.lane.b32.xlu0 %v490, 16
        %v1090 = vpop.permute.xlu0 %1089
        %1091 = vrot.lane.b32.xlu0 %v491, 16
        %v1092 = vpop.permute.xlu0 %1091
        %1093 = vrot.lane.b32.xlu0 %v492, 16
        %v1094 = vpop.permute.xlu0 %1093
        %1095 = vrot.lane.b32.xlu0 %v493, 16
        %v1096 = vpop.permute.xlu0 %1095
        %1097 = vrot.lane.b32.xlu0 %v494, 16
        %v1098 = vpop.permute.xlu0 %1097
        %1099 = vrot.lane.b32.xlu0 %v495, 16
        %v1100 = vpop.permute.xlu0 %1099
        %1101 = vrot.lane.b32.xlu0 %v496, 16
        %v1102 = vpop.permute.xlu0 %1101
        %1103 = vrot.lane.b32.xlu0 %v497, 16
        %v1104 = vpop.permute.xlu0 %1103
        %1105 = vrot.lane.b32.xlu0 %v498, 16
        %v1106 = vpop.permute.xlu0 %1105
        %1107 = vrot.lane.b32.xlu0 %v499, 16
        %v1108 = vpop.permute.xlu0 %1107
        %1109 = vrot.lane.b32.xlu0 %v500, 16
        %v1110 = vpop.permute.xlu0 %1109
        %1111 = vrot.lane.b32.xlu0 %v501, 16
        %v1112 = vpop.permute.xlu0 %1111
        %1177 = vrot.lane.b32.xlu0 %v502, 20
        %v1178 = vpop.permute.xlu0 %1177
        %1179 = vrot.lane.b32.xlu0 %v503, 20
        %v1180 = vpop.permute.xlu0 %1179
        %1181 = vrot.lane.b32.xlu0 %v504, 20
        %v1182 = vpop.permute.xlu0 %1181
        %1183 = vrot.lane.b32.xlu0 %v505, 20
        %v1184 = vpop.permute.xlu0 %1183
        %1185 = vrot.lane.b32.xlu0 %v506, 20
        %v1186 = vpop.permute.xlu0 %1185
        %1187 = vrot.lane.b32.xlu0 %v507, 20
        %v1188 = vpop.permute.xlu0 %1187
        %1189 = vrot.lane.b32.xlu0 %v508, 20
        %v1190 = vpop.permute.xlu0 %1189
        %1191 = vrot.lane.b32.xlu0 %v509, 20
        %v1192 = vpop.permute.xlu0 %1191
        %1193 = vrot.lane.b32.xlu0 %v510, 20
        %v1194 = vpop.permute.xlu0 %1193
        %1195 = vrot.lane.b32.xlu0 %v511, 20
        %v1196 = vpop.permute.xlu0 %1195
        %1197 = vrot.lane.b32.xlu0 %v512, 20
        %v1198 = vpop.permute.xlu0 %1197
        %1199 = vrot.lane.b32.xlu0 %v513, 20
        %v1200 = vpop.permute.xlu0 %1199
        %1201 = vrot.lane.b32.xlu0 %v514, 20
        %v1202 = vpop.permute.xlu0 %1201
        %1203 = vrot.lane.b32.xlu0 %v515, 20
        %v1204 = vpop.permute.xlu0 %1203
        %1205 = vrot.lane.b32.xlu0 %v516, 20
        %v1206 = vpop.permute.xlu0 %1205
        %1207 = vrot.lane.b32.xlu0 %v517, 20
        %v1208 = vpop.permute.xlu0 %1207
        %1209 = vrot.lane.b32.xlu0 %v518, 20
        %v1210 = vpop.permute.xlu0 %1209
        %1211 = vrot.lane.b32.xlu0 %v519, 20
        %v1212 = vpop.permute.xlu0 %1211
        %1213 = vrot.lane.b32.xlu0 %v520, 20
        %v1214 = vpop.permute.xlu0 %1213
        %1215 = vrot.lane.b32.xlu0 %v521, 20
        %v1216 = vpop.permute.xlu0 %1215
        %1217 = vrot.lane.b32.xlu0 %v522, 20
        %v1218 = vpop.permute.xlu0 %1217
        %1219 = vrot.lane.b32.xlu0 %v523, 20
        %v1220 = vpop.permute.xlu0 %1219
        %1221 = vrot.lane.b32.xlu0 %v524, 20
        %v1222 = vpop.permute.xlu0 %1221
        %1223 = vrot.lane.b32.xlu0 %v525, 20
        %v1224 = vpop.permute.xlu0 %1223
        %1225 = vrot.lane.b32.xlu0 %v526, 20
        %v1226 = vpop.permute.xlu0 %1225
        %1227 = vrot.lane.b32.xlu0 %v527, 20
        %v1228 = vpop.permute.xlu0 %1227
        %1229 = vrot.lane.b32.xlu0 %v528, 20
        %v1230 = vpop.permute.xlu0 %1229
        %1231 = vrot.lane.b32.xlu0 %v529, 20
        %v1232 = vpop.permute.xlu0 %1231
        %1233 = vrot.lane.b32.xlu0 %v530, 20
        %v1234 = vpop.permute.xlu0 %1233
        %1235 = vrot.lane.b32.xlu0 %v531, 20
        %v1236 = vpop.permute.xlu0 %1235
        %1237 = vrot.lane.b32.xlu0 %v532, 20
        %v1238 = vpop.permute.xlu0 %1237
        %1239 = vrot.lane.b32.xlu0 %v533, 20
        %v1240 = vpop.permute.xlu0 %1239
        %1305 = vrot.lane.b32.xlu0 %v537, 24
        %v1306 = vpop.permute.xlu0 %1305
        %1307 = vrot.lane.b32.xlu0 %v538, 24
        %v1308 = vpop.permute.xlu0 %1307
        %1309 = vrot.lane.b32.xlu0 %v539, 24
        %v1310 = vpop.permute.xlu0 %1309
        %1311 = vrot.lane.b32.xlu0 %v540, 24
        %v1312 = vpop.permute.xlu0 %1311
        %1313 = vrot.lane.b32.xlu0 %v541, 24
        %v1314 = vpop.permute.xlu0 %1313
        %1315 = vrot.lane.b32.xlu0 %v542, 24
        %v1316 = vpop.permute.xlu0 %1315
        %1317 = vrot.lane.b32.xlu0 %v543, 24
        %v1318 = vpop.permute.xlu0 %1317
        %1319 = vrot.lane.b32.xlu0 %v544, 24
        %v1320 = vpop.permute.xlu0 %1319
        %1321 = vrot.lane.b32.xlu0 %v545, 24
        %v1322 = vpop.permute.xlu0 %1321
        %1323 = vrot.lane.b32.xlu0 %v546, 24
        %v1324 = vpop.permute.xlu0 %1323
        %1325 = vrot.lane.b32.xlu0 %v547, 24
        %v1326 = vpop.permute.xlu0 %1325
        %1327 = vrot.lane.b32.xlu0 %v548, 24
        %v1328 = vpop.permute.xlu0 %1327
        %1329 = vrot.lane.b32.xlu0 %v549, 24
        %v1330 = vpop.permute.xlu0 %1329
        %1331 = vrot.lane.b32.xlu0 %v550, 24
        %v1332 = vpop.permute.xlu0 %1331
        %1333 = vrot.lane.b32.xlu0 %v551, 24
        %v1334 = vpop.permute.xlu0 %1333
        %1335 = vrot.lane.b32.xlu0 %v552, 24
        %v1336 = vpop.permute.xlu0 %1335
        %1337 = vrot.lane.b32.xlu0 %v553, 24
        %v1338 = vpop.permute.xlu0 %1337
        %1339 = vrot.lane.b32.xlu0 %v554, 24
        %v1340 = vpop.permute.xlu0 %1339
        %1341 = vrot.lane.b32.xlu0 %v555, 24
        %v1342 = vpop.permute.xlu0 %1341
        %1343 = vrot.lane.b32.xlu0 %v556, 24
        %v1344 = vpop.permute.xlu0 %1343
        %1345 = vrot.lane.b32.xlu0 %v557, 24
        %v1346 = vpop.permute.xlu0 %1345
        %1347 = vrot.lane.b32.xlu0 %v558, 24
        %v1348 = vpop.permute.xlu0 %1347
        %1349 = vrot.lane.b32.xlu0 %v559, 24
        %v1350 = vpop.permute.xlu0 %1349
        %1351 = vrot.lane.b32.xlu0 %v560, 24
        %v1352 = vpop.permute.xlu0 %1351
        %1353 = vrot.lane.b32.xlu0 %v561, 24
        %v1354 = vpop.permute.xlu0 %1353
        %1355 = vrot.lane.b32.xlu0 %v562, 24
        %v1356 = vpop.permute.xlu0 %1355
        %1357 = vrot.lane.b32.xlu0 %v563, 24
        %v1358 = vpop.permute.xlu0 %1357
        %1359 = vrot.lane.b32.xlu0 %v564, 24
        %v1360 = vpop.permute.xlu0 %1359
        %1361 = vrot.lane.b32.xlu0 %v565, 24
        %v1362 = vpop.permute.xlu0 %1361
        %1363 = vrot.lane.b32.xlu0 %v566, 24
        %v1364 = vpop.permute.xlu0 %1363
        %1365 = vrot.lane.b32.xlu0 %v567, 24
        %v1366 = vpop.permute.xlu0 %1365
        %1367 = vrot.lane.b32.xlu0 %v568, 24
        %v1368 = vpop.permute.xlu0 %1367
        %1433 = vrot.lane.b32.xlu0 %v569, 28
        %v1434 = vpop.permute.xlu0 %1433
        %1435 = vrot.lane.b32.xlu0 %v570, 28
        %v1436 = vpop.permute.xlu0 %1435
        %1437 = vrot.lane.b32.xlu0 %v571, 28
        %v1438 = vpop.permute.xlu0 %1437
        %1439 = vrot.lane.b32.xlu0 %v572, 28
        %v1440 = vpop.permute.xlu0 %1439
        %1441 = vrot.lane.b32.xlu0 %v573, 28
        %v1442 = vpop.permute.xlu0 %1441
        %1443 = vrot.lane.b32.xlu0 %v574, 28
        %v1444 = vpop.permute.xlu0 %1443
        %1445 = vrot.lane.b32.xlu0 %v575, 28
        %v1446 = vpop.permute.xlu0 %1445
        %1447 = vrot.lane.b32.xlu0 %v576, 28
        %v1448 = vpop.permute.xlu0 %1447
        %1449 = vrot.lane.b32.xlu0 %v577, 28
        %v1450 = vpop.permute.xlu0 %1449
        %1451 = vrot.lane.b32.xlu0 %v578, 28
        %v1452 = vpop.permute.xlu0 %1451
        %1453 = vrot.lane.b32.xlu0 %v579, 28
        %v1454 = vpop.permute.xlu0 %1453
        %1455 = vrot.lane.b32.xlu0 %v580, 28
        %v1456 = vpop.permute.xlu0 %1455
        %1457 = vrot.lane.b32.xlu0 %v581, 28
        %v1458 = vpop.permute.xlu0 %1457
        %1459 = vrot.lane.b32.xlu0 %v582, 28
        %v1460 = vpop.permute.xlu0 %1459
        %1461 = vrot.lane.b32.xlu0 %v583, 28
        %v1462 = vpop.permute.xlu0 %1461
        %1463 = vrot.lane.b32.xlu0 %v584, 28
        %v1464 = vpop.permute.xlu0 %1463
        %1465 = vrot.lane.b32.xlu0 %v585, 28
        %v1466 = vpop.permute.xlu0 %1465
        %1467 = vrot.lane.b32.xlu0 %v586, 28
        %v1468 = vpop.permute.xlu0 %1467
        %1469 = vrot.lane.b32.xlu0 %v587, 28
        %v1470 = vpop.permute.xlu0 %1469
        %1471 = vrot.lane.b32.xlu0 %v588, 28
        %v1472 = vpop.permute.xlu0 %1471
        %1473 = vrot.lane.b32.xlu0 %v589, 28
        %v1474 = vpop.permute.xlu0 %1473
        %1475 = vrot.lane.b32.xlu0 %v590, 28
        %v1476 = vpop.permute.xlu0 %1475
        %1477 = vrot.lane.b32.xlu0 %v591, 28
        %v1478 = vpop.permute.xlu0 %1477
        %1479 = vrot.lane.b32.xlu0 %v592, 28
        %v1480 = vpop.permute.xlu0 %1479
        %1481 = vrot.lane.b32.xlu0 %v593, 28
        %v1482 = vpop.permute.xlu0 %1481
        %1483 = vrot.lane.b32.xlu0 %v594, 28
        %v1484 = vpop.permute.xlu0 %1483
        %1485 = vrot.lane.b32.xlu0 %v595, 28
        %v1486 = vpop.permute.xlu0 %1485
        %1487 = vrot.lane.b32.xlu0 %v596, 28
        %v1488 = vpop.permute.xlu0 %1487
        %1489 = vrot.lane.b32.xlu0 %v597, 28
        %v1490 = vpop.permute.xlu0 %1489
        %1491 = vrot.lane.b32.xlu0 %v598, 28
        %v1492 = vpop.permute.xlu0 %1491
        %1493 = vrot.lane.b32.xlu0 %v599, 28
        %v1494 = vpop.permute.xlu0 %1493
        %1495 = vrot.lane.b32.xlu0 %v600, 28
        %v1496 = vpop.permute.xlu0 %1495
        %1561 = vrot.lane.b32.xlu0 %v601, 32
        %v1562 = vpop.permute.xlu0 %1561
        %1563 = vrot.lane.b32.xlu0 %v602, 32
        %v1564 = vpop.permute.xlu0 %1563
        %1565 = vrot.lane.b32.xlu0 %v603, 32
        %v1566 = vpop.permute.xlu0 %1565
        %1567 = vrot.lane.b32.xlu0 %v604, 32
        %v1568 = vpop.permute.xlu0 %1567
        %1569 = vrot.lane.b32.xlu0 %v605, 32
        %v1570 = vpop.permute.xlu0 %1569
        %1571 = vrot.lane.b32.xlu0 %v606, 32
        %v1572 = vpop.permute.xlu0 %1571
        %1573 = vrot.lane.b32.xlu0 %v607, 32
        %v1574 = vpop.permute.xlu0 %1573
        %1575 = vrot.lane.b32.xlu0 %v608, 32
        %v1576 = vpop.permute.xlu0 %1575
        %1577 = vrot.lane.b32.xlu0 %v609, 32
        %v1578 = vpop.permute.xlu0 %1577
        %1579 = vrot.lane.b32.xlu0 %v610, 32
        %v1580 = vpop.permute.xlu0 %1579
        %1581 = vrot.lane.b32.xlu0 %v611, 32
        %v1582 = vpop.permute.xlu0 %1581
        %1583 = vrot.lane.b32.xlu0 %v612, 32
        %v1584 = vpop.permute.xlu0 %1583
        %1585 = vrot.lane.b32.xlu0 %v613, 32
        %v1586 = vpop.permute.xlu0 %1585
        %1587 = vrot.lane.b32.xlu0 %v614, 32
        %v1588 = vpop.permute.xlu0 %1587
        %1589 = vrot.lane.b32.xlu0 %v615, 32
        %v1590 = vpop.permute.xlu0 %1589
        %1591 = vrot.lane.b32.xlu0 %v616, 32
        %v1592 = vpop.permute.xlu0 %1591
        %1593 = vrot.lane.b32.xlu0 %v617, 32
        %v1594 = vpop.permute.xlu0 %1593
        %1595 = vrot.lane.b32.xlu0 %v618, 32
        %v1596 = vpop.permute.xlu0 %1595
        %1597 = vrot.lane.b32.xlu0 %v619, 32
        %v1598 = vpop.permute.xlu0 %1597
        %1599 = vrot.lane.b32.xlu0 %v620, 32
        %v1600 = vpop.permute.xlu0 %1599
        %1601 = vrot.lane.b32.xlu0 %v621, 32
        %v1602 = vpop.permute.xlu0 %1601
        %1603 = vrot.lane.b32.xlu0 %v622, 32
        %v1604 = vpop.permute.xlu0 %1603
        %1605 = vrot.lane.b32.xlu0 %v623, 32
        %v1606 = vpop.permute.xlu0 %1605
        %1607 = vrot.lane.b32.xlu0 %v624, 32
        %v1608 = vpop.permute.xlu0 %1607
        %1609 = vrot.lane.b32.xlu0 %v625, 32
        %v1610 = vpop.permute.xlu0 %1609
        %1611 = vrot.lane.b32.xlu0 %v626, 32
        %v1612 = vpop.permute.xlu0 %1611
        %1613 = vrot.lane.b32.xlu0 %v627, 32
        %v1614 = vpop.permute.xlu0 %1613
        %1615 = vrot.lane.b32.xlu0 %v628, 32
        %v1616 = vpop.permute.xlu0 %1615
        %1617 = vrot.lane.b32.xlu0 %v629, 32
        %v1618 = vpop.permute.xlu0 %1617
        %1619 = vrot.lane.b32.xlu0 %v630, 32
        %v1620 = vpop.permute.xlu0 %1619
        %1621 = vrot.lane.b32.xlu0 %v631, 32
        %v1622 = vpop.permute.xlu0 %1621
        %1623 = vrot.lane.b32.xlu0 %v632, 32
        %v1624 = vpop.permute.xlu0 %1623
        %vm1657 = vcmask 31744
        %v1658 = vsel %vm1657, %v339, %v666
        %v1659 = vsel %vm1657, %v340, %v668
        %v1660 = vsel %vm1657, %v341, %v670
        %v1661 = vsel %vm1657, %v342, %v672
        %v1662 = vsel %vm1657, %v343, %v674
        %v1663 = vsel %vm1657, %v344, %v676
        %v1664 = vsel %vm1657, %v345, %v678
        %v1665 = vsel %vm1657, %v346, %v680
        %v1666 = vsel %vm1657, %v347, %v682
        %v1667 = vsel %vm1657, %v348, %v684
        %v1668 = vsel %vm1657, %v349, %v686
        %v1669 = vsel %vm1657, %v350, %v688
        %v1670 = vsel %vm1657, %v351, %v690
        %v1671 = vsel %vm1657, %v352, %v692
        %v1672 = vsel %vm1657, %v353, %v694
        %v1673 = vsel %vm1657, %v354, %v696
        %v1674 = vsel %vm1657, %v355, %v698
        %v1675 = vsel %vm1657, %v356, %v700
        %v1676 = vsel %vm1657, %v357, %v702
        %v1677 = vsel %vm1657, %v358, %v704
        %v1678 = vsel %vm1657, %v359, %v706
        %v1679 = vsel %vm1657, %v360, %v708
        %v1680 = vsel %vm1657, %v361, %v710
        %v1681 = vsel %vm1657, %v362, %v712
        %v1682 = vsel %vm1657, %v363, %v714
        %v1683 = vsel %vm1657, %v364, %v716
        %v1684 = vsel %vm1657, %v365, %v718
        %v1685 = vsel %vm1657, %v366, %v720
        %v1686 = vsel %vm1657, %v367, %v722
        %v1687 = vsel %vm1657, %v368, %v724
        %v1688 = vsel %vm1657, %v369, %v726
        %v1689 = vsel %vm1657, %v370, %v728
        %vm1690 = vcmask 64512
        %v1691 = vsel %vm1690, %v1658, %v794
        %v1692 = vsel %vm1690, %v1659, %v796
        %v1693 = vsel %vm1690, %v1660, %v798
        %v1694 = vsel %vm1690, %v1661, %v800
        %v1695 = vsel %vm1690, %v1662, %v802
        %v1696 = vsel %vm1690, %v1663, %v804
        %v1697 = vsel %vm1690, %v1664, %v806
        %v1698 = vsel %vm1690, %v1665, %v808
        %v1699 = vsel %vm1690, %v1666, %v810
        %v1700 = vsel %vm1690, %v1667, %v812
        %v1701 = vsel %vm1690, %v1668, %v814
        %v1702 = vsel %vm1690, %v1669, %v816
        %v1703 = vsel %vm1690, %v1670, %v818
        %v1704 = vsel %vm1690, %v1671, %v820
        %v1705 = vsel %vm1690, %v1672, %v822
        %v1706 = vsel %vm1690, %v1673, %v824
        %v1707 = vsel %vm1690, %v1674, %v826
        %v1708 = vsel %vm1690, %v1675, %v828
        %v1709 = vsel %vm1690, %v1676, %v830
        %v1710 = vsel %vm1690, %v1677, %v832
        %v1711 = vsel %vm1690, %v1678, %v834
        %v1712 = vsel %vm1690, %v1679, %v836
        %v1713 = vsel %vm1690, %v1680, %v838
        %v1714 = vsel %vm1690, %v1681, %v840
        %v1715 = vsel %vm1690, %v1682, %v842
        %v1716 = vsel %vm1690, %v1683, %v844
        %v1717 = vsel %vm1690, %v1684, %v846
        %v1718 = vsel %vm1690, %v1685, %v848
        %v1719 = vsel %vm1690, %v1686, %v850
        %v1720 = vsel %vm1690, %v1687, %v852
        %v1721 = vsel %vm1690, %v1688, %v854
        %v1722 = vsel %vm1690, %v1689, %v856
        %vm1723 = vcmask 97280
        %v1724 = vsel %vm1723, %v1691, %v922
        %v1725 = vsel %vm1723, %v1692, %v924
        %v1726 = vsel %vm1723, %v1693, %v926
        %v1727 = vsel %vm1723, %v1694, %v928
        %v1728 = vsel %vm1723, %v1695, %v930
        %v1729 = vsel %vm1723, %v1696, %v932
        %v1730 = vsel %vm1723, %v1697, %v934
        %v1731 = vsel %vm1723, %v1698, %v936
        %v1732 = vsel %vm1723, %v1699, %v938
        %v1733 = vsel %vm1723, %v1700, %v940
        %v1734 = vsel %vm1723, %v1701, %v942
        %v1735 = vsel %vm1723, %v1702, %v944
        %v1736 = vsel %vm1723, %v1703, %v946
        %v1737 = vsel %vm1723, %v1704, %v948
        %v1738 = vsel %vm1723, %v1705, %v950
        %v1739 = vsel %vm1723, %v1706, %v952
        %v1740 = vsel %vm1723, %v1707, %v954
        %v1741 = vsel %vm1723, %v1708, %v956
        %v1742 = vsel %vm1723, %v1709, %v958
        %v1743 = vsel %vm1723, %v1710, %v960
        %v1744 = vsel %vm1723, %v1711, %v962
        %v1745 = vsel %vm1723, %v1712, %v964
        %v1746 = vsel %vm1723, %v1713, %v966
        %v1747 = vsel %vm1723, %v1714, %v968
        %v1748 = vsel %vm1723, %v1715, %v970
        %v1749 = vsel %vm1723, %v1716, %v972
        %v1750 = vsel %vm1723, %v1717, %v974
        %v1751 = vsel %vm1723, %v1718, %v976
        %v1752 = vsel %vm1723, %v1719, %v978
        %v1753 = vsel %vm1723, %v1720, %v980
        %v1754 = vsel %vm1723, %v1721, %v982
        %v1755 = vsel %vm1723, %v1722, %v984
        %vm1756 = vcmask 130048
        %v1757 = vsel %vm1756, %v1724, %v1050
        %v1758 = vsel %vm1756, %v1725, %v1052
        %v1759 = vsel %vm1756, %v1726, %v1054
        %v1760 = vsel %vm1756, %v1727, %v1056
        %v1761 = vsel %vm1756, %v1728, %v1058
        %v1762 = vsel %vm1756, %v1729, %v1060
        %v1763 = vsel %vm1756, %v1730, %v1062
        %v1764 = vsel %vm1756, %v1731, %v1064
        %v1765 = vsel %vm1756, %v1732, %v1066
        %v1766 = vsel %vm1756, %v1733, %v1068
        %v1767 = vsel %vm1756, %v1734, %v1070
        %v1768 = vsel %vm1756, %v1735, %v1072
        %v1769 = vsel %vm1756, %v1736, %v1074
        %v1770 = vsel %vm1756, %v1737, %v1076
        %v1771 = vsel %vm1756, %v1738, %v1078
        %v1772 = vsel %vm1756, %v1739, %v1080
        %v1773 = vsel %vm1756, %v1740, %v1082
        %v1774 = vsel %vm1756, %v1741, %v1084
        %v1775 = vsel %vm1756, %v1742, %v1086
        %v1776 = vsel %vm1756, %v1743, %v1088
        %v1777 = vsel %vm1756, %v1744, %v1090
        %v1778 = vsel %vm1756, %v1745, %v1092
        %v1779 = vsel %vm1756, %v1746, %v1094
        %v1780 = vsel %vm1756, %v1747, %v1096
        %v1781 = vsel %vm1756, %v1748, %v1098
        %v1782 = vsel %vm1756, %v1749, %v1100
        %v1783 = vsel %vm1756, %v1750, %v1102
        %v1784 = vsel %vm1756, %v1751, %v1104
        %v1785 = vsel %vm1756, %v1752, %v1106
        %v1786 = vsel %vm1756, %v1753, %v1108
        %v1787 = vsel %vm1756, %v1754, %v1110
        %v1788 = vsel %vm1756, %v1755, %v1112
        %vm1789 = vcmask 162816
        %v1790 = vsel %vm1789, %v1757, %v1178
        %v1791 = vsel %vm1789, %v1758, %v1180
        %v1792 = vsel %vm1789, %v1759, %v1182
        %v1793 = vsel %vm1789, %v1760, %v1184
        %v1794 = vsel %vm1789, %v1761, %v1186
        %v1795 = vsel %vm1789, %v1762, %v1188
        %v1796 = vsel %vm1789, %v1763, %v1190
        %v1797 = vsel %vm1789, %v1764, %v1192
        %v1798 = vsel %vm1789, %v1765, %v1194
        %v1799 = vsel %vm1789, %v1766, %v1196
        %v1800 = vsel %vm1789, %v1767, %v1198
        %v1801 = vsel %vm1789, %v1768, %v1200
        %v1802 = vsel %vm1789, %v1769, %v1202
        %v1803 = vsel %vm1789, %v1770, %v1204
        %v1804 = vsel %vm1789, %v1771, %v1206
        %v1805 = vsel %vm1789, %v1772, %v1208
        %v1806 = vsel %vm1789, %v1773, %v1210
        %v1807 = vsel %vm1789, %v1774, %v1212
        %v1808 = vsel %vm1789, %v1775, %v1214
        %v1809 = vsel %vm1789, %v1776, %v1216
        %v1810 = vsel %vm1789, %v1777, %v1218
        %v1811 = vsel %vm1789, %v1778, %v1220
        %v1812 = vsel %vm1789, %v1779, %v1222
        %v1813 = vsel %vm1789, %v1780, %v1224
        %v1814 = vsel %vm1789, %v1781, %v1226
        %v1815 = vsel %vm1789, %v1782, %v1228
        %v1816 = vsel %vm1789, %v1783, %v1230
        %v1817 = vsel %vm1789, %v1784, %v1232
        %v1818 = vsel %vm1789, %v1785, %v1234
        %v1819 = vsel %vm1789, %v1786, %v1236
        %v1820 = vsel %vm1789, %v1787, %v1238
        %v1821 = vsel %vm1789, %v1788, %v1240
        %vm1822 = vcmask 195584
        %v1823 = vsel %vm1822, %v1790, %v1306
        %v1824 = vsel %vm1822, %v1791, %v1308
        %v1825 = vsel %vm1822, %v1792, %v1310
        %v1826 = vsel %vm1822, %v1793, %v1312
        %v1827 = vsel %vm1822, %v1794, %v1314
        %v1828 = vsel %vm1822, %v1795, %v1316
        %v1829 = vsel %vm1822, %v1796, %v1318
        %v1830 = vsel %vm1822, %v1797, %v1320
        %v1831 = vsel %vm1822, %v1798, %v1322
        %v1832 = vsel %vm1822, %v1799, %v1324
        %v1833 = vsel %vm1822, %v1800, %v1326
        %v1834 = vsel %vm1822, %v1801, %v1328
        %v1835 = vsel %vm1822, %v1802, %v1330
        %v1836 = vsel %vm1822, %v1803, %v1332
        %v1837 = vsel %vm1822, %v1804, %v1334
        %v1838 = vsel %vm1822, %v1805, %v1336
        %v1839 = vsel %vm1822, %v1806, %v1338
        %v1840 = vsel %vm1822, %v1807, %v1340
        %v1841 = vsel %vm1822, %v1808, %v1342
        %v1842 = vsel %vm1822, %v1809, %v1344
        %v1843 = vsel %vm1822, %v1810, %v1346
        %v1844 = vsel %vm1822, %v1811, %v1348
        %v1845 = vsel %vm1822, %v1812, %v1350
        %v1846 = vsel %vm1822, %v1813, %v1352
        %v1847 = vsel %vm1822, %v1814, %v1354
        %v1848 = vsel %vm1822, %v1815, %v1356
        %v1849 = vsel %vm1822, %v1816, %v1358
        %v1850 = vsel %vm1822, %v1817, %v1360
        %v1851 = vsel %vm1822, %v1818, %v1362
        %v1852 = vsel %vm1822, %v1819, %v1364
        %v1853 = vsel %vm1822, %v1820, %v1366
        %v1854 = vsel %vm1822, %v1821, %v1368
        %vm1855 = vcmask 228352
        %v1856 = vsel %vm1855, %v1823, %v1434
        %v1857 = vsel %vm1855, %v1824, %v1436
        %v1858 = vsel %vm1855, %v1825, %v1438
        %v1859 = vsel %vm1855, %v1826, %v1440
        %v1860 = vsel %vm1855, %v1827, %v1442
        %v1861 = vsel %vm1855, %v1828, %v1444
        %v1862 = vsel %vm1855, %v1829, %v1446
        %v1863 = vsel %vm1855, %v1830, %v1448
        %v1864 = vsel %vm1855, %v1831, %v1450
        %v1865 = vsel %vm1855, %v1832, %v1452
        %v1866 = vsel %vm1855, %v1833, %v1454
        %v1867 = vsel %vm1855, %v1834, %v1456
        %v1868 = vsel %vm1855, %v1835, %v1458
        %v1869 = vsel %vm1855, %v1836, %v1460
        %v1870 = vsel %vm1855, %v1837, %v1462
        %v1871 = vsel %vm1855, %v1838, %v1464
        %v1872 = vsel %vm1855, %v1839, %v1466
        %v1873 = vsel %vm1855, %v1840, %v1468
        %v1874 = vsel %vm1855, %v1841, %v1470
        %v1875 = vsel %vm1855, %v1842, %v1472
        %v1876 = vsel %vm1855, %v1843, %v1474
        %v1877 = vsel %vm1855, %v1844, %v1476
        %v1878 = vsel %vm1855, %v1845, %v1478
        %v1879 = vsel %vm1855, %v1846, %v1480
        %v1880 = vsel %vm1855, %v1847, %v1482
        %v1881 = vsel %vm1855, %v1848, %v1484
        %v1882 = vsel %vm1855, %v1849, %v1486
        %v1883 = vsel %vm1855, %v1850, %v1488
        %v1884 = vsel %vm1855, %v1851, %v1490
        %v1885 = vsel %vm1855, %v1852, %v1492
        %v1886 = vsel %vm1855, %v1853, %v1494
        %v1887 = vsel %vm1855, %v1854, %v1496
        %vm1888 = vcmask 261120
        %v1889 = vsel %vm1888, %v1856, %v1562
        %v1890 = vsel %vm1888, %v1857, %v1564
        %v1891 = vsel %vm1888, %v1858, %v1566
        %v1892 = vsel %vm1888, %v1859, %v1568
        %v1893 = vsel %vm1888, %v1860, %v1570
        %v1894 = vsel %vm1888, %v1861, %v1572
        %v1895 = vsel %vm1888, %v1862, %v1574
        %v1896 = vsel %vm1888, %v1863, %v1576
        %v1897 = vsel %vm1888, %v1864, %v1578
        %v1898 = vsel %vm1888, %v1865, %v1580
        %v1899 = vsel %vm1888, %v1866, %v1582
        %v1900 = vsel %vm1888, %v1867, %v1584
        %v1901 = vsel %vm1888, %v1868, %v1586
        %v1902 = vsel %vm1888, %v1869, %v1588
        %v1903 = vsel %vm1888, %v1870, %v1590
        %v1904 = vsel %vm1888, %v1871, %v1592
        %v1905 = vsel %vm1888, %v1872, %v1594
        %v1906 = vsel %vm1888, %v1873, %v1596
        %v1907 = vsel %vm1888, %v1874, %v1598
        %v1908 = vsel %vm1888, %v1875, %v1600
        %v1909 = vsel %vm1888, %v1876, %v1602
        %v1910 = vsel %vm1888, %v1877, %v1604
        %v1911 = vsel %vm1888, %v1878, %v1606
        %v1912 = vsel %vm1888, %v1879, %v1608
        %v1913 = vsel %vm1888, %v1880, %v1610
        %v1914 = vsel %vm1888, %v1881, %v1612
        %v1915 = vsel %vm1888, %v1882, %v1614
        %v1916 = vsel %vm1888, %v1883, %v1616
        %v1917 = vsel %vm1888, %v1884, %v1618
        %v1918 = vsel %vm1888, %v1885, %v1620
        %v1919 = vsel %vm1888, %v1886, %v1622
        %v1920 = vsel %vm1888, %v1887, %v1624
        %v1921 = vld [vmem:[%s1] sm:$0xff]
        %v1922 = vld [vmem:[%s1 + $0x8] sm:$0xff]
        %v1923 = vld [vmem:[%s1 + $0x10] sm:$0xff]
        %v1924 = vld [vmem:[%s1 + $0x18] sm:$0xff]
        %v1925 = vld [vmem:[%s1 + $0x20] sm:$0xf]
        %v1926 = vld [vmem:[%s2] sm:$0x1]
        %v1928 = vperm.slane %v1926, 0
        %vm1930 = vcmask 293888
        %v1932 = vsel %vm1930, %v1889, 0
        %v1935 = vsel %vm1930, %v1890, 0
        %v1938 = vsel %vm1930, %v1891, 0
        %v1941 = vsel %vm1930, %v1892, 0
        %v1944 = vsel %vm1930, %v1893, 0
        %v1947 = vsel %vm1930, %v1894, 0
        %v1950 = vsel %vm1930, %v1895, 0
        %v1953 = vsel %vm1930, %v1896, 0
        %v1956 = vsel %vm1930, %v1897, 0
        %v1959 = vsel %vm1930, %v1898, 0
        %v1962 = vsel %vm1930, %v1899, 0
        %v1965 = vsel %vm1930, %v1900, 0
        %v1968 = vsel %vm1930, %v1901, 0
        %v1971 = vsel %vm1930, %v1902, 0
        %v1974 = vsel %vm1930, %v1903, 0
        %v1977 = vsel %vm1930, %v1904, 0
        %v1980 = vsel %vm1930, %v1905, 0
        %v1983 = vsel %vm1930, %v1906, 0
        %v1986 = vsel %vm1930, %v1907, 0
        %v1989 = vsel %vm1930, %v1908, 0
        %v1992 = vsel %vm1930, %v1909, 0
        %v1995 = vsel %vm1930, %v1910, 0
        %v1998 = vsel %vm1930, %v1911, 0
        %v2001 = vsel %vm1930, %v1912, 0
        %v2004 = vsel %vm1930, %v1913, 0
        %v2007 = vsel %vm1930, %v1914, 0
        %v2010 = vsel %vm1930, %v1915, 0
        %v2013 = vsel %vm1930, %v1916, 0
        %v2016 = vsel %vm1930, %v1917, 0
        %v2019 = vsel %vm1930, %v1918, 0
        %v2022 = vsel %vm1930, %v1919, 0
        %v2025 = vsel %vm1930, %v1920, 0
        %vm2027 = vcmask 1043456
        %v2029 = vsel %vm2027, %v1925, 0
        %2031 = vmatpush.msra.mxu0 0.0
        %2032 = vmatpush.msra.mxu0 0.0
        %2033 = vmatpush.msra.mxu0 0.0
        %2034 = vmatpush.msra.mxu0 0.0
        %2035 = vmatpush.msra.mxu0 0.0
        %2036 = vmatpush.msra.mxu0 0.0
        %2037 = vmatpush.msra.mxu0 0.0
        %2038 = vmatpush.msra.mxu0 0.0
        %2039 = vmatpush.msra.mxu0 0.0
        %2040 = vmatpush.msra.mxu0 0.0
        %2041 = vmatpush.msra.mxu0 0.0
        %2042 = vmatpush.msra.mxu0 %v2029
        %2043 = vmatpush.msra.mxu0 %v1924
        %2044 = vmatpush.msra.mxu0 %v1923
        %2045 = vmatpush.msra.mxu0 %v1922
        %2046 = vmatpush.msra.mxu0 %v1921
        %2047 = vmatmul.f32.gmra.mxu0 %v1932
        %v2048 = vpop.f32.mrf.mxu0
        %v2049 = vadd.f32 %v1928, %v2048
        %2050 = vmatmul.f32.gmra.mxu0 %v1935
        %v2051 = vpop.f32.mrf.mxu0
        %v2052 = vadd.f32 %v1928, %v2051
        %2053 = vmatmul.f32.gmra.mxu0 %v1938
        %v2054 = vpop.f32.mrf.mxu0
        %v2055 = vadd.f32 %v1928, %v2054
        %2056 = vmatmul.f32.gmra.mxu0 %v1941
        %v2057 = vpop.f32.mrf.mxu0
        %v2058 = vadd.f32 %v1928, %v2057
        %2059 = vmatmul.f32.gmra.mxu0 %v1944
        %v2060 = vpop.f32.mrf.mxu0
        %v2061 = vadd.f32 %v1928, %v2060
        %2062 = vmatmul.f32.gmra.mxu0 %v1947
        %v2063 = vpop.f32.mrf.mxu0
        %v2064 = vadd.f32 %v1928, %v2063
        %2065 = vmatmul.f32.gmra.mxu0 %v1950
        %v2066 = vpop.f32.mrf.mxu0
        %v2067 = vadd.f32 %v1928, %v2066
        %2068 = vmatmul.f32.gmra.mxu0 %v1953
        %v2069 = vpop.f32.mrf.mxu0
        %v2070 = vadd.f32 %v1928, %v2069
        %2071 = vmatmul.f32.gmra.mxu0 %v1956
        %v2072 = vpop.f32.mrf.mxu0
        %v2073 = vadd.f32 %v1928, %v2072
        %2074 = vmatmul.f32.gmra.mxu0 %v1959
        %v2075 = vpop.f32.mrf.mxu0
        %v2076 = vadd.f32 %v1928, %v2075
        %2077 = vmatmul.f32.gmra.mxu0 %v1962
        %v2078 = vpop.f32.mrf.mxu0
        %v2079 = vadd.f32 %v1928, %v2078
        %2080 = vmatmul.f32.gmra.mxu0 %v1965
        %v2081 = vpop.f32.mrf.mxu0
        %v2082 = vadd.f32 %v1928, %v2081
        %2083 = vmatmul.f32.gmra.mxu0 %v1968
        %v2084 = vpop.f32.mrf.mxu0
        %v2085 = vadd.f32 %v1928, %v2084
        %2086 = vmatmul.f32.gmra.mxu0 %v1971
        %v2087 = vpop.f32.mrf.mxu0
        %v2088 = vadd.f32 %v1928, %v2087
        %2089 = vmatmul.f32.gmra.mxu0 %v1974
        %v2090 = vpop.f32.mrf.mxu0
        %v2091 = vadd.f32 %v1928, %v2090
        %2092 = vmatmul.f32.gmra.mxu0 %v1977
        %v2093 = vpop.f32.mrf.mxu0
        %v2094 = vadd.f32 %v1928, %v2093
        %2095 = vmatmul.f32.gmra.mxu0 %v1980
        %v2096 = vpop.f32.mrf.mxu0
        %v2097 = vadd.f32 %v1928, %v2096
        %2098 = vmatmul.f32.gmra.mxu0 %v1983
        %v2099 = vpop.f32.mrf.mxu0
        %v2100 = vadd.f32 %v1928, %v2099
        %2101 = vmatmul.f32.gmra.mxu0 %v1986
        %v2102 = vpop.f32.mrf.mxu0
        %v2103 = vadd.f32 %v1928, %v2102
        %2104 = vmatmul.f32.gmra.mxu0 %v1989
        %v2105 = vpop.f32.mrf.mxu0
        %v2106 = vadd.f32 %v1928, %v2105
        %2107 = vmatmul.f32.gmra.mxu0 %v1992
        %v2108 = vpop.f32.mrf.mxu0
        %v2109 = vadd.f32 %v1928, %v2108
        %2110 = vmatmul.f32.gmra.mxu0 %v1995
        %v2111 = vpop.f32.mrf.mxu0
        %v2112 = vadd.f32 %v1928, %v2111
        %2113 = vmatmul.f32.gmra.mxu0 %v1998
        %v2114 = vpop.f32.mrf.mxu0
        %v2115 = vadd.f32 %v1928, %v2114
        %2116 = vmatmul.f32.gmra.mxu0 %v2001
        %v2117 = vpop.f32.mrf.mxu0
        %v2118 = vadd.f32 %v1928, %v2117
        %2119 = vmatmul.f32.gmra.mxu0 %v2004
        %v2120 = vpop.f32.mrf.mxu0
        %v2121 = vadd.f32 %v1928, %v2120
        %2122 = vmatmul.f32.gmra.mxu0 %v2007
        %v2123 = vpop.f32.mrf.mxu0
        %v2124 = vadd.f32 %v1928, %v2123
        %2125 = vmatmul.f32.gmra.mxu0 %v2010
        %v2126 = vpop.f32.mrf.mxu0
        %v2127 = vadd.f32 %v1928, %v2126
        %2128 = vmatmul.f32.gmra.mxu0 %v2013
        %v2129 = vpop.f32.mrf.mxu0
        %v2130 = vadd.f32 %v1928, %v2129
        %2131 = vmatmul.f32.gmra.mxu0 %v2016
        %v2132 = vpop.f32.mrf.mxu0
        %v2133 = vadd.f32 %v1928, %v2132
        %2134 = vmatmul.f32.gmra.mxu0 %v2019
        %v2135 = vpop.f32.mrf.mxu0
        %v2136 = vadd.f32 %v1928, %v2135
        %2137 = vmatmul.f32.gmra.mxu0 %v2022
        %v2138 = vpop.f32.mrf.mxu0
        %v2139 = vadd.f32 %v1928, %v2138
        %2140 = vmatmul.f32.gmra.mxu0 %v2025
        %v2141 = vpop.f32.mrf.mxu0
        %v2142 = vadd.f32 %v1928, %v2141
        %2143 = vdwg.mxu0
        %v2144 = vmax.f32 %v2049, 0.0
        %v2145 = vmax.f32 %v2052, 0.0
        %v2146 = vmax.f32 %v2055, 0.0
        %v2147 = vmax.f32 %v2058, 0.0
        %v2148 = vmax.f32 %v2061, 0.0
        %v2149 = vmax.f32 %v2064, 0.0
        %v2150 = vmax.f32 %v2067, 0.0
        %v2151 = vmax.f32 %v2070, 0.0
        %v2152 = vmax.f32 %v2073, 0.0
        %v2153 = vmax.f32 %v2076, 0.0
        %v2154 = vmax.f32 %v2079, 0.0
        %v2155 = vmax.f32 %v2082, 0.0
        %v2156 = vmax.f32 %v2085, 0.0
        %v2157 = vmax.f32 %v2088, 0.0
        %v2158 = vmax.f32 %v2091, 0.0
        %v2159 = vmax.f32 %v2094, 0.0
        %v2160 = vmax.f32 %v2097, 0.0
        %v2161 = vmax.f32 %v2100, 0.0
        %v2162 = vmax.f32 %v2103, 0.0
        %v2163 = vmax.f32 %v2106, 0.0
        %v2164 = vmax.f32 %v2109, 0.0
        %v2165 = vmax.f32 %v2112, 0.0
        %v2166 = vmax.f32 %v2115, 0.0
        %v2167 = vmax.f32 %v2118, 0.0
        %v2168 = vmax.f32 %v2121, 0.0
        %v2169 = vmax.f32 %v2124, 0.0
        %v2170 = vmax.f32 %v2127, 0.0
        %v2171 = vmax.f32 %v2130, 0.0
        %v2172 = vmax.f32 %v2133, 0.0
        %v2173 = vmax.f32 %v2136, 0.0
        %v2174 = vmax.f32 %v2139, 0.0
        %v2175 = vmax.f32 %v2142, 0.0
        %v2176 = vld [vmem:[%s3] sm:$0xf]
        %v2177 = vld [vmem:[%s4] sm:$0x1]
        %v2179 = vperm.slane %v2177, 0
        %v2182 = vsel %vm1657, %v2144, 0
        %v2185 = vsel %vm1657, %v2145, 0
        %v2188 = vsel %vm1657, %v2146, 0
        %v2191 = vsel %vm1657, %v2147, 0
        %v2194 = vsel %vm1657, %v2148, 0
        %v2197 = vsel %vm1657, %v2149, 0
        %v2200 = vsel %vm1657, %v2150, 0
        %v2203 = vsel %vm1657, %v2151, 0
        %v2206 = vsel %vm1657, %v2152, 0
        %v2209 = vsel %vm1657, %v2153, 0
        %v2212 = vsel %vm1657, %v2154, 0
        %v2215 = vsel %vm1657, %v2155, 0
        %v2218 = vsel %vm1657, %v2156, 0
        %v2221 = vsel %vm1657, %v2157, 0
        %v2224 = vsel %vm1657, %v2158, 0
        %v2227 = vsel %vm1657, %v2159, 0
        %v2230 = vsel %vm1657, %v2160, 0
        %v2233 = vsel %vm1657, %v2161, 0
        %v2236 = vsel %vm1657, %v2162, 0
        %v2239 = vsel %vm1657, %v2163, 0
        %v2242 = vsel %vm1657, %v2164, 0
        %v2245 = vsel %vm1657, %v2165, 0
        %v2248 = vsel %vm1657, %v2166, 0
        %v2251 = vsel %vm1657, %v2167, 0
        %v2254 = vsel %vm1657, %v2168, 0
        %v2257 = vsel %vm1657, %v2169, 0
        %v2260 = vsel %vm1657, %v2170, 0
        %v2263 = vsel %vm1657, %v2171, 0
        %v2266 = vsel %vm1657, %v2172, 0
        %v2269 = vsel %vm1657, %v2173, 0
        %v2272 = vsel %vm1657, %v2174, 0
        %v2275 = vsel %vm1657, %v2175, 0
        %v2278 = vsel %vm2027, %v2176, 0
        %2280 = vmatpush.msra.mxu0 0.0
        %2281 = vmatpush.msra.mxu0 0.0
        %2282 = vmatpush.msra.mxu0 0.0
        %2283 = vmatpush.msra.mxu0 0.0
        %2284 = vmatpush.msra.mxu0 0.0
        %2285 = vmatpush.msra.mxu0 0.0
        %2286 = vmatpush.msra.mxu0 0.0
        %2287 = vmatpush.msra.mxu0 0.0
        %2288 = vmatpush.msra.mxu0 0.0
        %2289 = vmatpush.msra.mxu0 0.0
        %2290 = vmatpush.msra.mxu0 0.0
        %2291 = vmatpush.msra.mxu0 0.0
        %2292 = vmatpush.msra.mxu0 0.0
        %2293 = vmatpush.msra.mxu0 0.0
        %2294 = vmatpush.msra.mxu0 0.0
        %2295 = vmatpush.msra.mxu0 %v2278
        %2296 = vmatmul.f32.gmra.mxu0 %v2182
        %v2297 = vpop.f32.mrf.mxu0
        %v2298 = vadd.f32 %v2179, %v2297
        %2299 = vmatmul.f32.gmra.mxu0 %v2185
        %v2300 = vpop.f32.mrf.mxu0
        %v2301 = vadd.f32 %v2179, %v2300
        %2302 = vmatmul.f32.gmra.mxu0 %v2188
        %v2303 = vpop.f32.mrf.mxu0
        %v2304 = vadd.f32 %v2179, %v2303
        %2305 = vmatmul.f32.gmra.mxu0 %v2191
        %v2306 = vpop.f32.mrf.mxu0
        %v2307 = vadd.f32 %v2179, %v2306
        %2308 = vmatmul.f32.gmra.mxu0 %v2194
        %v2309 = vpop.f32.mrf.mxu0
        %v2310 = vadd.f32 %v2179, %v2309
        %2311 = vmatmul.f32.gmra.mxu0 %v2197
        %v2312 = vpop.f32.mrf.mxu0
        %v2313 = vadd.f32 %v2179, %v2312
        %2314 = vmatmul.f32.gmra.mxu0 %v2200
        %v2315 = vpop.f32.mrf.mxu0
        %v2316 = vadd.f32 %v2179, %v2315
        %2317 = vmatmul.f32.gmra.mxu0 %v2203
        %v2318 = vpop.f32.mrf.mxu0
        %v2319 = vadd.f32 %v2179, %v2318
        %2320 = vmatmul.f32.gmra.mxu0 %v2206
        %v2321 = vpop.f32.mrf.mxu0
        %v2322 = vadd.f32 %v2179, %v2321
        %2323 = vmatmul.f32.gmra.mxu0 %v2209
        %v2324 = vpop.f32.mrf.mxu0
        %v2325 = vadd.f32 %v2179, %v2324
        %2326 = vmatmul.f32.gmra.mxu0 %v2212
        %v2327 = vpop.f32.mrf.mxu0
        %v2328 = vadd.f32 %v2179, %v2327
        %2329 = vmatmul.f32.gmra.mxu0 %v2215
        %v2330 = vpop.f32.mrf.mxu0
        %v2331 = vadd.f32 %v2179, %v2330
        %2332 = vmatmul.f32.gmra.mxu0 %v2218
        %v2333 = vpop.f32.mrf.mxu0
        %v2334 = vadd.f32 %v2179, %v2333
        %2335 = vmatmul.f32.gmra.mxu0 %v2221
        %v2336 = vpop.f32.mrf.mxu0
        %v2337 = vadd.f32 %v2179, %v2336
        %2338 = vmatmul.f32.gmra.mxu0 %v2224
        %v2339 = vpop.f32.mrf.mxu0
        %v2340 = vadd.f32 %v2179, %v2339
        %2341 = vmatmul.f32.gmra.mxu0 %v2227
        %v2342 = vpop.f32.mrf.mxu0
        %v2343 = vadd.f32 %v2179, %v2342
        %2344 = vmatmul.f32.gmra.mxu0 %v2230
        %v2345 = vpop.f32.mrf.mxu0
        %v2346 = vadd.f32 %v2179, %v2345
        %2347 = vmatmul.f32.gmra.mxu0 %v2233
        %v2348 = vpop.f32.mrf.mxu0
        %v2349 = vadd.f32 %v2179, %v2348
        %2350 = vmatmul.f32.gmra.mxu0 %v2236
        %v2351 = vpop.f32.mrf.mxu0
        %v2352 = vadd.f32 %v2179, %v2351
        %2353 = vmatmul.f32.gmra.mxu0 %v2239
        %v2354 = vpop.f32.mrf.mxu0
        %v2355 = vadd.f32 %v2179, %v2354
        %2356 = vmatmul.f32.gmra.mxu0 %v2242
        %v2357 = vpop.f32.mrf.mxu0
        %v2358 = vadd.f32 %v2179, %v2357
        %2359 = vmatmul.f32.gmra.mxu0 %v2245
        %v2360 = vpop.f32.mrf.mxu0
        %v2361 = vadd.f32 %v2179, %v2360
        %2362 = vmatmul.f32.gmra.mxu0 %v2248
        %v2363 = vpop.f32.mrf.mxu0
        %v2364 = vadd.f32 %v2179, %v2363
        %2365 = vmatmul.f32.gmra.mxu0 %v2251
        %v2366 = vpop.f32.mrf.mxu0
        %v2367 = vadd.f32 %v2179, %v2366
        %2368 = vmatmul.f32.gmra.mxu0 %v2254
        %v2369 = vpop.f32.mrf.mxu0
        %v2370 = vadd.f32 %v2179, %v2369
        %2371 = vmatmul.f32.gmra.mxu0 %v2257
        %v2372 = vpop.f32.mrf.mxu0
        %v2373 = vadd.f32 %v2179, %v2372
        %2374 = vmatmul.f32.gmra.mxu0 %v2260
        %v2375 = vpop.f32.mrf.mxu0
        %v2376 = vadd.f32 %v2179, %v2375
        %2377 = vmatmul.f32.gmra.mxu0 %v2263
        %v2378 = vpop.f32.mrf.mxu0
        %v2379 = vadd.f32 %v2179, %v2378
        %2380 = vmatmul.f32.gmra.mxu0 %v2266
        %v2381 = vpop.f32.mrf.mxu0
        %v2382 = vadd.f32 %v2179, %v2381
        %2383 = vmatmul.f32.gmra.mxu0 %v2269
        %v2384 = vpop.f32.mrf.mxu0
        %v2385 = vadd.f32 %v2179, %v2384
        %2386 = vmatmul.f32.gmra.mxu0 %v2272
        %v2387 = vpop.f32.mrf.mxu0
        %v2388 = vadd.f32 %v2179, %v2387
        %2389 = vmatmul.f32.gmra.mxu0 %v2275
        %v2390 = vpop.f32.mrf.mxu0
        %v2391 = vadd.f32 %v2179, %v2390
        %2392 = vdwg.mxu0
        %2425 = vrot.lane.b32.xlu0 %v2298, 119
        %v2426 = vpop.permute.xlu0 %2425
        %2427 = vrot.lane.b32.xlu0 %v2301, 119
        %v2428 = vpop.permute.xlu0 %2427
        %2429 = vrot.lane.b32.xlu0 %v2304, 119
        %v2430 = vpop.permute.xlu0 %2429
        %2431 = vrot.lane.b32.xlu0 %v2307, 119
        %v2432 = vpop.permute.xlu0 %2431
        %2433 = vrot.lane.b32.xlu0 %v2310, 119
        %v2434 = vpop.permute.xlu0 %2433
        %2435 = vrot.lane.b32.xlu0 %v2313, 119
        %v2436 = vpop.permute.xlu0 %2435
        %2437 = vrot.lane.b32.xlu0 %v2316, 119
        %v2438 = vpop.permute.xlu0 %2437
        %2439 = vrot.lane.b32.xlu0 %v2319, 119
        %v2440 = vpop.permute.xlu0 %2439
        %2441 = vrot.lane.b32.xlu0 %v2322, 119
        %v2442 = vpop.permute.xlu0 %2441
        %2443 = vrot.lane.b32.xlu0 %v2325, 119
        %v2444 = vpop.permute.xlu0 %2443
        %2445 = vrot.lane.b32.xlu0 %v2328, 119
        %v2446 = vpop.permute.xlu0 %2445
        %2447 = vrot.lane.b32.xlu0 %v2331, 119
        %v2448 = vpop.permute.xlu0 %2447
        %2449 = vrot.lane.b32.xlu0 %v2334, 119
        %v2450 = vpop.permute.xlu0 %2449
        %2451 = vrot.lane.b32.xlu0 %v2337, 119
        %v2452 = vpop.permute.xlu0 %2451
        %2453 = vrot.lane.b32.xlu0 %v2340, 119
        %v2454 = vpop.permute.xlu0 %2453
        %2455 = vrot.lane.b32.xlu0 %v2343, 119
        %v2456 = vpop.permute.xlu0 %2455
        %2457 = vrot.lane.b32.xlu0 %v2346, 119
        %v2458 = vpop.permute.xlu0 %2457
        %2459 = vrot.lane.b32.xlu0 %v2349, 119
        %v2460 = vpop.permute.xlu0 %2459
        %2461 = vrot.lane.b32.xlu0 %v2352, 119
        %v2462 = vpop.permute.xlu0 %2461
        %2463 = vrot.lane.b32.xlu0 %v2355, 119
        %v2464 = vpop.permute.xlu0 %2463
        %2465 = vrot.lane.b32.xlu0 %v2358, 119
        %v2466 = vpop.permute.xlu0 %2465
        %2467 = vrot.lane.b32.xlu0 %v2361, 119
        %v2468 = vpop.permute.xlu0 %2467
        %2469 = vrot.lane.b32.xlu0 %v2364, 119
        %v2470 = vpop.permute.xlu0 %2469
        %2471 = vrot.lane.b32.xlu0 %v2367, 119
        %v2472 = vpop.permute.xlu0 %2471
        %2473 = vrot.lane.b32.xlu0 %v2370, 119
        %v2474 = vpop.permute.xlu0 %2473
        %2475 = vrot.lane.b32.xlu0 %v2373, 119
        %v2476 = vpop.permute.xlu0 %2475
        %2477 = vrot.lane.b32.xlu0 %v2376, 119
        %v2478 = vpop.permute.xlu0 %2477
        %2479 = vrot.lane.b32.xlu0 %v2379, 119
        %v2480 = vpop.permute.xlu0 %2479
        %2481 = vrot.lane.b32.xlu0 %v2382, 119
        %v2482 = vpop.permute.xlu0 %2481
        %2483 = vrot.lane.b32.xlu0 %v2385, 119
        %v2484 = vpop.permute.xlu0 %2483
        %2485 = vrot.lane.b32.xlu0 %v2388, 119
        %v2486 = vpop.permute.xlu0 %2485
        %2487 = vrot.lane.b32.xlu0 %v2391, 119
        %v2488 = vpop.permute.xlu0 %2487
        %v2521 = vsub.f32 %v2298, %v2426
        %v2522 = vsub.f32 %v2301, %v2428
        %v2523 = vsub.f32 %v2304, %v2430
        %v2524 = vsub.f32 %v2307, %v2432
        %v2525 = vsub.f32 %v2310, %v2434
        %v2526 = vsub.f32 %v2313, %v2436
        %v2527 = vsub.f32 %v2316, %v2438
        %v2528 = vsub.f32 %v2319, %v2440
        %v2529 = vsub.f32 %v2322, %v2442
        %v2530 = vsub.f32 %v2325, %v2444
        %v2531 = vsub.f32 %v2328, %v2446
        %v2532 = vsub.f32 %v2331, %v2448
        %v2533 = vsub.f32 %v2334, %v2450
        %v2534 = vsub.f32 %v2337, %v2452
        %v2535 = vsub.f32 %v2340, %v2454
        %v2536 = vsub.f32 %v2343, %v2456
        %v2537 = vsub.f32 %v2346, %v2458
        %v2538 = vsub.f32 %v2349, %v2460
        %v2539 = vsub.f32 %v2352, %v2462
        %v2540 = vsub.f32 %v2355, %v2464
        %v2541 = vsub.f32 %v2358, %v2466
        %v2542 = vsub.f32 %v2361, %v2468
        %v2543 = vsub.f32 %v2364, %v2470
        %v2544 = vsub.f32 %v2367, %v2472
        %v2545 = vsub.f32 %v2370, %v2474
        %v2546 = vsub.f32 %v2373, %v2476
        %v2547 = vsub.f32 %v2376, %v2478
        %v2548 = vsub.f32 %v2379, %v2480
        %v2549 = vsub.f32 %v2382, %v2482
        %v2550 = vsub.f32 %v2385, %v2484
        %v2551 = vsub.f32 %v2388, %v2486
        %v2552 = vsub.f32 %v2391, %v2488
        %v2553 = vmul.f32 %v2521, 1.442695
        %v2554 = vpow.pop %v2553
        %v2555 = vmul.f32 %v2522, 1.442695
        %v2556 = vpow.pop %v2555
        %v2557 = vmul.f32 %v2523, 1.442695
        %v2558 = vpow.pop %v2557
        %v2559 = vmul.f32 %v2524, 1.442695
        %v2560 = vpow.pop %v2559
        %v2561 = vmul.f32 %v2525, 1.442695
        %v2562 = vpow.pop %v2561
        %v2563 = vmul.f32 %v2526, 1.442695
        %v2564 = vpow.pop %v2563
        %v2565 = vmul.f32 %v2527, 1.442695
        %v2566 = vpow.pop %v2565
        %v2567 = vmul.f32 %v2528, 1.442695
        %v2568 = vpow.pop %v2567
        %v2569 = vmul.f32 %v2529, 1.442695
        %v2570 = vpow.pop %v2569
        %v2571 = vmul.f32 %v2530, 1.442695
        %v2572 = vpow.pop %v2571
        %v2573 = vmul.f32 %v2531, 1.442695
        %v2574 = vpow.pop %v2573
        %v2575 = vmul.f32 %v2532, 1.442695
        %v2576 = vpow.pop %v2575
        %v2577 = vmul.f32 %v2533, 1.442695
        %v2578 = vpow.pop %v2577
        %v2579 = vmul.f32 %v2534, 1.442695
        %v2580 = vpow.pop %v2579
        %v2581 = vmul.f32 %v2535, 1.442695
        %v2582 = vpow.pop %v2581
        %v2583 = vmul.f32 %v2536, 1.442695
        %v2584 = vpow.pop %v2583
        %v2585 = vmul.f32 %v2537, 1.442695
        %v2586 = vpow.pop %v2585
        %v2587 = vmul.f32 %v2538, 1.442695
        %v2588 = vpow.pop %v2587
        %v2589 = vmul.f32 %v2539, 1.442695
        %v2590 = vpow.pop %v2589
        %v2591 = vmul.f32 %v2540, 1.442695
        %v2592 = vpow.pop %v2591
        %v2593 = vmul.f32 %v2541, 1.442695
        %v2594 = vpow.pop %v2593
        %v2595 = vmul.f32 %v2542, 1.442695
        %v2596 = vpow.pop %v2595
        %v2597 = vmul.f32 %v2543, 1.442695
        %v2598 = vpow.pop %v2597
        %v2599 = vmul.f32 %v2544, 1.442695
        %v2600 = vpow.pop %v2599
        %v2601 = vmul.f32 %v2545, 1.442695
        %v2602 = vpow.pop %v2601
        %v2603 = vmul.f32 %v2546, 1.442695
        %v2604 = vpow.pop %v2603
        %v2605 = vmul.f32 %v2547, 1.442695
        %v2606 = vpow.pop %v2605
        %v2607 = vmul.f32 %v2548, 1.442695
        %v2608 = vpow.pop %v2607
        %v2609 = vmul.f32 %v2549, 1.442695
        %v2610 = vpow.pop %v2609
        %v2611 = vmul.f32 %v2550, 1.442695
        %v2612 = vpow.pop %v2611
        %v2613 = vmul.f32 %v2551, 1.442695
        %v2614 = vpow.pop %v2613
        %v2615 = vmul.f32 %v2552, 1.442695
        %v2616 = vpow.pop %v2615
        %v2617 = vadd.f32 %v2554, 1.0
        %v2618 = vadd.f32 %v2556, 1.0
        %v2619 = vadd.f32 %v2558, 1.0
        %v2620 = vadd.f32 %v2560, 1.0
        %v2621 = vadd.f32 %v2562, 1.0
        %v2622 = vadd.f32 %v2564, 1.0
        %v2623 = vadd.f32 %v2566, 1.0
        %v2624 = vadd.f32 %v2568, 1.0
        %v2625 = vadd.f32 %v2570, 1.0
        %v2626 = vadd.f32 %v2572, 1.0
        %v2627 = vadd.f32 %v2574, 1.0
        %v2628 = vadd.f32 %v2576, 1.0
        %v2629 = vadd.f32 %v2578, 1.0
        %v2630 = vadd.f32 %v2580, 1.0
        %v2631 = vadd.f32 %v2582, 1.0
        %v2632 = vadd.f32 %v2584, 1.0
        %v2633 = vadd.f32 %v2586, 1.0
        %v2634 = vadd.f32 %v2588, 1.0
        %v2635 = vadd.f32 %v2590, 1.0
        %v2636 = vadd.f32 %v2592, 1.0
        %v2637 = vadd.f32 %v2594, 1.0
        %v2638 = vadd.f32 %v2596, 1.0
        %v2639 = vadd.f32 %v2598, 1.0
        %v2640 = vadd.f32 %v2600, 1.0
        %v2641 = vadd.f32 %v2602, 1.0
        %v2642 = vadd.f32 %v2604, 1.0
        %v2643 = vadd.f32 %v2606, 1.0
        %v2644 = vadd.f32 %v2608, 1.0
        %v2645 = vadd.f32 %v2610, 1.0
        %v2646 = vadd.f32 %v2612, 1.0
        %v2647 = vadd.f32 %v2614, 1.0
        %v2648 = vadd.f32 %v2616, 1.0
        %v2649 = vrcp.pop %v2617
        %v2650 = vmul.f32 %v2617, %v2649
        %v2651 = vsub.f32 1.0, %v2650
        %v2652 = vmul.f32 %v2649, %v2651
        %v2653 = vadd.f32 %v2649, %v2652
        %vm2654 = vweird.f32 %v2617
        %vm2655 = vweird.f32 %v2649
        %vm2656 = vmor %vm2654, %vm2655
        %v2657 = vsel %vm2656, %v2649, %v2653
        %v2658 = vand.u32 2147483647, %v2617
        %vm2659 = vcmp.eq.f32.partialorder %v2658, 8.507059e+37
        %v2660 = vand.u32 %v2617, 2147483648
        %v2661 = vor.u32 1.1754944e-38, %v2660
        %v2662 = vsel %vm2659, %v2661, %v2657
        %v2663 = vmul.f32 1.0, %v2662
        %v2664 = vrcp.pop %v2618
        %v2665 = vmul.f32 %v2618, %v2664
        %v2666 = vsub.f32 1.0, %v2665
        %v2667 = vmul.f32 %v2664, %v2666
        %v2668 = vadd.f32 %v2664, %v2667
        %vm2669 = vweird.f32 %v2618
        %vm2670 = vweird.f32 %v2664
        %vm2671 = vmor %vm2669, %vm2670
        %v2672 = vsel %vm2671, %v2664, %v2668
        %v2673 = vand.u32 2147483647, %v2618
        %vm2674 = vcmp.eq.f32.partialorder %v2673, 8.507059e+37
        %v2675 = vand.u32 %v2618, 2147483648
        %v2676 = vor.u32 1.1754944e-38, %v2675
        %v2677 = vsel %vm2674, %v2676, %v2672
        %v2678 = vmul.f32 1.0, %v2677
        %v2679 = vrcp.pop %v2619
        %v2680 = vmul.f32 %v2619, %v2679
        %v2681 = vsub.f32 1.0, %v2680
        %v2682 = vmul.f32 %v2679, %v2681
        %v2683 = vadd.f32 %v2679, %v2682
        %vm2684 = vweird.f32 %v2619
        %vm2685 = vweird.f32 %v2679
        %vm2686 = vmor %vm2684, %vm2685
        %v2687 = vsel %vm2686, %v2679, %v2683
        %v2688 = vand.u32 2147483647, %v2619
        %vm2689 = vcmp.eq.f32.partialorder %v2688, 8.507059e+37
        %v2690 = vand.u32 %v2619, 2147483648
        %v2691 = vor.u32 1.1754944e-38, %v2690
        %v2692 = vsel %vm2689, %v2691, %v2687
        %v2693 = vmul.f32 1.0, %v2692
        %v2694 = vrcp.pop %v2620
        %v2695 = vmul.f32 %v2620, %v2694
        %v2696 = vsub.f32 1.0, %v2695
        %v2697 = vmul.f32 %v2694, %v2696
        %v2698 = vadd.f32 %v2694, %v2697
        %vm2699 = vweird.f32 %v2620
        %vm2700 = vweird.f32 %v2694
        %vm2701 = vmor %vm2699, %vm2700
        %v2702 = vsel %vm2701, %v2694, %v2698
        %v2703 = vand.u32 2147483647, %v2620
        %vm2704 = vcmp.eq.f32.partialorder %v2703, 8.507059e+37
        %v2705 = vand.u32 %v2620, 2147483648
        %v2706 = vor.u32 1.1754944e-38, %v2705
        %v2707 = vsel %vm2704, %v2706, %v2702
        %v2708 = vmul.f32 1.0, %v2707
        %v2709 = vrcp.pop %v2621
        %v2710 = vmul.f32 %v2621, %v2709
        %v2711 = vsub.f32 1.0, %v2710
        %v2712 = vmul.f32 %v2709, %v2711
        %v2713 = vadd.f32 %v2709, %v2712
        %vm2714 = vweird.f32 %v2621
        %vm2715 = vweird.f32 %v2709
        %vm2716 = vmor %vm2714, %vm2715
        %v2717 = vsel %vm2716, %v2709, %v2713
        %v2718 = vand.u32 2147483647, %v2621
        %vm2719 = vcmp.eq.f32.partialorder %v2718, 8.507059e+37
        %v2720 = vand.u32 %v2621, 2147483648
        %v2721 = vor.u32 1.1754944e-38, %v2720
        %v2722 = vsel %vm2719, %v2721, %v2717
        %v2723 = vmul.f32 1.0, %v2722
        %v2724 = vrcp.pop %v2622
        %v2725 = vmul.f32 %v2622, %v2724
        %v2726 = vsub.f32 1.0, %v2725
        %v2727 = vmul.f32 %v2724, %v2726
        %v2728 = vadd.f32 %v2724, %v2727
        %vm2729 = vweird.f32 %v2622
        %vm2730 = vweird.f32 %v2724
        %vm2731 = vmor %vm2729, %vm2730
        %v2732 = vsel %vm2731, %v2724, %v2728
        %v2733 = vand.u32 2147483647, %v2622
        %vm2734 = vcmp.eq.f32.partialorder %v2733, 8.507059e+37
        %v2735 = vand.u32 %v2622, 2147483648
        %v2736 = vor.u32 1.1754944e-38, %v2735
        %v2737 = vsel %vm2734, %v2736, %v2732
        %v2738 = vmul.f32 1.0, %v2737
        %v2739 = vrcp.pop %v2623
        %v2740 = vmul.f32 %v2623, %v2739
        %v2741 = vsub.f32 1.0, %v2740
        %v2742 = vmul.f32 %v2739, %v2741
        %v2743 = vadd.f32 %v2739, %v2742
        %vm2744 = vweird.f32 %v2623
        %vm2745 = vweird.f32 %v2739
        %vm2746 = vmor %vm2744, %vm2745
        %v2747 = vsel %vm2746, %v2739, %v2743
        %v2748 = vand.u32 2147483647, %v2623
        %vm2749 = vcmp.eq.f32.partialorder %v2748, 8.507059e+37
        %v2750 = vand.u32 %v2623, 2147483648
        %v2751 = vor.u32 1.1754944e-38, %v2750
        %v2752 = vsel %vm2749, %v2751, %v2747
        %v2753 = vmul.f32 1.0, %v2752
        %v2754 = vrcp.pop %v2624
        %v2755 = vmul.f32 %v2624, %v2754
        %v2756 = vsub.f32 1.0, %v2755
        %v2757 = vmul.f32 %v2754, %v2756
        %v2758 = vadd.f32 %v2754, %v2757
        %vm2759 = vweird.f32 %v2624
        %vm2760 = vweird.f32 %v2754
        %vm2761 = vmor %vm2759, %vm2760
        %v2762 = vsel %vm2761, %v2754, %v2758
        %v2763 = vand.u32 2147483647, %v2624
        %vm2764 = vcmp.eq.f32.partialorder %v2763, 8.507059e+37
        %v2765 = vand.u32 %v2624, 2147483648
        %v2766 = vor.u32 1.1754944e-38, %v2765
        %v2767 = vsel %vm2764, %v2766, %v2762
        %v2768 = vmul.f32 1.0, %v2767
        %v2769 = vrcp.pop %v2625
        %v2770 = vmul.f32 %v2625, %v2769
        %v2771 = vsub.f32 1.0, %v2770
        %v2772 = vmul.f32 %v2769, %v2771
        %v2773 = vadd.f32 %v2769, %v2772
        %vm2774 = vweird.f32 %v2625
        %vm2775 = vweird.f32 %v2769
        %vm2776 = vmor %vm2774, %vm2775
        %v2777 = vsel %vm2776, %v2769, %v2773
        %v2778 = vand.u32 2147483647, %v2625
        %vm2779 = vcmp.eq.f32.partialorder %v2778, 8.507059e+37
        %v2780 = vand.u32 %v2625, 2147483648
        %v2781 = vor.u32 1.1754944e-38, %v2780
        %v2782 = vsel %vm2779, %v2781, %v2777
        %v2783 = vmul.f32 1.0, %v2782
        %v2784 = vrcp.pop %v2626
        %v2785 = vmul.f32 %v2626, %v2784
        %v2786 = vsub.f32 1.0, %v2785
        %v2787 = vmul.f32 %v2784, %v2786
        %v2788 = vadd.f32 %v2784, %v2787
        %vm2789 = vweird.f32 %v2626
        %vm2790 = vweird.f32 %v2784
        %vm2791 = vmor %vm2789, %vm2790
        %v2792 = vsel %vm2791, %v2784, %v2788
        %v2793 = vand.u32 2147483647, %v2626
        %vm2794 = vcmp.eq.f32.partialorder %v2793, 8.507059e+37
        %v2795 = vand.u32 %v2626, 2147483648
        %v2796 = vor.u32 1.1754944e-38, %v2795
        %v2797 = vsel %vm2794, %v2796, %v2792
        %v2798 = vmul.f32 1.0, %v2797
        %v2799 = vrcp.pop %v2627
        %v2800 = vmul.f32 %v2627, %v2799
        %v2801 = vsub.f32 1.0, %v2800
        %v2802 = vmul.f32 %v2799, %v2801
        %v2803 = vadd.f32 %v2799, %v2802
        %vm2804 = vweird.f32 %v2627
        %vm2805 = vweird.f32 %v2799
        %vm2806 = vmor %vm2804, %vm2805
        %v2807 = vsel %vm2806, %v2799, %v2803
        %v2808 = vand.u32 2147483647, %v2627
        %vm2809 = vcmp.eq.f32.partialorder %v2808, 8.507059e+37
        %v2810 = vand.u32 %v2627, 2147483648
        %v2811 = vor.u32 1.1754944e-38, %v2810
        %v2812 = vsel %vm2809, %v2811, %v2807
        %v2813 = vmul.f32 1.0, %v2812
        %v2814 = vrcp.pop %v2628
        %v2815 = vmul.f32 %v2628, %v2814
        %v2816 = vsub.f32 1.0, %v2815
        %v2817 = vmul.f32 %v2814, %v2816
        %v2818 = vadd.f32 %v2814, %v2817
        %vm2819 = vweird.f32 %v2628
        %vm2820 = vweird.f32 %v2814
        %vm2821 = vmor %vm2819, %vm2820
        %v2822 = vsel %vm2821, %v2814, %v2818
        %v2823 = vand.u32 2147483647, %v2628
        %vm2824 = vcmp.eq.f32.partialorder %v2823, 8.507059e+37
        %v2825 = vand.u32 %v2628, 2147483648
        %v2826 = vor.u32 1.1754944e-38, %v2825
        %v2827 = vsel %vm2824, %v2826, %v2822
        %v2828 = vmul.f32 1.0, %v2827
        %v2829 = vrcp.pop %v2629
        %v2830 = vmul.f32 %v2629, %v2829
        %v2831 = vsub.f32 1.0, %v2830
        %v2832 = vmul.f32 %v2829, %v2831
        %v2833 = vadd.f32 %v2829, %v2832
        %vm2834 = vweird.f32 %v2629
        %vm2835 = vweird.f32 %v2829
        %vm2836 = vmor %vm2834, %vm2835
        %v2837 = vsel %vm2836, %v2829, %v2833
        %v2838 = vand.u32 2147483647, %v2629
        %vm2839 = vcmp.eq.f32.partialorder %v2838, 8.507059e+37
        %v2840 = vand.u32 %v2629, 2147483648
        %v2841 = vor.u32 1.1754944e-38, %v2840
        %v2842 = vsel %vm2839, %v2841, %v2837
        %v2843 = vmul.f32 1.0, %v2842
        %v2844 = vrcp.pop %v2630
        %v2845 = vmul.f32 %v2630, %v2844
        %v2846 = vsub.f32 1.0, %v2845
        %v2847 = vmul.f32 %v2844, %v2846
        %v2848 = vadd.f32 %v2844, %v2847
        %vm2849 = vweird.f32 %v2630
        %vm2850 = vweird.f32 %v2844
        %vm2851 = vmor %vm2849, %vm2850
        %v2852 = vsel %vm2851, %v2844, %v2848
        %v2853 = vand.u32 2147483647, %v2630
        %vm2854 = vcmp.eq.f32.partialorder %v2853, 8.507059e+37
        %v2855 = vand.u32 %v2630, 2147483648
        %v2856 = vor.u32 1.1754944e-38, %v2855
        %v2857 = vsel %vm2854, %v2856, %v2852
        %v2858 = vmul.f32 1.0, %v2857
        %v2859 = vrcp.pop %v2631
        %v2860 = vmul.f32 %v2631, %v2859
        %v2861 = vsub.f32 1.0, %v2860
        %v2862 = vmul.f32 %v2859, %v2861
        %v2863 = vadd.f32 %v2859, %v2862
        %vm2864 = vweird.f32 %v2631
        %vm2865 = vweird.f32 %v2859
        %vm2866 = vmor %vm2864, %vm2865
        %v2867 = vsel %vm2866, %v2859, %v2863
        %v2868 = vand.u32 2147483647, %v2631
        %vm2869 = vcmp.eq.f32.partialorder %v2868, 8.507059e+37
        %v2870 = vand.u32 %v2631, 2147483648
        %v2871 = vor.u32 1.1754944e-38, %v2870
        %v2872 = vsel %vm2869, %v2871, %v2867
        %v2873 = vmul.f32 1.0, %v2872
        %v2874 = vrcp.pop %v2632
        %v2875 = vmul.f32 %v2632, %v2874
        %v2876 = vsub.f32 1.0, %v2875
        %v2877 = vmul.f32 %v2874, %v2876
        %v2878 = vadd.f32 %v2874, %v2877
        %vm2879 = vweird.f32 %v2632
        %vm2880 = vweird.f32 %v2874
        %vm2881 = vmor %vm2879, %vm2880
        %v2882 = vsel %vm2881, %v2874, %v2878
        %v2883 = vand.u32 2147483647, %v2632
        %vm2884 = vcmp.eq.f32.partialorder %v2883, 8.507059e+37
        %v2885 = vand.u32 %v2632, 2147483648
        %v2886 = vor.u32 1.1754944e-38, %v2885
        %v2887 = vsel %vm2884, %v2886, %v2882
        %v2888 = vmul.f32 1.0, %v2887
        %v2889 = vrcp.pop %v2633
        %v2890 = vmul.f32 %v2633, %v2889
        %v2891 = vsub.f32 1.0, %v2890
        %v2892 = vmul.f32 %v2889, %v2891
        %v2893 = vadd.f32 %v2889, %v2892
        %vm2894 = vweird.f32 %v2633
        %vm2895 = vweird.f32 %v2889
        %vm2896 = vmor %vm2894, %vm2895
        %v2897 = vsel %vm2896, %v2889, %v2893
        %v2898 = vand.u32 2147483647, %v2633
        %vm2899 = vcmp.eq.f32.partialorder %v2898, 8.507059e+37
        %v2900 = vand.u32 %v2633, 2147483648
        %v2901 = vor.u32 1.1754944e-38, %v2900
        %v2902 = vsel %vm2899, %v2901, %v2897
        %v2903 = vmul.f32 1.0, %v2902
        %v2904 = vrcp.pop %v2634
        %v2905 = vmul.f32 %v2634, %v2904
        %v2906 = vsub.f32 1.0, %v2905
        %v2907 = vmul.f32 %v2904, %v2906
        %v2908 = vadd.f32 %v2904, %v2907
        %vm2909 = vweird.f32 %v2634
        %vm2910 = vweird.f32 %v2904
        %vm2911 = vmor %vm2909, %vm2910
        %v2912 = vsel %vm2911, %v2904, %v2908
        %v2913 = vand.u32 2147483647, %v2634
        %vm2914 = vcmp.eq.f32.partialorder %v2913, 8.507059e+37
        %v2915 = vand.u32 %v2634, 2147483648
        %v2916 = vor.u32 1.1754944e-38, %v2915
        %v2917 = vsel %vm2914, %v2916, %v2912
        %v2918 = vmul.f32 1.0, %v2917
        %v2919 = vrcp.pop %v2635
        %v2920 = vmul.f32 %v2635, %v2919
        %v2921 = vsub.f32 1.0, %v2920
        %v2922 = vmul.f32 %v2919, %v2921
        %v2923 = vadd.f32 %v2919, %v2922
        %vm2924 = vweird.f32 %v2635
        %vm2925 = vweird.f32 %v2919
        %vm2926 = vmor %vm2924, %vm2925
        %v2927 = vsel %vm2926, %v2919, %v2923
        %v2928 = vand.u32 2147483647, %v2635
        %vm2929 = vcmp.eq.f32.partialorder %v2928, 8.507059e+37
        %v2930 = vand.u32 %v2635, 2147483648
        %v2931 = vor.u32 1.1754944e-38, %v2930
        %v2932 = vsel %vm2929, %v2931, %v2927
        %v2933 = vmul.f32 1.0, %v2932
        %v2934 = vrcp.pop %v2636
        %v2935 = vmul.f32 %v2636, %v2934
        %v2936 = vsub.f32 1.0, %v2935
        %v2937 = vmul.f32 %v2934, %v2936
        %v2938 = vadd.f32 %v2934, %v2937
        %vm2939 = vweird.f32 %v2636
        %vm2940 = vweird.f32 %v2934
        %vm2941 = vmor %vm2939, %vm2940
        %v2942 = vsel %vm2941, %v2934, %v2938
        %v2943 = vand.u32 2147483647, %v2636
        %vm2944 = vcmp.eq.f32.partialorder %v2943, 8.507059e+37
        %v2945 = vand.u32 %v2636, 2147483648
        %v2946 = vor.u32 1.1754944e-38, %v2945
        %v2947 = vsel %vm2944, %v2946, %v2942
        %v2948 = vmul.f32 1.0, %v2947
        %v2949 = vrcp.pop %v2637
        %v2950 = vmul.f32 %v2637, %v2949
        %v2951 = vsub.f32 1.0, %v2950
        %v2952 = vmul.f32 %v2949, %v2951
        %v2953 = vadd.f32 %v2949, %v2952
        %vm2954 = vweird.f32 %v2637
        %vm2955 = vweird.f32 %v2949
        %vm2956 = vmor %vm2954, %vm2955
        %v2957 = vsel %vm2956, %v2949, %v2953
        %v2958 = vand.u32 2147483647, %v2637
        %vm2959 = vcmp.eq.f32.partialorder %v2958, 8.507059e+37
        %v2960 = vand.u32 %v2637, 2147483648
        %v2961 = vor.u32 1.1754944e-38, %v2960
        %v2962 = vsel %vm2959, %v2961, %v2957
        %v2963 = vmul.f32 1.0, %v2962
        %v2964 = vrcp.pop %v2638
        %v2965 = vmul.f32 %v2638, %v2964
        %v2966 = vsub.f32 1.0, %v2965
        %v2967 = vmul.f32 %v2964, %v2966
        %v2968 = vadd.f32 %v2964, %v2967
        %vm2969 = vweird.f32 %v2638
        %vm2970 = vweird.f32 %v2964
        %vm2971 = vmor %vm2969, %vm2970
        %v2972 = vsel %vm2971, %v2964, %v2968
        %v2973 = vand.u32 2147483647, %v2638
        %vm2974 = vcmp.eq.f32.partialorder %v2973, 8.507059e+37
        %v2975 = vand.u32 %v2638, 2147483648
        %v2976 = vor.u32 1.1754944e-38, %v2975
        %v2977 = vsel %vm2974, %v2976, %v2972
        %v2978 = vmul.f32 1.0, %v2977
        %v2979 = vrcp.pop %v2639
        %v2980 = vmul.f32 %v2639, %v2979
        %v2981 = vsub.f32 1.0, %v2980
        %v2982 = vmul.f32 %v2979, %v2981
        %v2983 = vadd.f32 %v2979, %v2982
        %vm2984 = vweird.f32 %v2639
        %vm2985 = vweird.f32 %v2979
        %vm2986 = vmor %vm2984, %vm2985
        %v2987 = vsel %vm2986, %v2979, %v2983
        %v2988 = vand.u32 2147483647, %v2639
        %vm2989 = vcmp.eq.f32.partialorder %v2988, 8.507059e+37
        %v2990 = vand.u32 %v2639, 2147483648
        %v2991 = vor.u32 1.1754944e-38, %v2990
        %v2992 = vsel %vm2989, %v2991, %v2987
        %v2993 = vmul.f32 1.0, %v2992
        %v2994 = vrcp.pop %v2640
        %v2995 = vmul.f32 %v2640, %v2994
        %v2996 = vsub.f32 1.0, %v2995
        %v2997 = vmul.f32 %v2994, %v2996
        %v2998 = vadd.f32 %v2994, %v2997
        %vm2999 = vweird.f32 %v2640
        %vm3000 = vweird.f32 %v2994
        %vm3001 = vmor %vm2999, %vm3000
        %v3002 = vsel %vm3001, %v2994, %v2998
        %v3003 = vand.u32 2147483647, %v2640
        %vm3004 = vcmp.eq.f32.partialorder %v3003, 8.507059e+37
        %v3005 = vand.u32 %v2640, 2147483648
        %v3006 = vor.u32 1.1754944e-38, %v3005
        %v3007 = vsel %vm3004, %v3006, %v3002
        %v3008 = vmul.f32 1.0, %v3007
        %v3009 = vrcp.pop %v2641
        %v3010 = vmul.f32 %v2641, %v3009
        %v3011 = vsub.f32 1.0, %v3010
        %v3012 = vmul.f32 %v3009, %v3011
        %v3013 = vadd.f32 %v3009, %v3012
        %vm3014 = vweird.f32 %v2641
        %vm3015 = vweird.f32 %v3009
        %vm3016 = vmor %vm3014, %vm3015
        %v3017 = vsel %vm3016, %v3009, %v3013
        %v3018 = vand.u32 2147483647, %v2641
        %vm3019 = vcmp.eq.f32.partialorder %v3018, 8.507059e+37
        %v3020 = vand.u32 %v2641, 2147483648
        %v3021 = vor.u32 1.1754944e-38, %v3020
        %v3022 = vsel %vm3019, %v3021, %v3017
        %v3023 = vmul.f32 1.0, %v3022
        %v3024 = vrcp.pop %v2642
        %v3025 = vmul.f32 %v2642, %v3024
        %v3026 = vsub.f32 1.0, %v3025
        %v3027 = vmul.f32 %v3024, %v3026
        %v3028 = vadd.f32 %v3024, %v3027
        %vm3029 = vweird.f32 %v2642
        %vm3030 = vweird.f32 %v3024
        %vm3031 = vmor %vm3029, %vm3030
        %v3032 = vsel %vm3031, %v3024, %v3028
        %v3033 = vand.u32 2147483647, %v2642
        %vm3034 = vcmp.eq.f32.partialorder %v3033, 8.507059e+37
        %v3035 = vand.u32 %v2642, 2147483648
        %v3036 = vor.u32 1.1754944e-38, %v3035
        %v3037 = vsel %vm3034, %v3036, %v3032
        %v3038 = vmul.f32 1.0, %v3037
        %v3039 = vrcp.pop %v2643
        %v3040 = vmul.f32 %v2643, %v3039
        %v3041 = vsub.f32 1.0, %v3040
        %v3042 = vmul.f32 %v3039, %v3041
        %v3043 = vadd.f32 %v3039, %v3042
        %vm3044 = vweird.f32 %v2643
        %vm3045 = vweird.f32 %v3039
        %vm3046 = vmor %vm3044, %vm3045
        %v3047 = vsel %vm3046, %v3039, %v3043
        %v3048 = vand.u32 2147483647, %v2643
        %vm3049 = vcmp.eq.f32.partialorder %v3048, 8.507059e+37
        %v3050 = vand.u32 %v2643, 2147483648
        %v3051 = vor.u32 1.1754944e-38, %v3050
        %v3052 = vsel %vm3049, %v3051, %v3047
        %v3053 = vmul.f32 1.0, %v3052
        %v3054 = vrcp.pop %v2644
        %v3055 = vmul.f32 %v2644, %v3054
        %v3056 = vsub.f32 1.0, %v3055
        %v3057 = vmul.f32 %v3054, %v3056
        %v3058 = vadd.f32 %v3054, %v3057
        %vm3059 = vweird.f32 %v2644
        %vm3060 = vweird.f32 %v3054
        %vm3061 = vmor %vm3059, %vm3060
        %v3062 = vsel %vm3061, %v3054, %v3058
        %v3063 = vand.u32 2147483647, %v2644
        %vm3064 = vcmp.eq.f32.partialorder %v3063, 8.507059e+37
        %v3065 = vand.u32 %v2644, 2147483648
        %v3066 = vor.u32 1.1754944e-38, %v3065
        %v3067 = vsel %vm3064, %v3066, %v3062
        %v3068 = vmul.f32 1.0, %v3067
        %v3069 = vrcp.pop %v2645
        %v3070 = vmul.f32 %v2645, %v3069
        %v3071 = vsub.f32 1.0, %v3070
        %v3072 = vmul.f32 %v3069, %v3071
        %v3073 = vadd.f32 %v3069, %v3072
        %vm3074 = vweird.f32 %v2645
        %vm3075 = vweird.f32 %v3069
        %vm3076 = vmor %vm3074, %vm3075
        %v3077 = vsel %vm3076, %v3069, %v3073
        %v3078 = vand.u32 2147483647, %v2645
        %vm3079 = vcmp.eq.f32.partialorder %v3078, 8.507059e+37
        %v3080 = vand.u32 %v2645, 2147483648
        %v3081 = vor.u32 1.1754944e-38, %v3080
        %v3082 = vsel %vm3079, %v3081, %v3077
        %v3083 = vmul.f32 1.0, %v3082
        %v3084 = vrcp.pop %v2646
        %v3085 = vmul.f32 %v2646, %v3084
        %v3086 = vsub.f32 1.0, %v3085
        %v3087 = vmul.f32 %v3084, %v3086
        %v3088 = vadd.f32 %v3084, %v3087
        %vm3089 = vweird.f32 %v2646
        %vm3090 = vweird.f32 %v3084
        %vm3091 = vmor %vm3089, %vm3090
        %v3092 = vsel %vm3091, %v3084, %v3088
        %v3093 = vand.u32 2147483647, %v2646
        %vm3094 = vcmp.eq.f32.partialorder %v3093, 8.507059e+37
        %v3095 = vand.u32 %v2646, 2147483648
        %v3096 = vor.u32 1.1754944e-38, %v3095
        %v3097 = vsel %vm3094, %v3096, %v3092
        %v3098 = vmul.f32 1.0, %v3097
        %v3099 = vrcp.pop %v2647
        %v3100 = vmul.f32 %v2647, %v3099
        %v3101 = vsub.f32 1.0, %v3100
        %v3102 = vmul.f32 %v3099, %v3101
        %v3103 = vadd.f32 %v3099, %v3102
        %vm3104 = vweird.f32 %v2647
        %vm3105 = vweird.f32 %v3099
        %vm3106 = vmor %vm3104, %vm3105
        %v3107 = vsel %vm3106, %v3099, %v3103
        %v3108 = vand.u32 2147483647, %v2647
        %vm3109 = vcmp.eq.f32.partialorder %v3108, 8.507059e+37
        %v3110 = vand.u32 %v2647, 2147483648
        %v3111 = vor.u32 1.1754944e-38, %v3110
        %v3112 = vsel %vm3109, %v3111, %v3107
        %v3113 = vmul.f32 1.0, %v3112
        %v3114 = vrcp.pop %v2648
        %v3115 = vmul.f32 %v2648, %v3114
        %v3116 = vsub.f32 1.0, %v3115
        %v3117 = vmul.f32 %v3114, %v3116
        %v3118 = vadd.f32 %v3114, %v3117
        %vm3119 = vweird.f32 %v2648
        %vm3120 = vweird.f32 %v3114
        %vm3121 = vmor %vm3119, %vm3120
        %v3122 = vsel %vm3121, %v3114, %v3118
        %v3123 = vand.u32 2147483647, %v2648
        %vm3124 = vcmp.eq.f32.partialorder %v3123, 8.507059e+37
        %v3125 = vand.u32 %v2648, 2147483648
        %v3126 = vor.u32 1.1754944e-38, %v3125
        %v3127 = vsel %vm3124, %v3126, %v3122
        %v3128 = vmul.f32 1.0, %v3127
        %v3129 = vld [vmem:[%s327] sm:$0xff]
        %v3130 = vld [vmem:[%s327 + $0x8] sm:$0xff]
        %v3131 = vld [vmem:[%s327 + $0x10] sm:$0xff]
        %v3132 = vld [vmem:[%s327 + $0x18] sm:$0xff]
        %v3133 = vld [vmem:[%s327 + $0x20] sm:$0xff]
        %v3134 = vld [vmem:[%s327 + $0x28] sm:$0xff]
        %v3135 = vld [vmem:[%s327 + $0x30] sm:$0xff]
        %v3136 = vld [vmem:[%s327 + $0x38] sm:$0xff]
        %v3137 = vld [vmem:[%s327 + $0x40] sm:$0xff]
        %v3138 = vld [vmem:[%s327 + $0x48] sm:$0xff]
        %v3139 = vld [vmem:[%s327 + $0x50] sm:$0xff]
        %v3140 = vld [vmem:[%s327 + $0x58] sm:$0xff]
        %v3141 = vld [vmem:[%s327 + $0x60] sm:$0xff]
        %v3142 = vld [vmem:[%s327 + $0x68] sm:$0xff]
        %v3143 = vld [vmem:[%s327 + $0x70] sm:$0xff]
        %v3144 = vld [vmem:[%s327 + $0x78] sm:$0xff]
        %v3145 = vld [vmem:[%s327 + $0x80] sm:$0xff]
        %v3146 = vld [vmem:[%s327 + $0x88] sm:$0xff]
        %v3147 = vld [vmem:[%s327 + $0x90] sm:$0xff]
        %v3148 = vld [vmem:[%s327 + $0x98] sm:$0xff]
        %v3149 = vld [vmem:[%s327 + $0xa0] sm:$0xff]
        %v3150 = vld [vmem:[%s327 + $0xa8] sm:$0xff]
        %v3151 = vld [vmem:[%s327 + $0xb0] sm:$0xff]
        %v3152 = vld [vmem:[%s327 + $0xb8] sm:$0xff]
        %v3153 = vld [vmem:[%s327 + $0xc0] sm:$0xff]
        %v3154 = vld [vmem:[%s327 + $0xc8] sm:$0xff]
        %v3155 = vld [vmem:[%s327 + $0xd0] sm:$0xff]
        %v3156 = vld [vmem:[%s327 + $0xd8] sm:$0xff]
        %v3157 = vld [vmem:[%s327 + $0xe0] sm:$0xff]
        %v3158 = vld [vmem:[%s327 + $0xe8] sm:$0xff]
        %v3159 = vld [vmem:[%s327 + $0xf0] sm:$0xff]
        %v3160 = vld [vmem:[%s327 + $0xf8] sm:$0xff]
        %v3161 = vld [vmem:[%s333] sm:$0xff]
        %v3162 = vld [vmem:[%s333 + $0x8] sm:$0xff]
        %v3163 = vld [vmem:[%s333 + $0x10] sm:$0xff]
        %v3164 = vld [vmem:[%s333 + $0x18] sm:$0xff]
        %v3165 = vld [vmem:[%s333 + $0x20] sm:$0xff]
        %v3166 = vld [vmem:[%s333 + $0x28] sm:$0xff]
        %v3167 = vld [vmem:[%s333 + $0x30] sm:$0xff]
        %v3168 = vld [vmem:[%s333 + $0x38] sm:$0xff]
        %v3169 = vld [vmem:[%s333 + $0x40] sm:$0xff]
        %v3170 = vld [vmem:[%s333 + $0x48] sm:$0xff]
        %v3171 = vld [vmem:[%s333 + $0x50] sm:$0xff]
        %v3172 = vld [vmem:[%s333 + $0x58] sm:$0xff]
        %v3173 = vld [vmem:[%s333 + $0x60] sm:$0xff]
        %v3174 = vld [vmem:[%s333 + $0x68] sm:$0xff]
        %v3175 = vld [vmem:[%s333 + $0x70] sm:$0xff]
        %v3176 = vld [vmem:[%s333 + $0x78] sm:$0xff]
        %v3177 = vld [vmem:[%s333 + $0x80] sm:$0xff]
        %v3178 = vld [vmem:[%s333 + $0x88] sm:$0xff]
        %v3179 = vld [vmem:[%s333 + $0x90] sm:$0xff]
        %v3180 = vld [vmem:[%s333 + $0x98] sm:$0xff]
        %v3181 = vld [vmem:[%s333 + $0xa0] sm:$0xff]
        %v3182 = vld [vmem:[%s333 + $0xa8] sm:$0xff]
        %v3183 = vld [vmem:[%s333 + $0xb0] sm:$0xff]
        %v3184 = vld [vmem:[%s333 + $0xb8] sm:$0xff]
        %v3185 = vld [vmem:[%s333 + $0xc0] sm:$0xff]
        %v3186 = vld [vmem:[%s333 + $0xc8] sm:$0xff]
        %v3187 = vld [vmem:[%s333 + $0xd0] sm:$0xff]
        %v3188 = vld [vmem:[%s333 + $0xd8] sm:$0xff]
        %v3189 = vld [vmem:[%s333 + $0xe0] sm:$0xff]
        %v3190 = vld [vmem:[%s333 + $0xe8] sm:$0xff]
        %v3191 = vld [vmem:[%s333 + $0xf0] sm:$0xff]
        %v3192 = vld [vmem:[%s333 + $0xf8] sm:$0xff]
        %3225 = vrot.lane.b32.xlu0 %v3161, 54
        %v3226 = vpop.permute.xlu0 %3225
        %3227 = vrot.lane.b32.xlu0 %v3162, 54
        %v3228 = vpop.permute.xlu0 %3227
        %3229 = vrot.lane.b32.xlu0 %v3163, 54
        %v3230 = vpop.permute.xlu0 %3229
        %3231 = vrot.lane.b32.xlu0 %v3164, 54
        %v3232 = vpop.permute.xlu0 %3231
        %3233 = vrot.lane.b32.xlu0 %v3165, 54
        %v3234 = vpop.permute.xlu0 %3233
        %3235 = vrot.lane.b32.xlu0 %v3166, 54
        %v3236 = vpop.permute.xlu0 %3235
        %3237 = vrot.lane.b32.xlu0 %v3167, 54
        %v3238 = vpop.permute.xlu0 %3237
        %3239 = vrot.lane.b32.xlu0 %v3168, 54
        %v3240 = vpop.permute.xlu0 %3239
        %3241 = vrot.lane.b32.xlu0 %v3169, 54
        %v3242 = vpop.permute.xlu0 %3241
        %3243 = vrot.lane.b32.xlu0 %v3170, 54
        %v3244 = vpop.permute.xlu0 %3243
        %3245 = vrot.lane.b32.xlu0 %v3171, 54
        %v3246 = vpop.permute.xlu0 %3245
        %3247 = vrot.lane.b32.xlu0 %v3172, 54
        %v3248 = vpop.permute.xlu0 %3247
        %3249 = vrot.lane.b32.xlu0 %v3173, 54
        %v3250 = vpop.permute.xlu0 %3249
        %3251 = vrot.lane.b32.xlu0 %v3174, 54
        %v3252 = vpop.permute.xlu0 %3251
        %3253 = vrot.lane.b32.xlu0 %v3175, 54
        %v3254 = vpop.permute.xlu0 %3253
        %3255 = vrot.lane.b32.xlu0 %v3176, 54
        %v3256 = vpop.permute.xlu0 %3255
        %3257 = vrot.lane.b32.xlu0 %v3177, 54
        %v3258 = vpop.permute.xlu0 %3257
        %3259 = vrot.lane.b32.xlu0 %v3178, 54
        %v3260 = vpop.permute.xlu0 %3259
        %3261 = vrot.lane.b32.xlu0 %v3179, 54
        %v3262 = vpop.permute.xlu0 %3261
        %3263 = vrot.lane.b32.xlu0 %v3180, 54
        %v3264 = vpop.permute.xlu0 %3263
        %3265 = vrot.lane.b32.xlu0 %v3181, 54
        %v3266 = vpop.permute.xlu0 %3265
        %3267 = vrot.lane.b32.xlu0 %v3182, 54
        %v3268 = vpop.permute.xlu0 %3267
        %3269 = vrot.lane.b32.xlu0 %v3183, 54
        %v3270 = vpop.permute.xlu0 %3269
        %3271 = vrot.lane.b32.xlu0 %v3184, 54
        %v3272 = vpop.permute.xlu0 %3271
        %3273 = vrot.lane.b32.xlu0 %v3185, 54
        %v3274 = vpop.permute.xlu0 %3273
        %3275 = vrot.lane.b32.xlu0 %v3186, 54
        %v3276 = vpop.permute.xlu0 %3275
        %3277 = vrot.lane.b32.xlu0 %v3187, 54
        %v3278 = vpop.permute.xlu0 %3277
        %3279 = vrot.lane.b32.xlu0 %v3188, 54
        %v3280 = vpop.permute.xlu0 %3279
        %3281 = vrot.lane.b32.xlu0 %v3189, 54
        %v3282 = vpop.permute.xlu0 %3281
        %3283 = vrot.lane.b32.xlu0 %v3190, 54
        %v3284 = vpop.permute.xlu0 %3283
        %3285 = vrot.lane.b32.xlu0 %v3191, 54
        %v3286 = vpop.permute.xlu0 %3285
        %3287 = vrot.lane.b32.xlu0 %v3192, 54
        %v3288 = vpop.permute.xlu0 %3287
        %v3321 = vmul.f32 %v2298, %v3226
        %v3322 = vmul.f32 %v2301, %v3228
        %v3323 = vmul.f32 %v2304, %v3230
        %v3324 = vmul.f32 %v2307, %v3232
        %v3325 = vmul.f32 %v2310, %v3234
        %v3326 = vmul.f32 %v2313, %v3236
        %v3327 = vmul.f32 %v2316, %v3238
        %v3328 = vmul.f32 %v2319, %v3240
        %v3329 = vmul.f32 %v2322, %v3242
        %v3330 = vmul.f32 %v2325, %v3244
        %v3331 = vmul.f32 %v2328, %v3246
        %v3332 = vmul.f32 %v2331, %v3248
        %v3333 = vmul.f32 %v2334, %v3250
        %v3334 = vmul.f32 %v2337, %v3252
        %v3335 = vmul.f32 %v2340, %v3254
        %v3336 = vmul.f32 %v2343, %v3256
        %v3337 = vmul.f32 %v2346, %v3258
        %v3338 = vmul.f32 %v2349, %v3260
        %v3339 = vmul.f32 %v2352, %v3262
        %v3340 = vmul.f32 %v2355, %v3264
        %v3341 = vmul.f32 %v2358, %v3266
        %v3342 = vmul.f32 %v2361, %v3268
        %v3343 = vmul.f32 %v2364, %v3270
        %v3344 = vmul.f32 %v2367, %v3272
        %v3345 = vmul.f32 %v2370, %v3274
        %v3346 = vmul.f32 %v2373, %v3276
        %v3347 = vmul.f32 %v2376, %v3278
        %v3348 = vmul.f32 %v2379, %v3280
        %v3349 = vmul.f32 %v2382, %v3282
        %v3350 = vmul.f32 %v2385, %v3284
        %v3351 = vmul.f32 %v2388, %v3286
        %v3352 = vmul.f32 %v2391, %v3288
        %3385 = vrot.lane.b32.xlu0 %v3321, 74
        %v3386 = vpop.permute.xlu0 %3385
        %3387 = vrot.lane.b32.xlu0 %v3322, 74
        %v3388 = vpop.permute.xlu0 %3387
        %3389 = vrot.lane.b32.xlu0 %v3323, 74
        %v3390 = vpop.permute.xlu0 %3389
        %3391 = vrot.lane.b32.xlu0 %v3324, 74
        %v3392 = vpop.permute.xlu0 %3391
        %3393 = vrot.lane.b32.xlu0 %v3325, 74
        %v3394 = vpop.permute.xlu0 %3393
        %3395 = vrot.lane.b32.xlu0 %v3326, 74
        %v3396 = vpop.permute.xlu0 %3395
        %3397 = vrot.lane.b32.xlu0 %v3327, 74
        %v3398 = vpop.permute.xlu0 %3397
        %3399 = vrot.lane.b32.xlu0 %v3328, 74
        %v3400 = vpop.permute.xlu0 %3399
        %3401 = vrot.lane.b32.xlu0 %v3329, 74
        %v3402 = vpop.permute.xlu0 %3401
        %3403 = vrot.lane.b32.xlu0 %v3330, 74
        %v3404 = vpop.permute.xlu0 %3403
        %3405 = vrot.lane.b32.xlu0 %v3331, 74
        %v3406 = vpop.permute.xlu0 %3405
        %3407 = vrot.lane.b32.xlu0 %v3332, 74
        %v3408 = vpop.permute.xlu0 %3407
        %3409 = vrot.lane.b32.xlu0 %v3333, 74
        %v3410 = vpop.permute.xlu0 %3409
        %3411 = vrot.lane.b32.xlu0 %v3334, 74
        %v3412 = vpop.permute.xlu0 %3411
        %3413 = vrot.lane.b32.xlu0 %v3335, 74
        %v3414 = vpop.permute.xlu0 %3413
        %3415 = vrot.lane.b32.xlu0 %v3336, 74
        %v3416 = vpop.permute.xlu0 %3415
        %3417 = vrot.lane.b32.xlu0 %v3337, 74
        %v3418 = vpop.permute.xlu0 %3417
        %3419 = vrot.lane.b32.xlu0 %v3338, 74
        %v3420 = vpop.permute.xlu0 %3419
        %3421 = vrot.lane.b32.xlu0 %v3339, 74
        %v3422 = vpop.permute.xlu0 %3421
        %3423 = vrot.lane.b32.xlu0 %v3340, 74
        %v3424 = vpop.permute.xlu0 %3423
        %3425 = vrot.lane.b32.xlu0 %v3341, 74
        %v3426 = vpop.permute.xlu0 %3425
        %3427 = vrot.lane.b32.xlu0 %v3342, 74
        %v3428 = vpop.permute.xlu0 %3427
        %3429 = vrot.lane.b32.xlu0 %v3343, 74
        %v3430 = vpop.permute.xlu0 %3429
        %3431 = vrot.lane.b32.xlu0 %v3344, 74
        %v3432 = vpop.permute.xlu0 %3431
        %3433 = vrot.lane.b32.xlu0 %v3345, 74
        %v3434 = vpop.permute.xlu0 %3433
        %3435 = vrot.lane.b32.xlu0 %v3346, 74
        %v3436 = vpop.permute.xlu0 %3435
        %3437 = vrot.lane.b32.xlu0 %v3347, 74
        %v3438 = vpop.permute.xlu0 %3437
        %3439 = vrot.lane.b32.xlu0 %v3348, 74
        %v3440 = vpop.permute.xlu0 %3439
        %3441 = vrot.lane.b32.xlu0 %v3349, 74
        %v3442 = vpop.permute.xlu0 %3441
        %3443 = vrot.lane.b32.xlu0 %v3350, 74
        %v3444 = vpop.permute.xlu0 %3443
        %3445 = vrot.lane.b32.xlu0 %v3351, 74
        %v3446 = vpop.permute.xlu0 %3445
        %3447 = vrot.lane.b32.xlu0 %v3352, 74
        %v3448 = vpop.permute.xlu0 %3447
        %v3481 = vadd.f32 %v3129, %v3386
        %v3482 = vadd.f32 %v3130, %v3388
        %v3483 = vadd.f32 %v3131, %v3390
        %v3484 = vadd.f32 %v3132, %v3392
        %v3485 = vadd.f32 %v3133, %v3394
        %v3486 = vadd.f32 %v3134, %v3396
        %v3487 = vadd.f32 %v3135, %v3398
        %v3488 = vadd.f32 %v3136, %v3400
        %v3489 = vadd.f32 %v3137, %v3402
        %v3490 = vadd.f32 %v3138, %v3404
        %v3491 = vadd.f32 %v3139, %v3406
        %v3492 = vadd.f32 %v3140, %v3408
        %v3493 = vadd.f32 %v3141, %v3410
        %v3494 = vadd.f32 %v3142, %v3412
        %v3495 = vadd.f32 %v3143, %v3414
        %v3496 = vadd.f32 %v3144, %v3416
        %v3497 = vadd.f32 %v3145, %v3418
        %v3498 = vadd.f32 %v3146, %v3420
        %v3499 = vadd.f32 %v3147, %v3422
        %v3500 = vadd.f32 %v3148, %v3424
        %v3501 = vadd.f32 %v3149, %v3426
        %v3502 = vadd.f32 %v3150, %v3428
        %v3503 = vadd.f32 %v3151, %v3430
        %v3504 = vadd.f32 %v3152, %v3432
        %v3505 = vadd.f32 %v3153, %v3434
        %v3506 = vadd.f32 %v3154, %v3436
        %v3507 = vadd.f32 %v3155, %v3438
        %v3508 = vadd.f32 %v3156, %v3440
        %v3509 = vadd.f32 %v3157, %v3442
        %v3510 = vadd.f32 %v3158, %v3444
        %v3511 = vadd.f32 %v3159, %v3446
        %v3512 = vadd.f32 %v3160, %v3448
        %v3513 = vmul.f32 %v2298, 1.442695
        %v3514 = vpow.pop %v3513
        %v3515 = vmul.f32 %v2301, 1.442695
        %v3516 = vpow.pop %v3515
        %v3517 = vmul.f32 %v2304, 1.442695
        %v3518 = vpow.pop %v3517
        %v3519 = vmul.f32 %v2307, 1.442695
        %v3520 = vpow.pop %v3519
        %v3521 = vmul.f32 %v2310, 1.442695
        %v3522 = vpow.pop %v3521
        %v3523 = vmul.f32 %v2313, 1.442695
        %v3524 = vpow.pop %v3523
        %v3525 = vmul.f32 %v2316, 1.442695
        %v3526 = vpow.pop %v3525
        %v3527 = vmul.f32 %v2319, 1.442695
        %v3528 = vpow.pop %v3527
        %v3529 = vmul.f32 %v2322, 1.442695
        %v3530 = vpow.pop %v3529
        %v3531 = vmul.f32 %v2325, 1.442695
        %v3532 = vpow.pop %v3531
        %v3533 = vmul.f32 %v2328, 1.442695
        %v3534 = vpow.pop %v3533
        %v3535 = vmul.f32 %v2331, 1.442695
        %v3536 = vpow.pop %v3535
        %v3537 = vmul.f32 %v2334, 1.442695
        %v3538 = vpow.pop %v3537
        %v3539 = vmul.f32 %v2337, 1.442695
        %v3540 = vpow.pop %v3539
        %v3541 = vmul.f32 %v2340, 1.442695
        %v3542 = vpow.pop %v3541
        %v3543 = vmul.f32 %v2343, 1.442695
        %v3544 = vpow.pop %v3543
        %v3545 = vmul.f32 %v2346, 1.442695
        %v3546 = vpow.pop %v3545
        %v3547 = vmul.f32 %v2349, 1.442695
        %v3548 = vpow.pop %v3547
        %v3549 = vmul.f32 %v2352, 1.442695
        %v3550 = vpow.pop %v3549
        %v3551 = vmul.f32 %v2355, 1.442695
        %v3552 = vpow.pop %v3551
        %v3553 = vmul.f32 %v2358, 1.442695
        %v3554 = vpow.pop %v3553
        %v3555 = vmul.f32 %v2361, 1.442695
        %v3556 = vpow.pop %v3555
        %v3557 = vmul.f32 %v2364, 1.442695
        %v3558 = vpow.pop %v3557
        %v3559 = vmul.f32 %v2367, 1.442695
        %v3560 = vpow.pop %v3559
        %v3561 = vmul.f32 %v2370, 1.442695
        %v3562 = vpow.pop %v3561
        %v3563 = vmul.f32 %v2373, 1.442695
        %v3564 = vpow.pop %v3563
        %v3565 = vmul.f32 %v2376, 1.442695
        %v3566 = vpow.pop %v3565
        %v3567 = vmul.f32 %v2379, 1.442695
        %v3568 = vpow.pop %v3567
        %v3569 = vmul.f32 %v2382, 1.442695
        %v3570 = vpow.pop %v3569
        %v3571 = vmul.f32 %v2385, 1.442695
        %v3572 = vpow.pop %v3571
        %v3573 = vmul.f32 %v2388, 1.442695
        %v3574 = vpow.pop %v3573
        %v3575 = vmul.f32 %v2391, 1.442695
        %v3576 = vpow.pop %v3575
        %3609 = vrot.lane.b32.xlu0 %v3514, 38
        %v3610 = vpop.permute.xlu0 %3609
        %3611 = vrot.lane.b32.xlu0 %v3516, 38
        %v3612 = vpop.permute.xlu0 %3611
        %3613 = vrot.lane.b32.xlu0 %v3518, 38
        %v3614 = vpop.permute.xlu0 %3613
        %3615 = vrot.lane.b32.xlu0 %v3520, 38
        %v3616 = vpop.permute.xlu0 %3615
        %3617 = vrot.lane.b32.xlu0 %v3522, 38
        %v3618 = vpop.permute.xlu0 %3617
        %3619 = vrot.lane.b32.xlu0 %v3524, 38
        %v3620 = vpop.permute.xlu0 %3619
        %3621 = vrot.lane.b32.xlu0 %v3526, 38
        %v3622 = vpop.permute.xlu0 %3621
        %3623 = vrot.lane.b32.xlu0 %v3528, 38
        %v3624 = vpop.permute.xlu0 %3623
        %3625 = vrot.lane.b32.xlu0 %v3530, 38
        %v3626 = vpop.permute.xlu0 %3625
        %3627 = vrot.lane.b32.xlu0 %v3532, 38
        %v3628 = vpop.permute.xlu0 %3627
        %3629 = vrot.lane.b32.xlu0 %v3534, 38
        %v3630 = vpop.permute.xlu0 %3629
        %3631 = vrot.lane.b32.xlu0 %v3536, 38
        %v3632 = vpop.permute.xlu0 %3631
        %3633 = vrot.lane.b32.xlu0 %v3538, 38
        %v3634 = vpop.permute.xlu0 %3633
        %3635 = vrot.lane.b32.xlu0 %v3540, 38
        %v3636 = vpop.permute.xlu0 %3635
        %3637 = vrot.lane.b32.xlu0 %v3542, 38
        %v3638 = vpop.permute.xlu0 %3637
        %3639 = vrot.lane.b32.xlu0 %v3544, 38
        %v3640 = vpop.permute.xlu0 %3639
        %3641 = vrot.lane.b32.xlu0 %v3546, 38
        %v3642 = vpop.permute.xlu0 %3641
        %3643 = vrot.lane.b32.xlu0 %v3548, 38
        %v3644 = vpop.permute.xlu0 %3643
        %3645 = vrot.lane.b32.xlu0 %v3550, 38
        %v3646 = vpop.permute.xlu0 %3645
        %3647 = vrot.lane.b32.xlu0 %v3552, 38
        %v3648 = vpop.permute.xlu0 %3647
        %3649 = vrot.lane.b32.xlu0 %v3554, 38
        %v3650 = vpop.permute.xlu0 %3649
        %3651 = vrot.lane.b32.xlu0 %v3556, 38
        %v3652 = vpop.permute.xlu0 %3651
        %3653 = vrot.lane.b32.xlu0 %v3558, 38
        %v3654 = vpop.permute.xlu0 %3653
        %3655 = vrot.lane.b32.xlu0 %v3560, 38
        %v3656 = vpop.permute.xlu0 %3655
        %3657 = vrot.lane.b32.xlu0 %v3562, 38
        %v3658 = vpop.permute.xlu0 %3657
        %3659 = vrot.lane.b32.xlu0 %v3564, 38
        %v3660 = vpop.permute.xlu0 %3659
        %3661 = vrot.lane.b32.xlu0 %v3566, 38
        %v3662 = vpop.permute.xlu0 %3661
        %3663 = vrot.lane.b32.xlu0 %v3568, 38
        %v3664 = vpop.permute.xlu0 %3663
        %3665 = vrot.lane.b32.xlu0 %v3570, 38
        %v3666 = vpop.permute.xlu0 %3665
        %3667 = vrot.lane.b32.xlu0 %v3572, 38
        %v3668 = vpop.permute.xlu0 %3667
        %3669 = vrot.lane.b32.xlu0 %v3574, 38
        %v3670 = vpop.permute.xlu0 %3669
        %3671 = vrot.lane.b32.xlu0 %v3576, 38
        %v3672 = vpop.permute.xlu0 %3671
        %v3705 = vmul.f32 %v3161, %v3610
        %v3706 = vmul.f32 %v3162, %v3612
        %v3707 = vmul.f32 %v3163, %v3614
        %v3708 = vmul.f32 %v3164, %v3616
        %v3709 = vmul.f32 %v3165, %v3618
        %v3710 = vmul.f32 %v3166, %v3620
        %v3711 = vmul.f32 %v3167, %v3622
        %v3712 = vmul.f32 %v3168, %v3624
        %v3713 = vmul.f32 %v3169, %v3626
        %v3714 = vmul.f32 %v3170, %v3628
        %v3715 = vmul.f32 %v3171, %v3630
        %v3716 = vmul.f32 %v3172, %v3632
        %v3717 = vmul.f32 %v3173, %v3634
        %v3718 = vmul.f32 %v3174, %v3636
        %v3719 = vmul.f32 %v3175, %v3638
        %v3720 = vmul.f32 %v3176, %v3640
        %v3721 = vmul.f32 %v3177, %v3642
        %v3722 = vmul.f32 %v3178, %v3644
        %v3723 = vmul.f32 %v3179, %v3646
        %v3724 = vmul.f32 %v3180, %v3648
        %v3725 = vmul.f32 %v3181, %v3650
        %v3726 = vmul.f32 %v3182, %v3652
        %v3727 = vmul.f32 %v3183, %v3654
        %v3728 = vmul.f32 %v3184, %v3656
        %v3729 = vmul.f32 %v3185, %v3658
        %v3730 = vmul.f32 %v3186, %v3660
        %v3731 = vmul.f32 %v3187, %v3662
        %v3732 = vmul.f32 %v3188, %v3664
        %v3733 = vmul.f32 %v3189, %v3666
        %v3734 = vmul.f32 %v3190, %v3668
        %v3735 = vmul.f32 %v3191, %v3670
        %v3736 = vmul.f32 %v3192, %v3672
        %v3737 = vadd.f32 %v3481, %v3705
        %v3738 = vadd.f32 %v3482, %v3706
        %v3739 = vadd.f32 %v3483, %v3707
        %v3740 = vadd.f32 %v3484, %v3708
        %v3741 = vadd.f32 %v3485, %v3709
        %v3742 = vadd.f32 %v3486, %v3710
        %v3743 = vadd.f32 %v3487, %v3711
        %v3744 = vadd.f32 %v3488, %v3712
        %v3745 = vadd.f32 %v3489, %v3713
        %v3746 = vadd.f32 %v3490, %v3714
        %v3747 = vadd.f32 %v3491, %v3715
        %v3748 = vadd.f32 %v3492, %v3716
        %v3749 = vadd.f32 %v3493, %v3717
        %v3750 = vadd.f32 %v3494, %v3718
        %v3751 = vadd.f32 %v3495, %v3719
        %v3752 = vadd.f32 %v3496, %v3720
        %v3753 = vadd.f32 %v3497, %v3721
        %v3754 = vadd.f32 %v3498, %v3722
        %v3755 = vadd.f32 %v3499, %v3723
        %v3756 = vadd.f32 %v3500, %v3724
        %v3757 = vadd.f32 %v3501, %v3725
        %v3758 = vadd.f32 %v3502, %v3726
        %v3759 = vadd.f32 %v3503, %v3727
        %v3760 = vadd.f32 %v3504, %v3728
        %v3761 = vadd.f32 %v3505, %v3729
        %v3762 = vadd.f32 %v3506, %v3730
        %v3763 = vadd.f32 %v3507, %v3731
        %v3764 = vadd.f32 %v3508, %v3732
        %v3765 = vadd.f32 %v3509, %v3733
        %v3766 = vadd.f32 %v3510, %v3734
        %v3767 = vadd.f32 %v3511, %v3735
        %v3768 = vadd.f32 %v3512, %v3736
        %v3769 = vlaneseq
        %v3770 = vand.u32 %v3769, 127
        %vm3771 = vcmp.lt.s32.totalorder %v3770, 0
        %v3772 = vsub.s32 0, %v3770
        %v3773 = vsel %vm3771, %v3772, %v3770
        %v3774 = vshrl.u32 %v3773, 2
        %v3775 = vand.u32 %v3773, 3
        %v3776 = vsub.s32 0, %v3775
        %v3777 = vsel %vm3771, %v3776, %v3775
        %vm3778 = vcmp.ne.s32.totalorder %v3777, 0
        %vm3779 = vcmp.lt.s32.totalorder %v3777, 0
        %vm3780 = vmand %vm3779, %vm3778
        %v3781 = vadd.s32 %v3777, 4
        %v3782 = vsel %vm3780, %v3781, %v3777
        %vm3783 = vcmp.ge.s32.totalorder %v3782, 2
        %v3784 = vsel %vm3783, %v3737, %v3481
        %v3785 = vsel %vm3783, %v3738, %v3482
        %v3786 = vsel %vm3783, %v3739, %v3483
        %v3787 = vsel %vm3783, %v3740, %v3484
        %v3788 = vsel %vm3783, %v3741, %v3485
        %v3789 = vsel %vm3783, %v3742, %v3486
        %v3790 = vsel %vm3783, %v3743, %v3487
        %v3791 = vsel %vm3783, %v3744, %v3488
        %v3792 = vsel %vm3783, %v3745, %v3489
        %v3793 = vsel %vm3783, %v3746, %v3490
        %v3794 = vsel %vm3783, %v3747, %v3491
        %v3795 = vsel %vm3783, %v3748, %v3492
        %v3796 = vsel %vm3783, %v3749, %v3493
        %v3797 = vsel %vm3783, %v3750, %v3494
        %v3798 = vsel %vm3783, %v3751, %v3495
        %v3799 = vsel %vm3783, %v3752, %v3496
        %v3800 = vsel %vm3783, %v3753, %v3497
        %v3801 = vsel %vm3783, %v3754, %v3498
        %v3802 = vsel %vm3783, %v3755, %v3499
        %v3803 = vsel %vm3783, %v3756, %v3500
        %v3804 = vsel %vm3783, %v3757, %v3501
        %v3805 = vsel %vm3783, %v3758, %v3502
        %v3806 = vsel %vm3783, %v3759, %v3503
        %v3807 = vsel %vm3783, %v3760, %v3504
        %v3808 = vsel %vm3783, %v3761, %v3505
        %v3809 = vsel %vm3783, %v3762, %v3506
        %v3810 = vsel %vm3783, %v3763, %v3507
        %v3811 = vsel %vm3783, %v3764, %v3508
        %v3812 = vsel %vm3783, %v3765, %v3509
        %v3813 = vsel %vm3783, %v3766, %v3510
        %v3814 = vsel %vm3783, %v3767, %v3511
        %v3815 = vsel %vm3783, %v3768, %v3512
        %v3816 = vmax.f32 %v3784, 0.0
        %v3817 = vmax.f32 %v3785, 0.0
        %v3818 = vmax.f32 %v3786, 0.0
        %v3819 = vmax.f32 %v3787, 0.0
        %v3820 = vmax.f32 %v3788, 0.0
        %v3821 = vmax.f32 %v3789, 0.0
        %v3822 = vmax.f32 %v3790, 0.0
        %v3823 = vmax.f32 %v3791, 0.0
        %v3824 = vmax.f32 %v3792, 0.0
        %v3825 = vmax.f32 %v3793, 0.0
        %v3826 = vmax.f32 %v3794, 0.0
        %v3827 = vmax.f32 %v3795, 0.0
        %v3828 = vmax.f32 %v3796, 0.0
        %v3829 = vmax.f32 %v3797, 0.0
        %v3830 = vmax.f32 %v3798, 0.0
        %v3831 = vmax.f32 %v3799, 0.0
        %v3832 = vmax.f32 %v3800, 0.0
        %v3833 = vmax.f32 %v3801, 0.0
        %v3834 = vmax.f32 %v3802, 0.0
        %v3835 = vmax.f32 %v3803, 0.0
        %v3836 = vmax.f32 %v3804, 0.0
        %v3837 = vmax.f32 %v3805, 0.0
        %v3838 = vmax.f32 %v3806, 0.0
        %v3839 = vmax.f32 %v3807, 0.0
        %v3840 = vmax.f32 %v3808, 0.0
        %v3841 = vmax.f32 %v3809, 0.0
        %v3842 = vmax.f32 %v3810, 0.0
        %v3843 = vmax.f32 %v3811, 0.0
        %v3844 = vmax.f32 %v3812, 0.0
        %v3845 = vmax.f32 %v3813, 0.0
        %v3846 = vmax.f32 %v3814, 0.0
        %v3847 = vmax.f32 %v3815, 0.0
        %v3848 = vmin.f32 %v3816, 256.0
        %v3849 = vmin.f32 %v3817, 256.0
        %v3850 = vmin.f32 %v3818, 256.0
        %v3851 = vmin.f32 %v3819, 256.0
        %v3852 = vmin.f32 %v3820, 256.0
        %v3853 = vmin.f32 %v3821, 256.0
        %v3854 = vmin.f32 %v3822, 256.0
        %v3855 = vmin.f32 %v3823, 256.0
        %v3856 = vmin.f32 %v3824, 256.0
        %v3857 = vmin.f32 %v3825, 256.0
        %v3858 = vmin.f32 %v3826, 256.0
        %v3859 = vmin.f32 %v3827, 256.0
        %v3860 = vmin.f32 %v3828, 256.0
        %v3861 = vmin.f32 %v3829, 256.0
        %v3862 = vmin.f32 %v3830, 256.0
        %v3863 = vmin.f32 %v3831, 256.0
        %v3864 = vmin.f32 %v3832, 256.0
        %v3865 = vmin.f32 %v3833, 256.0
        %v3866 = vmin.f32 %v3834, 256.0
        %v3867 = vmin.f32 %v3835, 256.0
        %v3868 = vmin.f32 %v3836, 256.0
        %v3869 = vmin.f32 %v3837, 256.0
        %v3870 = vmin.f32 %v3838, 256.0
        %v3871 = vmin.f32 %v3839, 256.0
        %v3872 = vmin.f32 %v3840, 256.0
        %v3873 = vmin.f32 %v3841, 256.0
        %v3874 = vmin.f32 %v3842, 256.0
        %v3875 = vmin.f32 %v3843, 256.0
        %v3876 = vmin.f32 %v3844, 256.0
        %v3877 = vmin.f32 %v3845, 256.0
        %v3878 = vmin.f32 %v3846, 256.0
        %v3879 = vmin.f32 %v3847, 256.0
        %3912 = vrot.lane.b32.xlu0 %v3848, 45
        %v3913 = vpop.permute.xlu0 %3912
        %3914 = vrot.lane.b32.xlu0 %v3849, 45
        %v3915 = vpop.permute.xlu0 %3914
        %3916 = vrot.lane.b32.xlu0 %v3850, 45
        %v3917 = vpop.permute.xlu0 %3916
        %3918 = vrot.lane.b32.xlu0 %v3851, 45
        %v3919 = vpop.permute.xlu0 %3918
        %3920 = vrot.lane.b32.xlu0 %v3852, 45
        %v3921 = vpop.permute.xlu0 %3920
        %3922 = vrot.lane.b32.xlu0 %v3853, 45
        %v3923 = vpop.permute.xlu0 %3922
        %3924 = vrot.lane.b32.xlu0 %v3854, 45
        %v3925 = vpop.permute.xlu0 %3924
        %3926 = vrot.lane.b32.xlu0 %v3855, 45
        %v3927 = vpop.permute.xlu0 %3926
        %3928 = vrot.lane.b32.xlu0 %v3856, 45
        %v3929 = vpop.permute.xlu0 %3928
        %3930 = vrot.lane.b32.xlu0 %v3857, 45
        %v3931 = vpop.permute.xlu0 %3930
        %3932 = vrot.lane.b32.xlu0 %v3858, 45
        %v3933 = vpop.permute.xlu0 %3932
        %3934 = vrot.lane.b32.xlu0 %v3859, 45
        %v3935 = vpop.permute.xlu0 %3934
        %3936 = vrot.lane.b32.xlu0 %v3860, 45
        %v3937 = vpop.permute.xlu0 %3936
        %3938 = vrot.lane.b32.xlu0 %v3861, 45
        %v3939 = vpop.permute.xlu0 %3938
        %3940 = vrot.lane.b32.xlu0 %v3862, 45
        %v3941 = vpop.permute.xlu0 %3940
        %3942 = vrot.lane.b32.xlu0 %v3863, 45
        %v3943 = vpop.permute.xlu0 %3942
        %3944 = vrot.lane.b32.xlu0 %v3864, 45
        %v3945 = vpop.permute.xlu0 %3944
        %3946 = vrot.lane.b32.xlu0 %v3865, 45
        %v3947 = vpop.permute.xlu0 %3946
        %3948 = vrot.lane.b32.xlu0 %v3866, 45
        %v3949 = vpop.permute.xlu0 %3948
        %3950 = vrot.lane.b32.xlu0 %v3867, 45
        %v3951 = vpop.permute.xlu0 %3950
        %3952 = vrot.lane.b32.xlu0 %v3868, 45
        %v3953 = vpop.permute.xlu0 %3952
        %3954 = vrot.lane.b32.xlu0 %v3869, 45
        %v3955 = vpop.permute.xlu0 %3954
        %3956 = vrot.lane.b32.xlu0 %v3870, 45
        %v3957 = vpop.permute.xlu0 %3956
        %3958 = vrot.lane.b32.xlu0 %v3871, 45
        %v3959 = vpop.permute.xlu0 %3958
        %3960 = vrot.lane.b32.xlu0 %v3872, 45
        %v3961 = vpop.permute.xlu0 %3960
        %3962 = vrot.lane.b32.xlu0 %v3873, 45
        %v3963 = vpop.permute.xlu0 %3962
        %3964 = vrot.lane.b32.xlu0 %v3874, 45
        %v3965 = vpop.permute.xlu0 %3964
        %3966 = vrot.lane.b32.xlu0 %v3875, 45
        %v3967 = vpop.permute.xlu0 %3966
        %3968 = vrot.lane.b32.xlu0 %v3876, 45
        %v3969 = vpop.permute.xlu0 %3968
        %3970 = vrot.lane.b32.xlu0 %v3877, 45
        %v3971 = vpop.permute.xlu0 %3970
        %3972 = vrot.lane.b32.xlu0 %v3878, 45
        %v3973 = vpop.permute.xlu0 %3972
        %3974 = vrot.lane.b32.xlu0 %v3879, 45
        %v3975 = vpop.permute.xlu0 %3974
        %vm4008 = vcmask 72704
        %v4009 = vsel %vm4008, %v2663, %v2426
        %v4010 = vsel %vm4008, %v2678, %v2428
        %v4011 = vsel %vm4008, %v2693, %v2430
        %v4012 = vsel %vm4008, %v2708, %v2432
        %v4013 = vsel %vm4008, %v2723, %v2434
        %v4014 = vsel %vm4008, %v2738, %v2436
        %v4015 = vsel %vm4008, %v2753, %v2438
        %v4016 = vsel %vm4008, %v2768, %v2440
        %v4017 = vsel %vm4008, %v2783, %v2442
        %v4018 = vsel %vm4008, %v2798, %v2444
        %v4019 = vsel %vm4008, %v2813, %v2446
        %v4020 = vsel %vm4008, %v2828, %v2448
        %v4021 = vsel %vm4008, %v2843, %v2450
        %v4022 = vsel %vm4008, %v2858, %v2452
        %v4023 = vsel %vm4008, %v2873, %v2454
        %v4024 = vsel %vm4008, %v2888, %v2456
        %v4025 = vsel %vm4008, %v2903, %v2458
        %v4026 = vsel %vm4008, %v2918, %v2460
        %v4027 = vsel %vm4008, %v2933, %v2462
        %v4028 = vsel %vm4008, %v2948, %v2464
        %v4029 = vsel %vm4008, %v2963, %v2466
        %v4030 = vsel %vm4008, %v2978, %v2468
        %v4031 = vsel %vm4008, %v2993, %v2470
        %v4032 = vsel %vm4008, %v3008, %v2472
        %v4033 = vsel %vm4008, %v3023, %v2474
        %v4034 = vsel %vm4008, %v3038, %v2476
        %v4035 = vsel %vm4008, %v3053, %v2478
        %v4036 = vsel %vm4008, %v3068, %v2480
        %v4037 = vsel %vm4008, %v3083, %v2482
        %v4038 = vsel %vm4008, %v3098, %v2484
        %v4039 = vsel %vm4008, %v3113, %v2486
        %v4040 = vsel %vm4008, %v3128, %v2488
        %vm4041 = vcmask 367616
        %v4042 = vsel %vm4041, %v4009, %v3913
        %v4043 = vsel %vm4041, %v4010, %v3915
        %v4044 = vsel %vm4041, %v4011, %v3917
        %v4045 = vsel %vm4041, %v4012, %v3919
        %v4046 = vsel %vm4041, %v4013, %v3921
        %v4047 = vsel %vm4041, %v4014, %v3923
        %v4048 = vsel %vm4041, %v4015, %v3925
        %v4049 = vsel %vm4041, %v4016, %v3927
        %v4050 = vsel %vm4041, %v4017, %v3929
        %v4051 = vsel %vm4041, %v4018, %v3931
        %v4052 = vsel %vm4041, %v4019, %v3933
        %v4053 = vsel %vm4041, %v4020, %v3935
        %v4054 = vsel %vm4041, %v4021, %v3937
        %v4055 = vsel %vm4041, %v4022, %v3939
        %v4056 = vsel %vm4041, %v4023, %v3941
        %v4057 = vsel %vm4041, %v4024, %v3943
        %v4058 = vsel %vm4041, %v4025, %v3945
        %v4059 = vsel %vm4041, %v4026, %v3947
        %v4060 = vsel %vm4041, %v4027, %v3949
        %v4061 = vsel %vm4041, %v4028, %v3951
        %v4062 = vsel %vm4041, %v4029, %v3953
        %v4063 = vsel %vm4041, %v4030, %v3955
        %v4064 = vsel %vm4041, %v4031, %v3957
        %v4065 = vsel %vm4041, %v4032, %v3959
        %v4066 = vsel %vm4041, %v4033, %v3961
        %v4067 = vsel %vm4041, %v4034, %v3963
        %v4068 = vsel %vm4041, %v4035, %v3965
        %v4069 = vsel %vm4041, %v4036, %v3967
        %v4070 = vsel %vm4041, %v4037, %v3969
        %v4071 = vsel %vm4041, %v4038, %v3971
        %v4072 = vsel %vm4041, %v4039, %v3973
        %v4073 = vsel %vm4041, %v4040, %v3975
        %vm4074 = vcmask 662528
        %v4075 = vsel %vm4074, %v4042, 0.0
        %v4076 = vsel %vm4074, %v4043, 0.0
        %v4077 = vsel %vm4074, %v4044, 0.0
        %v4078 = vsel %vm4074, %v4045, 0.0
        %v4079 = vsel %vm4074, %v4046, 0.0
        %v4080 = vsel %vm4074, %v4047, 0.0
        %v4081 = vsel %vm4074, %v4048, 0.0
        %v4082 = vsel %vm4074, %v4049, 0.0
        %v4083 = vsel %vm4074, %v4050, 0.0
        %v4084 = vsel %vm4074, %v4051, 0.0
        %v4085 = vsel %vm4074, %v4052, 0.0
        %v4086 = vsel %vm4074, %v4053, 0.0
        %v4087 = vsel %vm4074, %v4054, 0.0
        %v4088 = vsel %vm4074, %v4055, 0.0
        %v4089 = vsel %vm4074, %v4056, 0.0
        %v4090 = vsel %vm4074, %v4057, 0.0
        %v4091 = vsel %vm4074, %v4058, 0.0
        %v4092 = vsel %vm4074, %v4059, 0.0
        %v4093 = vsel %vm4074, %v4060, 0.0
        %v4094 = vsel %vm4074, %v4061, 0.0
        %v4095 = vsel %vm4074, %v4062, 0.0
        %v4096 = vsel %vm4074, %v4063, 0.0
        %v4097 = vsel %vm4074, %v4064, 0.0
        %v4098 = vsel %vm4074, %v4065, 0.0
        %v4099 = vsel %vm4074, %v4066, 0.0
        %v4100 = vsel %vm4074, %v4067, 0.0
        %v4101 = vsel %vm4074, %v4068, 0.0
        %v4102 = vsel %vm4074, %v4069, 0.0
        %v4103 = vsel %vm4074, %v4070, 0.0
        %v4104 = vsel %vm4074, %v4071, 0.0
        %v4105 = vsel %vm4074, %v4072, 0.0
        %v4106 = vsel %vm4074, %v4073, 0.0
        %4107 = vst [vmem:[%s317] sm:$0xff] %v4075
        %4108 = vst [vmem:[%s317 + $0x8] sm:$0xff] %v4076
        %4109 = vst [vmem:[%s317 + $0x10] sm:$0xff] %v4077
        %4110 = vst [vmem:[%s317 + $0x18] sm:$0xff] %v4078
        %4111 = vst [vmem:[%s317 + $0x20] sm:$0xff] %v4079
        %4112 = vst [vmem:[%s317 + $0x28] sm:$0xff] %v4080
        %4113 = vst [vmem:[%s317 + $0x30] sm:$0xff] %v4081
        %4114 = vst [vmem:[%s317 + $0x38] sm:$0xff] %v4082
        %4115 = vst [vmem:[%s317 + $0x40] sm:$0xff] %v4083
        %4116 = vst [vmem:[%s317 + $0x48] sm:$0xff] %v4084
        %4117 = vst [vmem:[%s317 + $0x50] sm:$0xff] %v4085
        %4118 = vst [vmem:[%s317 + $0x58] sm:$0xff] %v4086
        %4119 = vst [vmem:[%s317 + $0x60] sm:$0xff] %v4087
        %4120 = vst [vmem:[%s317 + $0x68] sm:$0xff] %v4088
        %4121 = vst [vmem:[%s317 + $0x70] sm:$0xff] %v4089
        %4122 = vst [vmem:[%s317 + $0x78] sm:$0xff] %v4090
        %4123 = vst [vmem:[%s317 + $0x80] sm:$0xff] %v4091
        %4124 = vst [vmem:[%s317 + $0x88] sm:$0xff] %v4092
        %4125 = vst [vmem:[%s317 + $0x90] sm:$0xff] %v4093
        %4126 = vst [vmem:[%s317 + $0x98] sm:$0xff] %v4094
        %4127 = vst [vmem:[%s317 + $0xa0] sm:$0xff] %v4095
        %4128 = vst [vmem:[%s317 + $0xa8] sm:$0xff] %v4096
        %4129 = vst [vmem:[%s317 + $0xb0] sm:$0xff] %v4097
        %4130 = vst [vmem:[%s317 + $0xb8] sm:$0xff] %v4098
        %4131 = vst [vmem:[%s317 + $0xc0] sm:$0xff] %v4099
        %4132 = vst [vmem:[%s317 + $0xc8] sm:$0xff] %v4100
        %4133 = vst [vmem:[%s317 + $0xd0] sm:$0xff] %v4101
        %4134 = vst [vmem:[%s317 + $0xd8] sm:$0xff] %v4102
        %4135 = vst [vmem:[%s317 + $0xe0] sm:$0xff] %v4103
        %4136 = vst [vmem:[%s317 + $0xe8] sm:$0xff] %v4104
        %4137 = vst [vmem:[%s317 + $0xf0] sm:$0xff] %v4105
        %4138 = vst [vmem:[%s317 + $0xf8] sm:$0xff] %v4106
        %s4139 = sand.u32 %s205, 1
        %s4140 = scalar_lea.sflag [#allocation3], %s4139
        %s4141 = sand.u32 %s205, 1
        %s4142 = smul.addr %s4141, 256
        %s4143 = scalar_lea.vmem [#allocation2], %s4142
        // Predicated region
        $region49: #{tpu_custom_call.1} parent=47 // pred_check
          %p4144 = pneg %p215
        $region50: #{tpu_custom_call.1} parent=47 // pred_check_branch
          %4146 = sbr.rel (%p4144) target = $region52
        $region51: #{tpu_custom_call.1} parent=47 // pred_region
          %s4147 = smul.u32 32, %s26
          %4149 = vsyncadd %s4140, 0
          %s4150 = smul.addr %s25, 32
          %s4151 = sadd.s32 %s4147, %s4150
          %s4152 = smul.addr %s4151, 8
          %s4153 = scalar_lea.hbm %s7, %s4152
          %s4154 = sshll.u32 %s4143, 4
          %s4155 = int_to_ptr.vmem [resolvable:$true] %s4154
          %s4156 = sshll.u32 %s4153, 4
          %s4157 = int_to_ptr.hbm [resolvable:$true] %s4156
          %4162 = dma.vmem_to_hbm [thread:$0]  %s4155, 4096, %s4157, %s4140, 128, 128, 8
        $region52: #{tpu_custom_call.1} parent=47 // pred_fallthru
          _
      $region48: #{tpu_custom_call.1} parent=5 // pred_fallthru
        _
      %p4163 = scmp.le.s32.totalorder 2, %s16
      // Predicated region
      $region53: #{tpu_custom_call.1} parent=5 // pred_check
        %p4164 = pneg %p4163
      $region54: #{tpu_custom_call.1} parent=5 // pred_check_branch
        %4166 = sbr.rel (%p4164) target = $region56
      $region55: #{tpu_custom_call.1} parent=5 // pred_region
        %s4167 = ssub.s32 %s16, 2
        // Predicated region
        $region57: #{tpu_custom_call.1} parent=55 // pred_check
          %p4168 = pneg %p221
        $region58: #{tpu_custom_call.1} parent=55 // pred_check_branch
          %4170 = sbr.rel (%p4168) target = $region60
        $region59: #{tpu_custom_call.1} parent=55 // pred_region
          %s4171 = sand.u32 %s206, 1
          %s4172 = scalar_lea.sflag [#allocation3], %s4171
          %s4173 = sand.u32 %s206, 1
          %s4174 = smul.addr %s4173, 256
          %s4175 = scalar_lea.vmem [#allocation2], %s4174
          %4177 = dma.done %s4172, 4096
        $region60: #{tpu_custom_call.1} parent=55 // pred_fallthru
          _
      $region56: #{tpu_custom_call.1} parent=5 // pred_fallthru
        _
    $region6: #{tpu_custom_call.1} parent=1 // loop_footer
      %s20 = sadd.s32 1, %s16
    $region7: #{tpu_custom_call.1} parent=1 // loop_footer_branch
      %15 = sbr.rel target = $region3
    $region8: #{tpu_custom_call.1} parent=1 // loop_exit
      _
    %4178 = vsyncpa [#allocation3], 1
    %s4179 = scalar_lea.sflag [#allocation3], 1
    %4180 = vsyncpa %s4179, 1

</llo_original>
